<compile_context>
chip_gen: v6e
topology: v6e:2x2x1
jax: 0.10.0
libtpu: 0.0.40
codegen_flags: <defaults>
</compile_context>

<pallas_src>
import functools

import jax
import jax.numpy as jnp
from jax import lax
from jax.experimental import pallas as pl
from jax.experimental.pallas import tpu as pltpu


# --------------------------------------------------------------------------- kernels
def fused_upconv_kernel(xm_ref, xt_ref, xb_ref, sm_ref, st_ref, sb_ref,
                        uf_ref, ut_ref, ub_ref, cmask_ref, w_ref, b_ref,
                        o_ref, stats_ref, ext_ref, *,
                        TH, W, KH, KW, Cx, Cs, Cout, apply_relu, mxu_dtype):
    """Fused 2x-upsample + concat + 'same' conv + bias + ReLU + BN partial stats.

    Grid: (N, H // TH).  All spatial data is kept flattened (row-major, W in lanes).

    xm_ref   : [1, Cx, (TH/2)*Wx]   low-res x rows of this tile (flattened)
    xt/xb_ref: [1, Cx, 8*Wx]        8 low-res rows above / below (clamped at borders)
    sm_ref   : [1, Cs, TH*W]        skip rows of this tile (flattened, full res)
    st/sb_ref: [1, Cs, 8*W]         8 skip rows above / below (clamped at borders)
    uf/ut/ub : constant 0/1 matrices doing the nearest-2x upsample on the MXU
    cmask_ref: [KW, TH*W]           per-tap column-validity masks ('same' width pad)
    w_ref    : [KH*KW, Cout, Cin]   weights per tap, cin order matches cat([x, skip])
    b_ref    : [Cout, 1]
    o_ref    : [1, Cout, TH*W]      lane-dense output block (already flattened NCHW)
    stats_ref: [1, 1, Cout, 2]      per-tile (sum, sum-of-squares) per channel
    ext_ref  : VMEM [Cin, 2*pw + (TH+2*ph)*W]  flattened halo-extended tile scratch
    """
    Cin = Cx + Cs
    ph, pw = (KH - 1) // 2, (KW - 1) // 2
    L = TH * W
    PHW = ph * W
    f32 = jnp.float32
    h = pl.program_id(1)

    # ---- nearest-2x upsample of x (rows + cols) as one MXU matmul (exact) ---------
    x_up = jnp.dot(xm_ref[0], uf_ref[...], preferred_element_type=f32)      # [Cx, L]
    sk = sm_ref[0].astype(f32)                                               # [Cs, L]

    # ---- build the flattened, halo-extended, column-padded tile in VMEM -----------
    # ext lanes: [pw zeros | ph halo rows | TH tile rows | ph halo rows | pw zeros]
    if pw > 0:  # halo-only zeroing: only the 2*pw pad columns are ever zero-filled
        ext_ref[:, 0:pw] = jnp.zeros((Cin, pw), f32)
        ext_ref[:, pw + 2 * PHW + L:] = jnp.zeros((Cin, pw), f32)
    if ph > 0:
        top_ok = (h > 0).astype(f32)
        bot_ok = (h < pl.num_programs(1) - 1).astype(f32)
        x_top = jnp.dot(xt_ref[0], ut_ref[...], preferred_element_type=f32) * top_ok
        x_bot = jnp.dot(xb_ref[0], ub_ref[...], preferred_element_type=f32) * bot_ok
        s_top = st_ref[0, :, (8 - ph) * W:].astype(f32) * top_ok
        s_bot = sb_ref[0, :, 0:PHW].astype(f32) * bot_ok
        ext_ref[0:Cx, pw:pw + PHW] = x_top
        ext_ref[Cx:Cin, pw:pw + PHW] = s_top
        ext_ref[0:Cx, pw + PHW + L:pw + 2 * PHW + L] = x_bot
        ext_ref[Cx:Cin, pw + PHW + L:pw + 2 * PHW + L] = s_bot
    ext_ref[0:Cx, pw + PHW:pw + PHW + L] = x_up        # channel concat = sublane ranges
    ext_ref[Cx:Cin, pw + PHW:pw + PHW + L] = sk

    # ---- conv = KH*KW accumulated matmuls over lane-shifted views (split-K) -------
    acc = jnp.zeros((Cout, L), f32)
    for kw in range(KW):
        m = cmask_ref[kw:kw + 1, :]                    # [1, L] column-validity mask
        for kh in range(KH):
            off = kh * W + kw
            patch = (ext_ref[:, off:off + L] * m).astype(mxu_dtype)
            acc = acc + jnp.dot(w_ref[kh * KW + kw], patch,
                                preferred_element_type=f32)
    out = acc + b_ref[...]
    if apply_relu:
        out = jnp.maximum(out, 0.0)

    # ---- fused BatchNorm partial statistics ----------------------------------------
    s1 = jnp.sum(out, axis=1, keepdims=True)           # [Cout, 1]
    s2 = jnp.sum(out * out, axis=1, keepdims=True)     # [Cout, 1]
    stats_ref[0, 0] = jnp.concatenate([s1, s2], axis=1)

    o_ref[0] = out.astype(o_ref.dtype)


def bn_affine_kernel(y_ref, scale_ref, shift_ref, o_ref):
    """Streaming per-channel affine (BN normalize folded into y*scale + shift)."""
    o_ref[...] = y_ref[...] * scale_ref[...] + shift_ref[...]


# --------------------------------------------------------------------------- helpers
def _pick_row_tile(H, W):
    # TH must be a multiple of 16 (so TH/2 halo blocks stay 8-row aligned) and divide H.
    cands = [t for t in range(16, H + 1, 16) if H % t == 0]
    if not cands:
        raise NotImplementedError("UNet_up pallas kernel needs H (=2*Hx) % 16 == 0")
    # Prefer >=2 row tiles (pipelining + v7x megacore) and a moderate lane block.
    good = [t for t in cands if H // t >= 2 and t * W * 4 <= (2 << 20)]
    pool = good or cands
    return max(pool)


def _upsample_matrices(THl, Wx, TH, W, ph, dtype):
    """Constant 0/1 matrices mapping flattened low-res rows -> flattened 2x rows."""
    t = jnp.arange(TH)
    s = jnp.arange(THl)
    wcol = jnp.arange(W)
    v = jnp.arange(Wx)
    row_sel = (s[:, None] == t[None, :] // 2)                        # [THl, TH]
    col_sel = (v[:, None] == wcol[None, :] // 2)                     # [Wx, W]
    uf = (row_sel[:, None, :, None] & col_sel[None, :, None, :])
    uf = uf.reshape(THl * Wx, TH * W).astype(dtype)
    if ph == 0:
        dummy = jnp.zeros((8 * Wx, W), dtype)
        return uf, dummy, dummy
    a = jnp.arange(ph)
    srel_top = 8 + (a - ph) // 2        # which low-res rows of the 8-row halo block
    srel_bot = a // 2
    sel_top = (jnp.arange(8)[:, None] == srel_top[None, :])          # [8, ph]
    sel_bot = (jnp.arange(8)[:, None] == srel_bot[None, :])
    ut = (sel_top[:, None, :, None] & col_sel[None, :, None, :]).reshape(8 * Wx, ph * W)
    ub = (sel_bot[:, None, :, None] & col_sel[None, :, None, :]).reshape(8 * Wx, ph * W)
    return uf, ut.astype(dtype), ub.astype(dtype)


# --------------------------------------------------------------------------- wrapper
def unet_up_forward(x_nchw, skip_nchw, w_oihw, bias, gamma, beta, *,
                    activation="relu", batchnorm=True, eps=1e-5,
                    compute_dtype=jnp.bfloat16):
    """Forward pass of UNet_up (arg_padding='same', odd kernel). NCHW in / NCHW out."""
    if activation not in ("relu", None):
        # TODO(synk): 'softmax' activation (legacy nn.Softmax default dim) not wired up.
        raise NotImplementedError(f"activation={activation!r} not implemented")

    N, Cx, Hx, Wx = x_nchw.shape
    Nb, Cs, Hs, Ws = skip_nchw.shape
    Cout, Cin_w, KH, KW = w_oihw.shape
    Cin = Cx + Cs
    assert Nb == N and Cin == Cin_w
    assert KH % 2 == 1 and KW % 2 == 1, "only odd 'same' kernels wired up here"
    H, W = 2 * Hx, 2 * Wx
    assert (Hs, Ws) == (H, W), "skip must be at the 2x-upsampled resolution"
    ph, pw = (KH - 1) // 2, (KW - 1) // 2
    assert ph <= 8 and pw < W
    assert Hx % 8 == 0 and Wx % 16 == 0, "need Hx%8==0 and Wx%16==0 for halo/lane tiling"

    TH = _pick_row_tile(H, W)
    THl, nH = TH // 2, H // TH
    L, Ll, PHW = TH * W, (TH // 2) * Wx, ph * W
    EXT = 2 * pw + 2 * PHW + L

    cdt = compute_dtype
    # Flattened-NCHW everywhere (W in the lane dim) -> no NHWC transposes; x stays low-res.
    xf = x_nchw.reshape(N, Cx, Hx * Wx).astype(cdt)
    sf = skip_nchw.reshape(N, Cs, H * W).astype(cdt)
    # Weights per tap: (kh, kw) outer, cin inner -> matches cat([x, skip], axis=1).
    w_k = jnp.transpose(w_oihw, (2, 3, 0, 1)).reshape(KH * KW, Cout, Cin).astype(cdt)
    b2 = bias.reshape(Cout, 1).astype(jnp.float32)
    uf, ut, ub = _upsample_matrices(THl, Wx, TH, W, ph, cdt)

    masks = []
    wv = jnp.arange(W)
    for kw in range(KW):
        dw = kw - pw
        mk = ((wv + dw >= 0) & (wv + dw < W)).astype(jnp.float32)
        masks.append(jnp.tile(mk, TH))
    colmask = jnp.stack(masks, axis=0)                                # [KW, TH*W]

    kernel = functools.partial(
        fused_upconv_kernel, TH=TH, W=W, KH=KH, KW=KW, Cx=Cx, Cs=Cs, Cout=Cout,
        apply_relu=(activation == "relu"), mxu_dtype=cdt)

    halo_w = ut.shape[1]
    cparams = pltpu.CompilerParams(
        dimension_semantics=("parallel", "parallel"),
        vmem_limit_bytes=48 * 1024 * 1024)   # safe on v5e/v6e (128 MiB) and v7x (64 MiB)

    conv_flat, stats = pl.pallas_call(
        kernel,
        out_shape=(jax.ShapeDtypeStruct((N, Cout, H * W), jnp.float32),
                   jax.ShapeDtypeStruct((N, nH, Cout, 2), jnp.float32)),
        grid_spec=pltpu.PrefetchScalarGridSpec(
            num_scalar_prefetch=0,
            grid=(N, nH),
            in_specs=[
                # low-res x rows of this tile + clamped 8-row halo blocks above/below
                pl.BlockSpec((1, Cx, Ll), lambda n, h: (n, 0, h)),
                pl.BlockSpec((1, Cx, 8 * Wx),
                             lambda n, h: (n, 0, jnp.maximum(h * (THl // 8) - 1, 0))),
                pl.BlockSpec((1, Cx, 8 * Wx),
                             lambda n, h: (n, 0, jnp.minimum((h + 1) * (THl // 8),
                                                             Hx // 8 - 1))),
                # full-res skip rows of this tile + clamped 8-row halo blocks
                pl.BlockSpec((1, Cs, L), lambda n, h: (n, 0, h)),
                pl.BlockSpec((1, Cs, 8 * W),
                             lambda n, h: (n, 0, jnp.maximum(h * (TH // 8) - 1, 0))),
                pl.BlockSpec((1, Cs, 8 * W),
                             lambda n, h: (n, 0, jnp.minimum((h + 1) * (TH // 8),
                                                             H // 8 - 1))),
                # constants (resident across the grid)
                pl.BlockSpec((Ll, L), lambda n, h: (0, 0)),
                pl.BlockSpec((8 * Wx, halo_w), lambda n, h: (0, 0)),
                pl.BlockSpec((8 * Wx, halo_w), lambda n, h: (0, 0)),
                pl.BlockSpec((KW, L), lambda n, h: (0, 0)),
                pl.BlockSpec((KH * KW, Cout, Cin), lambda n, h: (0, 0, 0)),
                pl.BlockSpec((Cout, 1), lambda n, h: (0, 0)),
            ],
            out_specs=[
                pl.BlockSpec((1, Cout, L), lambda n, h: (n, 0, h)),
                pl.BlockSpec((1, 1, Cout, 2), lambda n, h: (n, h, 0, 0)),
            ],
            scratch_shapes=[pltpu.VMEM((Cin, EXT), jnp.float32)],
        ),
        compiler_params=cparams,
    )(xf, xf, xf, sf, sf, sf, uf, ut, ub, colmask, w_k, b2)

    y = conv_flat
    if batchnorm:
        # Finish training-mode BatchNorm2d from the fused per-tile partial sums.
        cnt = float(N * H * W)
        s = jnp.sum(stats, axis=(0, 1))                 # [Cout, 2]
        mean = s[:, 0] / cnt
        var = s[:, 1] / cnt - mean * mean               # biased var (PyTorch training norm)
        scale = gamma.astype(jnp.float32) * lax.rsqrt(var + eps)
        shift = beta.astype(jnp.float32) - mean * scale

        HW = H * W
        BL = HW
        while Cout * BL * 4 > (4 << 20) and BL % 2 == 0 and (BL // 2) % 128 == 0:
            BL //= 2
        nB = HW // BL
        y = pl.pallas_call(
            bn_affine_kernel,
            out_shape=jax.ShapeDtypeStruct((N, Cout, HW), jnp.float32),
            grid_spec=pltpu.PrefetchScalarGridSpec(
                num_scalar_prefetch=0,
                grid=(N, nB),
                in_specs=[
                    pl.BlockSpec((1, Cout, BL), lambda n, j: (n, 0, j)),
                    pl.BlockSpec((1, Cout, 1), lambda n, j: (0, 0, 0)),
                    pl.BlockSpec((1, Cout, 1), lambda n, j: (0, 0, 0)),
                ],
                out_specs=pl.BlockSpec((1, Cout, BL), lambda n, j: (n, 0, j)),
            ),
            input_output_aliases={0: 0},   # normalize in place, no extra HBM buffer
            compiler_params=cparams,
        )(y, scale.reshape(1, Cout, 1), shift.reshape(1, Cout, 1))

    # (N, Cout, H*W) -> NCHW: pure metadata reshape, no transpose.
    return y.reshape(N, Cout, H, W)


# --------------------------------------------------------------------------- reference
def unet_up_reference(x, skip, w, bias, gamma, beta, *, activation="relu",
                      batchnorm=True, eps=1e-5):
    """Plain-JAX NCHW reference mirroring the PyTorch forward exactly (f32)."""
    KH, KW = w.shape[2], w.shape[3]
    ph, pw = (KH - 1) // 2, (KW - 1) // 2
    xu = jnp.repeat(jnp.repeat(x, 2, axis=2), 2, axis=3)
    xc = jnp.concatenate([xu, skip], axis=1)
    y = jax.lax.conv_general_dilated(xc, w, (1, 1), padding=((ph, ph), (pw, pw)),
                                     dimension_numbers=("NCHW", "OIHW", "NCHW"))
    y = y + bias[None, :, None, None]
    if activation == "relu":
        y = jnp.maximum(y, 0.0)
    if batchnorm:
        mean = jnp.mean(y, axis=(0, 2, 3), keepdims=True)
        var = jnp.mean(jnp.square(y - mean), axis=(0, 2, 3), keepdims=True)
        y = (y - mean) * jax.lax.rsqrt(var + eps)
        y = y * gamma[None, :, None, None] + beta[None, :, None, None]
    return y


# --------------------------------------------------------------------------- main
if __name__ == "__main__":
    key = jax.random.PRNGKey(0)
    k1, k2, k3, k4 = jax.random.split(key, 4)

    # UNet_up(input_size=8, output_size=8, shape=3, arg_padding='same',
    #         activation='relu', batchnorm=True)
    N, Cx, Hx, Wx = 2, 4, 16, 16        # low-res feature map (32x32 after 2x upsample)
    Cskip = 4                           # skip connection channels
    Cin = Cx + Cskip                    # conv input_size after concat
    Cout = 8                            # output_size
    K = 3                               # shape (odd -> 'same' padding = 1)

    x = jax.random.normal(k1, (N, Cx, Hx, Wx), jnp.float32)
    skip = jax.random.normal(k2, (N, Cskip, 2 * Hx, 2 * Wx), jnp.float32)

    # nn.init.kaiming_normal_(conv.weight): std = sqrt(2 / fan_in), fan_in = Cin*K*K
    fan_in = Cin * K * K
    w = jax.random.normal(k3, (Cout, Cin, K, K), jnp.float32) * jnp.sqrt(2.0 / fan_in)
    # PyTorch Conv2d default bias init: U(-1/sqrt(fan_in), 1/sqrt(fan_in))
    bound = 1.0 / float(jnp.sqrt(fan_in))
    bias = jax.random.uniform(k4, (Cout,), jnp.float32, -bound, bound)
    gamma = jnp.ones((Cout,), jnp.float32)
    beta = jnp.zeros((Cout,), jnp.float32)

    fwd = jax.jit(functools.partial(unet_up_forward, activation="relu", batchnorm=True))
    out = jax.block_until_ready(fwd(x, skip, w, bias, gamma, beta))

    ref = unet_up_reference(x, skip, w, bias, gamma, beta,
                            activation="relu", batchnorm=True)
    assert out.shape == (N, Cout, 2 * Hx, 2 * Wx), out.shape
    err = float(jnp.max(jnp.abs(out - ref)))
    # bf16 conv/upsample operands (f32 accumulation) vs f32 reference -> loosened tolerance
    assert jnp.allclose(out, ref, atol=3e-2, rtol=3e-2), err
    print("KERNEL_OK")
</pallas_src>

<mosaic_0001>
module attributes {stable_mosaic.version = 11 : i64} {
  func.func @fused_upconv_kernel(%arg0: i32, %arg1: i32, %arg2: memref<1x4x128xbf16, #tpu.memory_space<vmem>>, %arg3: memref<1x4x128xbf16, #tpu.memory_space<vmem>>, %arg4: memref<1x4x128xbf16, #tpu.memory_space<vmem>>, %arg5: memref<1x4x512xbf16, #tpu.memory_space<vmem>>, %arg6: memref<1x4x256xbf16, #tpu.memory_space<vmem>>, %arg7: memref<1x4x256xbf16, #tpu.memory_space<vmem>>, %arg8: memref<128x512xbf16, #tpu.memory_space<vmem>>, %arg9: memref<128x32xbf16, #tpu.memory_space<vmem>>, %arg10: memref<128x32xbf16, #tpu.memory_space<vmem>>, %arg11: memref<3x512xf32, #tpu.memory_space<vmem>>, %arg12: memref<9x8x8xbf16, #tpu.memory_space<vmem>>, %arg13: memref<8x1xf32, #tpu.memory_space<vmem>>, %arg14: memref<1x8x512xf32, #tpu.memory_space<vmem>>, %arg15: memref<1x1x8x2xf32, #tpu.memory_space<vmem>>, %arg16: memref<8x578xf32, #tpu.memory_space<vmem>>) attributes {dimension_semantics = [#tpu.dimension_semantics<parallel>, #tpu.dimension_semantics<parallel>], iteration_bounds = array<i64: 2, 2>, scalar_prefetch = 0 : i64, scratch_operands = 1 : i64, tpu.core_type = #tpu.core_type<tc>, window_params = [{transform_indices = @transform_0, window_bounds = array<i64: 1, 4, 128>}, {transform_indices = @transform_1, window_bounds = array<i64: 1, 4, 128>}, {transform_indices = @transform_2, window_bounds = array<i64: 1, 4, 128>}, {transform_indices = @transform_3, window_bounds = array<i64: 1, 4, 512>}, {transform_indices = @transform_4, window_bounds = array<i64: 1, 4, 256>}, {transform_indices = @transform_5, window_bounds = array<i64: 1, 4, 256>}, {pipeline_mode = #tpu.pipeline_mode<synchronous>, transform_indices = @transform_6, window_bounds = array<i64: 128, 512>}, {pipeline_mode = #tpu.pipeline_mode<synchronous>, transform_indices = @transform_7, window_bounds = array<i64: 128, 32>}, {pipeline_mode = #tpu.pipeline_mode<synchronous>, transform_indices = @transform_8, window_bounds = array<i64: 128, 32>}, {pipeline_mode = #tpu.pipeline_mode<synchronous>, transform_indices = @transform_9, window_bounds = array<i64: 3, 512>}, {pipeline_mode = #tpu.pipeline_mode<synchronous>, transform_indices = @transform_10, window_bounds = array<i64: 9, 8, 8>}, {pipeline_mode = #tpu.pipeline_mode<synchronous>, transform_indices = @transform_11, window_bounds = array<i64: 8, 1>}, {transform_indices = @transform_12, window_bounds = array<i64: 1, 8, 512>}, {transform_indices = @transform_13, window_bounds = array<i64: 1, 1, 8, 2>}]} {
    %c0 = arith.constant 0 : index
    %c0_0 = arith.constant 0 : index
    %c0_1 = arith.constant 0 : index
    %0 = vector.load %arg2[%c0, %c0_0, %c0_1] : memref<1x4x128xbf16, #tpu.memory_space<vmem>>, vector<1x4x128xbf16>
    %1 = vector.shape_cast %0 : vector<1x4x128xbf16> to vector<4x128xbf16>
    %c0_2 = arith.constant 0 : index
    %c0_3 = arith.constant 0 : index
    %2 = vector.load %arg8[%c0_2, %c0_3] : memref<128x512xbf16, #tpu.memory_space<vmem>>, vector<128x512xbf16>
    %cst = arith.constant dense<0.000000e+00> : vector<4x512xf32>
    %3 = tpu.matmul %1, %2, %cst {dimension_numbers = #tpu.dot_dimension_numbers<[1], [0], [0], [1], [0, 0, 1, 1], [], []>} : vector<4x128xbf16>, vector<128x512xbf16>, vector<4x512xf32> -> vector<4x512xf32>
    %c0_4 = arith.constant 0 : index
    %c0_5 = arith.constant 0 : index
    %c0_6 = arith.constant 0 : index
    %4 = vector.load %arg5[%c0_4, %c0_5, %c0_6] : memref<1x4x512xbf16, #tpu.memory_space<vmem>>, vector<1x4x512xbf16>
    %5 = vector.shape_cast %4 : vector<1x4x512xbf16> to vector<4x512xbf16>
    %6 = arith.extf %5 : vector<4x512xbf16> to vector<4x512xf32>
    %cst_7 = arith.constant 0.000000e+00 : f32
    %7 = vector.broadcast %cst_7 : f32 to vector<8x1xf32>
    %c0_8 = arith.constant 0 : index
    %c0_9 = arith.constant 0 : index
    %8 = vector.load %arg16[%c0_8, %c0_9] : memref<8x578xf32, #tpu.memory_space<vmem>>, vector<8x1xf32>
    tpu.vector_store %arg16[%c0_8, %c0_9], %7 {strides = array<i32>} : memref<8x578xf32, #tpu.memory_space<vmem>>, vector<8x1xf32>,
    %cst_10 = arith.constant 0.000000e+00 : f32
    %9 = vector.broadcast %cst_10 : f32 to vector<8x1xf32>
    %c0_11 = arith.constant 0 : index
    %c577 = arith.constant 577 : index
    %10 = vector.load %arg16[%c0_11, %c577] : memref<8x578xf32, #tpu.memory_space<vmem>>, vector<8x1xf32>
    tpu.vector_store %arg16[%c0_11, %c577], %9 {strides = array<i32>} : memref<8x578xf32, #tpu.memory_space<vmem>>, vector<8x1xf32>,
    %c0_i32 = arith.constant 0 : i32
    %11 = arith.cmpi sgt, %arg1, %c0_i32 : i32
    %12 = arith.extui %11 : i1 to i32
    %13 = arith.sitofp %12 : i32 to f32
    %c1_i32 = arith.constant 1 : i32
    %14 = arith.cmpi slt, %arg1, %c1_i32 : i32
    %15 = arith.extui %14 : i1 to i32
    %16 = arith.sitofp %15 : i32 to f32
    %c0_12 = arith.constant 0 : index
    %c0_13 = arith.constant 0 : index
    %c0_14 = arith.constant 0 : index
    %17 = vector.load %arg3[%c0_12, %c0_13, %c0_14] : memref<1x4x128xbf16, #tpu.memory_space<vmem>>, vector<1x4x128xbf16>
    %18 = vector.shape_cast %17 : vector<1x4x128xbf16> to vector<4x128xbf16>
    %c0_15 = arith.constant 0 : index
    %c0_16 = arith.constant 0 : index
    %19 = vector.load %arg9[%c0_15, %c0_16] : memref<128x32xbf16, #tpu.memory_space<vmem>>, vector<128x32xbf16>
    %cst_17 = arith.constant dense<0.000000e+00> : vector<4x32xf32>
    %20 = tpu.matmul %18, %19, %cst_17 {dimension_numbers = #tpu.dot_dimension_numbers<[1], [0], [0], [1], [0, 0, 1, 1], [], []>} : vector<4x128xbf16>, vector<128x32xbf16>, vector<4x32xf32> -> vector<4x32xf32>
    %21 = vector.broadcast %13 : f32 to vector<4x32xf32>
    %22 = arith.mulf %20, %21 : vector<4x32xf32>
    %c0_18 = arith.constant 0 : index
    %c0_19 = arith.constant 0 : index
    %c0_20 = arith.constant 0 : index
    %23 = vector.load %arg4[%c0_18, %c0_19, %c0_20] : memref<1x4x128xbf16, #tpu.memory_space<vmem>>, vector<1x4x128xbf16>
    %24 = vector.shape_cast %23 : vector<1x4x128xbf16> to vector<4x128xbf16>
    %c0_21 = arith.constant 0 : index
    %c0_22 = arith.constant 0 : index
    %25 = vector.load %arg10[%c0_21, %c0_22] : memref<128x32xbf16, #tpu.memory_space<vmem>>, vector<128x32xbf16>
    %cst_23 = arith.constant dense<0.000000e+00> : vector<4x32xf32>
    %26 = tpu.matmul %24, %25, %cst_23 {dimension_numbers = #tpu.dot_dimension_numbers<[1], [0], [0], [1], [0, 0, 1, 1], [], []>} : vector<4x128xbf16>, vector<128x32xbf16>, vector<4x32xf32> -> vector<4x32xf32>
    %27 = vector.broadcast %16 : f32 to vector<4x32xf32>
    %28 = arith.mulf %26, %27 : vector<4x32xf32>
    %c0_24 = arith.constant 0 : index
    %c0_25 = arith.constant 0 : index
    %c224 = arith.constant 224 : index
    %29 = vector.load %arg6[%c0_24, %c0_25, %c224] : memref<1x4x256xbf16, #tpu.memory_space<vmem>>, vector<1x4x32xbf16>
    %30 = vector.shape_cast %29 : vector<1x4x32xbf16> to vector<4x32xbf16>
    %31 = arith.extf %30 : vector<4x32xbf16> to vector<4x32xf32>
    %32 = vector.broadcast %13 : f32 to vector<4x32xf32>
    %33 = arith.mulf %31, %32 : vector<4x32xf32>
    %c0_26 = arith.constant 0 : index
    %c0_27 = arith.constant 0 : index
    %c0_28 = arith.constant 0 : index
    %34 = vector.load %arg7[%c0_26, %c0_27, %c0_28] : memref<1x4x256xbf16, #tpu.memory_space<vmem>>, vector<1x4x32xbf16>
    %35 = vector.shape_cast %34 : vector<1x4x32xbf16> to vector<4x32xbf16>
    %36 = arith.extf %35 : vector<4x32xbf16> to vector<4x32xf32>
    %37 = vector.broadcast %16 : f32 to vector<4x32xf32>
    %38 = arith.mulf %36, %37 : vector<4x32xf32>
    %c0_29 = arith.constant 0 : index
    %c1 = arith.constant 1 : index
    %39 = vector.load %arg16[%c0_29, %c1] : memref<8x578xf32, #tpu.memory_space<vmem>>, vector<4x32xf32>
    tpu.vector_store %arg16[%c0_29, %c1], %22 {strides = array<i32>} : memref<8x578xf32, #tpu.memory_space<vmem>>, vector<4x32xf32>,
    %c4 = arith.constant 4 : index
    %c1_30 = arith.constant 1 : index
    %40 = vector.load %arg16[%c4, %c1_30] : memref<8x578xf32, #tpu.memory_space<vmem>>, vector<4x32xf32>
    tpu.vector_store %arg16[%c4, %c1_30], %33 {strides = array<i32>} : memref<8x578xf32, #tpu.memory_space<vmem>>, vector<4x32xf32>,
    %c0_31 = arith.constant 0 : index
    %c545 = arith.constant 545 : index
    %41 = vector.load %arg16[%c0_31, %c545] : memref<8x578xf32, #tpu.memory_space<vmem>>, vector<4x32xf32>
    tpu.vector_store %arg16[%c0_31, %c545], %28 {strides = array<i32>} : memref<8x578xf32, #tpu.memory_space<vmem>>, vector<4x32xf32>,
    %c4_32 = arith.constant 4 : index
    %c545_33 = arith.constant 545 : index
    %42 = vector.load %arg16[%c4_32, %c545_33] : memref<8x578xf32, #tpu.memory_space<vmem>>, vector<4x32xf32>
    tpu.vector_store %arg16[%c4_32, %c545_33], %38 {strides = array<i32>} : memref<8x578xf32, #tpu.memory_space<vmem>>, vector<4x32xf32>,
    %c0_34 = arith.constant 0 : index
    %c33 = arith.constant 33 : index
    %43 = vector.load %arg16[%c0_34, %c33] : memref<8x578xf32, #tpu.memory_space<vmem>>, vector<4x512xf32>
    tpu.vector_store %arg16[%c0_34, %c33], %3 {strides = array<i32>} : memref<8x578xf32, #tpu.memory_space<vmem>>, vector<4x512xf32>,
    %c4_35 = arith.constant 4 : index
    %c33_36 = arith.constant 33 : index
    %44 = vector.load %arg16[%c4_35, %c33_36] : memref<8x578xf32, #tpu.memory_space<vmem>>, vector<4x512xf32>
    tpu.vector_store %arg16[%c4_35, %c33_36], %6 {strides = array<i32>} : memref<8x578xf32, #tpu.memory_space<vmem>>, vector<4x512xf32>,
    %cst_37 = arith.constant 0.000000e+00 : f32
    %45 = vector.broadcast %cst_37 : f32 to vector<8x512xf32>
    %c0_38 = arith.constant 0 : index
    %c0_39 = arith.constant 0 : index
    %46 = vector.load %arg11[%c0_38, %c0_39] : memref<3x512xf32, #tpu.memory_space<vmem>>, vector<1x512xf32>
    %c0_40 = arith.constant 0 : index
    %c0_41 = arith.constant 0 : index
    %47 = vector.load %arg16[%c0_40, %c0_41] : memref<8x578xf32, #tpu.memory_space<vmem>>, vector<8x512xf32>
    %48 = vector.broadcast %46 : vector<1x512xf32> to vector<8x512xf32>
    %49 = arith.mulf %47, %48 : vector<8x512xf32>
    %50 = arith.truncf %49 : vector<8x512xf32> to vector<8x512xbf16>
    %c0_42 = arith.constant 0 : index
    %c0_43 = arith.constant 0 : index
    %c0_44 = arith.constant 0 : index
    %51 = vector.load %arg12[%c0_42, %c0_43, %c0_44] : memref<9x8x8xbf16, #tpu.memory_space<vmem>>, vector<1x8x8xbf16>
    %52 = vector.shape_cast %51 : vector<1x8x8xbf16> to vector<8x8xbf16>
    %cst_45 = arith.constant dense<0.000000e+00> : vector<8x512xf32>
    %53 = tpu.matmul %52, %50, %cst_45 {dimension_numbers = #tpu.dot_dimension_numbers<[1], [0], [0], [1], [0, 0, 1, 1], [], []>} : vector<8x8xbf16>, vector<8x512xbf16>, vector<8x512xf32> -> vector<8x512xf32>
    %54 = arith.addf %45, %53 : vector<8x512xf32>
    %c0_46 = arith.constant 0 : index
    %c32 = arith.constant 32 : index
    %55 = vector.load %arg16[%c0_46, %c32] : memref<8x578xf32, #tpu.memory_space<vmem>>, vector<8x512xf32>
    %56 = vector.broadcast %46 : vector<1x512xf32> to vector<8x512xf32>
    %57 = arith.mulf %55, %56 : vector<8x512xf32>
    %58 = arith.truncf %57 : vector<8x512xf32> to vector<8x512xbf16>
    %c3 = arith.constant 3 : index
    %c0_47 = arith.constant 0 : index
    %c0_48 = arith.constant 0 : index
    %59 = vector.load %arg12[%c3, %c0_47, %c0_48] : memref<9x8x8xbf16, #tpu.memory_space<vmem>>, vector<1x8x8xbf16>
    %60 = vector.shape_cast %59 : vector<1x8x8xbf16> to vector<8x8xbf16>
    %cst_49 = arith.constant dense<0.000000e+00> : vector<8x512xf32>
    %61 = tpu.matmul %60, %58, %cst_49 {dimension_numbers = #tpu.dot_dimension_numbers<[1], [0], [0], [1], [0, 0, 1, 1], [], []>} : vector<8x8xbf16>, vector<8x512xbf16>, vector<8x512xf32> -> vector<8x512xf32>
    %62 = arith.addf %54, %61 : vector<8x512xf32>
    %c0_50 = arith.constant 0 : index
    %c64 = arith.constant 64 : index
    %63 = vector.load %arg16[%c0_50, %c64] : memref<8x578xf32, #tpu.memory_space<vmem>>, vector<8x512xf32>
    %64 = vector.broadcast %46 : vector<1x512xf32> to vector<8x512xf32>
    %65 = arith.mulf %63, %64 : vector<8x512xf32>
    %66 = arith.truncf %65 : vector<8x512xf32> to vector<8x512xbf16>
    %c6 = arith.constant 6 : index
    %c0_51 = arith.constant 0 : index
    %c0_52 = arith.constant 0 : index
    %67 = vector.load %arg12[%c6, %c0_51, %c0_52] : memref<9x8x8xbf16, #tpu.memory_space<vmem>>, vector<1x8x8xbf16>
    %68 = vector.shape_cast %67 : vector<1x8x8xbf16> to vector<8x8xbf16>
    %cst_53 = arith.constant dense<0.000000e+00> : vector<8x512xf32>
    %69 = tpu.matmul %68, %66, %cst_53 {dimension_numbers = #tpu.dot_dimension_numbers<[1], [0], [0], [1], [0, 0, 1, 1], [], []>} : vector<8x8xbf16>, vector<8x512xbf16>, vector<8x512xf32> -> vector<8x512xf32>
    %70 = arith.addf %62, %69 : vector<8x512xf32>
    %c1_54 = arith.constant 1 : index
    %c0_55 = arith.constant 0 : index
    %71 = vector.load %arg11[%c1_54, %c0_55] : memref<3x512xf32, #tpu.memory_space<vmem>>, vector<1x512xf32>
    %c0_56 = arith.constant 0 : index
    %c1_57 = arith.constant 1 : index
    %72 = vector.load %arg16[%c0_56, %c1_57] : memref<8x578xf32, #tpu.memory_space<vmem>>, vector<8x512xf32>
    %73 = vector.broadcast %71 : vector<1x512xf32> to vector<8x512xf32>
    %74 = arith.mulf %72, %73 : vector<8x512xf32>
    %75 = arith.truncf %74 : vector<8x512xf32> to vector<8x512xbf16>
    %c1_58 = arith.constant 1 : index
    %c0_59 = arith.constant 0 : index
    %c0_60 = arith.constant 0 : index
    %76 = vector.load %arg12[%c1_58, %c0_59, %c0_60] : memref<9x8x8xbf16, #tpu.memory_space<vmem>>, vector<1x8x8xbf16>
    %77 = vector.shape_cast %76 : vector<1x8x8xbf16> to vector<8x8xbf16>
    %cst_61 = arith.constant dense<0.000000e+00> : vector<8x512xf32>
    %78 = tpu.matmul %77, %75, %cst_61 {dimension_numbers = #tpu.dot_dimension_numbers<[1], [0], [0], [1], [0, 0, 1, 1], [], []>} : vector<8x8xbf16>, vector<8x512xbf16>, vector<8x512xf32> -> vector<8x512xf32>
    %79 = arith.addf %70, %78 : vector<8x512xf32>
    %c0_62 = arith.constant 0 : index
    %c33_63 = arith.constant 33 : index
    %80 = vector.load %arg16[%c0_62, %c33_63] : memref<8x578xf32, #tpu.memory_space<vmem>>, vector<8x512xf32>
    %81 = vector.broadcast %71 : vector<1x512xf32> to vector<8x512xf32>
    %82 = arith.mulf %80, %81 : vector<8x512xf32>
    %83 = arith.truncf %82 : vector<8x512xf32> to vector<8x512xbf16>
    %c4_64 = arith.constant 4 : index
    %c0_65 = arith.constant 0 : index
    %c0_66 = arith.constant 0 : index
    %84 = vector.load %arg12[%c4_64, %c0_65, %c0_66] : memref<9x8x8xbf16, #tpu.memory_space<vmem>>, vector<1x8x8xbf16>
    %85 = vector.shape_cast %84 : vector<1x8x8xbf16> to vector<8x8xbf16>
    %cst_67 = arith.constant dense<0.000000e+00> : vector<8x512xf32>
    %86 = tpu.matmul %85, %83, %cst_67 {dimension_numbers = #tpu.dot_dimension_numbers<[1], [0], [0], [1], [0, 0, 1, 1], [], []>} : vector<8x8xbf16>, vector<8x512xbf16>, vector<8x512xf32> -> vector<8x512xf32>
    %87 = arith.addf %79, %86 : vector<8x512xf32>
    %c0_68 = arith.constant 0 : index
    %c65 = arith.constant 65 : index
    %88 = vector.load %arg16[%c0_68, %c65] : memref<8x578xf32, #tpu.memory_space<vmem>>, vector<8x512xf32>
    %89 = vector.broadcast %71 : vector<1x512xf32> to vector<8x512xf32>
    %90 = arith.mulf %88, %89 : vector<8x512xf32>
    %91 = arith.truncf %90 : vector<8x512xf32> to vector<8x512xbf16>
    %c7 = arith.constant 7 : index
    %c0_69 = arith.constant 0 : index
    %c0_70 = arith.constant 0 : index
    %92 = vector.load %arg12[%c7, %c0_69, %c0_70] : memref<9x8x8xbf16, #tpu.memory_space<vmem>>, vector<1x8x8xbf16>
    %93 = vector.shape_cast %92 : vector<1x8x8xbf16> to vector<8x8xbf16>
    %cst_71 = arith.constant dense<0.000000e+00> : vector<8x512xf32>
    %94 = tpu.matmul %93, %91, %cst_71 {dimension_numbers = #tpu.dot_dimension_numbers<[1], [0], [0], [1], [0, 0, 1, 1], [], []>} : vector<8x8xbf16>, vector<8x512xbf16>, vector<8x512xf32> -> vector<8x512xf32>
    %95 = arith.addf %87, %94 : vector<8x512xf32>
    %c2 = arith.constant 2 : index
    %c0_72 = arith.constant 0 : index
    %96 = vector.load %arg11[%c2, %c0_72] : memref<3x512xf32, #tpu.memory_space<vmem>>, vector<1x512xf32>
    %c0_73 = arith.constant 0 : index
    %c2_74 = arith.constant 2 : index
    %97 = vector.load %arg16[%c0_73, %c2_74] : memref<8x578xf32, #tpu.memory_space<vmem>>, vector<8x512xf32>
    %98 = vector.broadcast %96 : vector<1x512xf32> to vector<8x512xf32>
    %99 = arith.mulf %97, %98 : vector<8x512xf32>
    %100 = arith.truncf %99 : vector<8x512xf32> to vector<8x512xbf16>
    %c2_75 = arith.constant 2 : index
    %c0_76 = arith.constant 0 : index
    %c0_77 = arith.constant 0 : index
    %101 = vector.load %arg12[%c2_75, %c0_76, %c0_77] : memref<9x8x8xbf16, #tpu.memory_space<vmem>>, vector<1x8x8xbf16>
    %102 = vector.shape_cast %101 : vector<1x8x8xbf16> to vector<8x8xbf16>
    %cst_78 = arith.constant dense<0.000000e+00> : vector<8x512xf32>
    %103 = tpu.matmul %102, %100, %cst_78 {dimension_numbers = #tpu.dot_dimension_numbers<[1], [0], [0], [1], [0, 0, 1, 1], [], []>} : vector<8x8xbf16>, vector<8x512xbf16>, vector<8x512xf32> -> vector<8x512xf32>
    %104 = arith.addf %95, %103 : vector<8x512xf32>
    %c0_79 = arith.constant 0 : index
    %c34 = arith.constant 34 : index
    %105 = vector.load %arg16[%c0_79, %c34] : memref<8x578xf32, #tpu.memory_space<vmem>>, vector<8x512xf32>
    %106 = vector.broadcast %96 : vector<1x512xf32> to vector<8x512xf32>
    %107 = arith.mulf %105, %106 : vector<8x512xf32>
    %108 = arith.truncf %107 : vector<8x512xf32> to vector<8x512xbf16>
    %c5 = arith.constant 5 : index
    %c0_80 = arith.constant 0 : index
    %c0_81 = arith.constant 0 : index
    %109 = vector.load %arg12[%c5, %c0_80, %c0_81] : memref<9x8x8xbf16, #tpu.memory_space<vmem>>, vector<1x8x8xbf16>
    %110 = vector.shape_cast %109 : vector<1x8x8xbf16> to vector<8x8xbf16>
    %cst_82 = arith.constant dense<0.000000e+00> : vector<8x512xf32>
    %111 = tpu.matmul %110, %108, %cst_82 {dimension_numbers = #tpu.dot_dimension_numbers<[1], [0], [0], [1], [0, 0, 1, 1], [], []>} : vector<8x8xbf16>, vector<8x512xbf16>, vector<8x512xf32> -> vector<8x512xf32>
    %112 = arith.addf %104, %111 : vector<8x512xf32>
    %c0_83 = arith.constant 0 : index
    %c66 = arith.constant 66 : index
    %113 = vector.load %arg16[%c0_83, %c66] : memref<8x578xf32, #tpu.memory_space<vmem>>, vector<8x512xf32>
    %114 = vector.broadcast %96 : vector<1x512xf32> to vector<8x512xf32>
    %115 = arith.mulf %113, %114 : vector<8x512xf32>
    %116 = arith.truncf %115 : vector<8x512xf32> to vector<8x512xbf16>
    %c8 = arith.constant 8 : index
    %c0_84 = arith.constant 0 : index
    %c0_85 = arith.constant 0 : index
    %117 = vector.load %arg12[%c8, %c0_84, %c0_85] : memref<9x8x8xbf16, #tpu.memory_space<vmem>>, vector<1x8x8xbf16>
    %118 = vector.shape_cast %117 : vector<1x8x8xbf16> to vector<8x8xbf16>
    %cst_86 = arith.constant dense<0.000000e+00> : vector<8x512xf32>
    %119 = tpu.matmul %118, %116, %cst_86 {dimension_numbers = #tpu.dot_dimension_numbers<[1], [0], [0], [1], [0, 0, 1, 1], [], []>} : vector<8x8xbf16>, vector<8x512xbf16>, vector<8x512xf32> -> vector<8x512xf32>
    %120 = arith.addf %112, %119 : vector<8x512xf32>
    %c0_87 = arith.constant 0 : index
    %c0_88 = arith.constant 0 : index
    %121 = vector.load %arg13[%c0_87, %c0_88] : memref<8x1xf32, #tpu.memory_space<vmem>>, vector<8x1xf32>
    %122 = vector.broadcast %121 : vector<8x1xf32> to vector<8x512xf32>
    %123 = arith.addf %120, %122 : vector<8x512xf32>
    %cst_89 = arith.constant 0.000000e+00 : f32
    %124 = vector.broadcast %cst_89 : f32 to vector<8x512xf32>
    %125 = arith.maximumf %123, %124 : vector<8x512xf32>
    %cst_90 = arith.constant dense<0.000000e+00> : vector<8xf32>
    %126 = vector.multi_reduction <add>, %125, %cst_90 [1] : vector<8x512xf32> to vector<8xf32>
    %127 = vector.shape_cast %126 : vector<8xf32> to vector<8x1xf32>
    %128 = arith.mulf %125, %125 : vector<8x512xf32>
    %cst_91 = arith.constant dense<0.000000e+00> : vector<8xf32>
    %129 = vector.multi_reduction <add>, %128, %cst_91 [1] : vector<8x512xf32> to vector<8xf32>
    %130 = vector.shape_cast %129 : vector<8xf32> to vector<8x1xf32>
    %131 = tpu.concatenate %127, %130 in 1 : vector<8x1xf32>, vector<8x1xf32> -> vector<8x2xf32>
    %c0_92 = arith.constant 0 : index
    %c0_93 = arith.constant 0 : index
    %c0_94 = arith.constant 0 : index
    %c0_95 = arith.constant 0 : index
    %132 = vector.load %arg15[%c0_92, %c0_93, %c0_94, %c0_95] : memref<1x1x8x2xf32, #tpu.memory_space<vmem>>, vector<1x1x8x2xf32>
    %133 = vector.shape_cast %132 : vector<1x1x8x2xf32> to vector<8x2xf32>
    %134 = vector.shape_cast %131 : vector<8x2xf32> to vector<1x1x8x2xf32>
    tpu.vector_store %arg15[%c0_92, %c0_93, %c0_94, %c0_95], %134 {strides = array<i32>} : memref<1x1x8x2xf32, #tpu.memory_space<vmem>>, vector<1x1x8x2xf32>,
    %c0_96 = arith.constant 0 : index
    %c0_97 = arith.constant 0 : index
    %c0_98 = arith.constant 0 : index
    %135 = vector.load %arg14[%c0_96, %c0_97, %c0_98] : memref<1x8x512xf32, #tpu.memory_space<vmem>>, vector<1x8x512xf32>
    %136 = vector.shape_cast %135 : vector<1x8x512xf32> to vector<8x512xf32>
    %137 = vector.shape_cast %125 : vector<8x512xf32> to vector<1x8x512xf32>
    tpu.vector_store %arg14[%c0_96, %c0_97, %c0_98], %137 {strides = array<i32>} : memref<1x8x512xf32, #tpu.memory_space<vmem>>, vector<1x8x512xf32>,
    return
  }
  func.func @transform_0(%arg0: i32, %arg1: i32) -> (i32, i32, i32) {
    %c0_i32 = arith.constant 0 : i32
    %c0_i32_0 = arith.constant 0 : i32
    return %arg0, %c0_i32, %arg1 : i32, i32, i32
  }
  func.func @transform_1(%arg0: i32, %arg1: i32) -> (i32, i32, i32) {
    %c1_i32 = arith.constant 1 : i32
    %0 = arith.muli %arg1, %c1_i32 : i32
    %c1_i32_0 = arith.constant 1 : i32
    %1 = arith.subi %0, %c1_i32_0 : i32
    %c0_i32 = arith.constant 0 : i32
    %2 = arith.maxsi %1, %c0_i32 : i32
    %c0_i32_1 = arith.constant 0 : i32
    %c0_i32_2 = arith.constant 0 : i32
    return %arg0, %c0_i32_1, %2 : i32, i32, i32
  }
  func.func @transform_2(%arg0: i32, %arg1: i32) -> (i32, i32, i32) {
    %c1_i32 = arith.constant 1 : i32
    %0 = arith.addi %arg1, %c1_i32 : i32
    %c1_i32_0 = arith.constant 1 : i32
    %1 = arith.muli %0, %c1_i32_0 : i32
    %c1_i32_1 = arith.constant 1 : i32
    %2 = arith.minsi %1, %c1_i32_1 : i32
    %c0_i32 = arith.constant 0 : i32
    %c0_i32_2 = arith.constant 0 : i32
    return %arg0, %c0_i32, %2 : i32, i32, i32
  }
  func.func @transform_3(%arg0: i32, %arg1: i32) -> (i32, i32, i32) {
    %c0_i32 = arith.constant 0 : i32
    %c0_i32_0 = arith.constant 0 : i32
    return %arg0, %c0_i32, %arg1 : i32, i32, i32
  }
  func.func @transform_4(%arg0: i32, %arg1: i32) -> (i32, i32, i32) {
    %c2_i32 = arith.constant 2 : i32
    %0 = arith.muli %arg1, %c2_i32 : i32
    %c1_i32 = arith.constant 1 : i32
    %1 = arith.subi %0, %c1_i32 : i32
    %c0_i32 = arith.constant 0 : i32
    %2 = arith.maxsi %1, %c0_i32 : i32
    %c0_i32_0 = arith.constant 0 : i32
    %c0_i32_1 = arith.constant 0 : i32
    return %arg0, %c0_i32_0, %2 : i32, i32, i32
  }
  func.func @transform_5(%arg0: i32, %arg1: i32) -> (i32, i32, i32) {
    %c1_i32 = arith.constant 1 : i32
    %0 = arith.addi %arg1, %c1_i32 : i32
    %c2_i32 = arith.constant 2 : i32
    %1 = arith.muli %0, %c2_i32 : i32
    %c3_i32 = arith.constant 3 : i32
    %2 = arith.minsi %1, %c3_i32 : i32
    %c0_i32 = arith.constant 0 : i32
    %c0_i32_0 = arith.constant 0 : i32
    return %arg0, %c0_i32, %2 : i32, i32, i32
  }
  func.func @transform_6(%arg0: i32, %arg1: i32) -> (i32, i32) {
    %c0_i32 = arith.constant 0 : i32
    %c0_i32_0 = arith.constant 0 : i32
    %c0_i32_1 = arith.constant 0 : i32
    return %c0_i32, %c0_i32_0 : i32, i32
  }
  func.func @transform_7(%arg0: i32, %arg1: i32) -> (i32, i32) {
    %c0_i32 = arith.constant 0 : i32
    %c0_i32_0 = arith.constant 0 : i32
    %c0_i32_1 = arith.constant 0 : i32
    return %c0_i32, %c0_i32_0 : i32, i32
  }
  func.func @transform_8(%arg0: i32, %arg1: i32) -> (i32, i32) {
    %c0_i32 = arith.constant 0 : i32
    %c0_i32_0 = arith.constant 0 : i32
    %c0_i32_1 = arith.constant 0 : i32
    return %c0_i32, %c0_i32_0 : i32, i32
  }
  func.func @transform_9(%arg0: i32, %arg1: i32) -> (i32, i32) {
    %c0_i32 = arith.constant 0 : i32
    %c0_i32_0 = arith.constant 0 : i32
    %c0_i32_1 = arith.constant 0 : i32
    return %c0_i32, %c0_i32_0 : i32, i32
  }
  func.func @transform_10(%arg0: i32, %arg1: i32) -> (i32, i32, i32) {
    %c0_i32 = arith.constant 0 : i32
    %c0_i32_0 = arith.constant 0 : i32
    %c0_i32_1 = arith.constant 0 : i32
    %c0_i32_2 = arith.constant 0 : i32
    return %c0_i32, %c0_i32_0, %c0_i32_1 : i32, i32, i32
  }
  func.func @transform_11(%arg0: i32, %arg1: i32) -> (i32, i32) {
    %c0_i32 = arith.constant 0 : i32
    %c0_i32_0 = arith.constant 0 : i32
    %c0_i32_1 = arith.constant 0 : i32
    return %c0_i32, %c0_i32_0 : i32, i32
  }
  func.func @transform_12(%arg0: i32, %arg1: i32) -> (i32, i32, i32) {
    %c0_i32 = arith.constant 0 : i32
    %c0_i32_0 = arith.constant 0 : i32
    return %arg0, %c0_i32, %arg1 : i32, i32, i32
  }
  func.func @transform_13(%arg0: i32, %arg1: i32) -> (i32, i32, i32, i32) {
    %c0_i32 = arith.constant 0 : i32
    %c0_i32_0 = arith.constant 0 : i32
    %c0_i32_1 = arith.constant 0 : i32
    return %arg0, %arg1, %c0_i32, %c0_i32_0 : i32, i32, i32, i32
  }
}

module attributes {stable_mosaic.version = 11 : i64} {
  func.func @bn_affine_kernel(%arg0: i32, %arg1: i32, %arg2: memref<1x8x1024xf32, #tpu.memory_space<vmem>>, %arg3: memref<1x8x1xf32, #tpu.memory_space<vmem>>, %arg4: memref<1x8x1xf32, #tpu.memory_space<vmem>>, %arg5: memref<1x8x1024xf32, #tpu.memory_space<vmem>>) attributes {dimension_semantics = [#tpu.dimension_semantics<parallel>, #tpu.dimension_semantics<parallel>], iteration_bounds = array<i64: 2, 1>, scalar_prefetch = 0 : i64, scratch_operands = 0 : i64, tpu.core_type = #tpu.core_type<tc>, window_params = [{transform_indices = @transform_0, window_bounds = array<i64: 1, 8, 1024>}, {pipeline_mode = #tpu.pipeline_mode<synchronous>, transform_indices = @transform_1, window_bounds = array<i64: 1, 8, 1>}, {pipeline_mode = #tpu.pipeline_mode<synchronous>, transform_indices = @transform_2, window_bounds = array<i64: 1, 8, 1>}, {transform_indices = @transform_3, window_bounds = array<i64: 1, 8, 1024>}]} {
    %c0 = arith.constant 0 : index
    %c0_0 = arith.constant 0 : index
    %c0_1 = arith.constant 0 : index
    %0 = vector.load %arg2[%c0, %c0_0, %c0_1] : memref<1x8x1024xf32, #tpu.memory_space<vmem>>, vector<1x8x1024xf32>
    %c0_2 = arith.constant 0 : index
    %c0_3 = arith.constant 0 : index
    %c0_4 = arith.constant 0 : index
    %1 = vector.load %arg3[%c0_2, %c0_3, %c0_4] : memref<1x8x1xf32, #tpu.memory_space<vmem>>, vector<1x8x1xf32>
    %2 = vector.broadcast %1 : vector<1x8x1xf32> to vector<1x8x1024xf32>
    %3 = arith.mulf %0, %2 : vector<1x8x1024xf32>
    %c0_5 = arith.constant 0 : index
    %c0_6 = arith.constant 0 : index
    %c0_7 = arith.constant 0 : index
    %4 = vector.load %arg4[%c0_5, %c0_6, %c0_7] : memref<1x8x1xf32, #tpu.memory_space<vmem>>, vector<1x8x1xf32>
    %5 = vector.broadcast %4 : vector<1x8x1xf32> to vector<1x8x1024xf32>
    %6 = arith.addf %3, %5 : vector<1x8x1024xf32>
    %c0_8 = arith.constant 0 : index
    %c0_9 = arith.constant 0 : index
    %c0_10 = arith.constant 0 : index
    %7 = vector.load %arg5[%c0_8, %c0_9, %c0_10] : memref<1x8x1024xf32, #tpu.memory_space<vmem>>, vector<1x8x1024xf32>
    tpu.vector_store %arg5[%c0_8, %c0_9, %c0_10], %6 {strides = array<i32>} : memref<1x8x1024xf32, #tpu.memory_space<vmem>>, vector<1x8x1024xf32>,
    return
  }
  func.func @transform_0(%arg0: i32, %arg1: i32) -> (i32, i32, i32) {
    %c0_i32 = arith.constant 0 : i32
    %c0_i32_0 = arith.constant 0 : i32
    return %arg0, %c0_i32, %arg1 : i32, i32, i32
  }
  func.func @transform_1(%arg0: i32, %arg1: i32) -> (i32, i32, i32) {
    %c0_i32 = arith.constant 0 : i32
    %c0_i32_0 = arith.constant 0 : i32
    %c0_i32_1 = arith.constant 0 : i32
    %c0_i32_2 = arith.constant 0 : i32
    return %c0_i32, %c0_i32_0, %c0_i32_1 : i32, i32, i32
  }
  func.func @transform_2(%arg0: i32, %arg1: i32) -> (i32, i32, i32) {
    %c0_i32 = arith.constant 0 : i32
    %c0_i32_0 = arith.constant 0 : i32
    %c0_i32_1 = arith.constant 0 : i32
    %c0_i32_2 = arith.constant 0 : i32
    return %c0_i32, %c0_i32_0, %c0_i32_1 : i32, i32, i32
  }
  func.func @transform_3(%arg0: i32, %arg1: i32) -> (i32, i32, i32) {
    %c0_i32 = arith.constant 0 : i32
    %c0_i32_0 = arith.constant 0 : i32
    return %arg0, %c0_i32, %arg1 : i32, i32, i32
  }
}

</mosaic_0001>

<llo_original>
// kernel: tile.26
$region0: #{tile.26}
  #allocation0 [shape = 's32[1]{0}', space=sflag, size = 0x4, scoped, tag = 'scoped memory for tile.26']
  %s0 = inlined_call_operand.vmem [shape: f32[32], index: 0, kind: input, shape index: {}]
  %s1 = inlined_call_operand.vmem [shape: f32[16,32], index: 1, kind: output, shape index: {}]
  // Predicated region
  $region2: #{tile.26} parent=0 // pred_check
    _
  $region3: #{tile.26} parent=0 // pred_check_branch
    %3 = sbr.rel (0) target = $region5
  $region4: #{tile.26} parent=0 // pred_region
    _
  $region5: #{tile.26} parent=0 // pred_fallthru
    _
  %v4 = vld [vmem:[%s0] ss:$0 sm:$0xff]
  %5 = vst [vmem:[%s1] sm:$0xff] %v4
  %s6 = scalar_lea.vmem %s1, 8
  %7 = vst [vmem:[%s6] sm:$0xff] %v4

// kernel: tile.29
$region0: #{tile.29}
  %s0 = inlined_call_operand.vmem [shape: f32[16,32], index: 0, kind: input, shape index: {}]
  %s1 = inlined_call_operand.vmem [shape: f32[1,512], index: 1, kind: output, shape index: {}]
  $region1: #{tile.29} parent=0
    #allocation0 [shape = 'u8[16384]{0}', space=vmem, size = 0x4000, scoped, tag = 'scoped mem for output reshape']
    %v2 = vld [vmem:[%s0] ss:$4 sm:$0xf]
    %vm3 = vcmask 261120
    %4 = vst.msk [vmem:[#allocation0] ss:$8 sm:$0xf] %vm3, %v2
    %s5 = scalar_lea.vmem %s0, 3
    %v6 = vld [vmem:[%s5] ss:$4 sm:$0xf]
    %7 = vrot.lane.b32.xlu0 %v6, 96
    %v8 = vpop.permute.xlu0 %7
    %vm9 = vcmask 1048320
    %10 = vst.msk [vmem:[#allocation0] ss:$8 sm:$0xf] %vm9, %v8
    %s11 = scalar_lea.vmem %s0, 2
    %v12 = vld [vmem:[%s11] ss:$4 sm:$0xf]
    %13 = vrot.lane.b32.xlu0 %v12, 64
    %v14 = vpop.permute.xlu0 %13
    %vm15 = vcmask 785920
    %16 = vst.msk [vmem:[#allocation0] ss:$8 sm:$0xf] %vm15, %v14
    %s17 = scalar_lea.vmem %s0, 1
    %v18 = vld [vmem:[%s17] ss:$4 sm:$0xf]
    %19 = vrot.lane.b32.xlu0 %v18, 32
    %v20 = vpop.permute.xlu0 %19
    %vm21 = vcmask 523520
    %22 = vst.msk [vmem:[#allocation0] ss:$8 sm:$0xf] %vm21, %v20
    %s24 = sshll.u32 1, 1
    %s25 = ssub.s32 %s24, 1
    %v27 = vld [vmem:[#allocation0] sm:%s25]
    %s28 = sshll.u32 1, 1
    %s29 = ssub.s32 %s28, 1
    %30 = vst [vmem:[%s1] sm:%s29] %v27
    %s31 = scalar_lea.vmem [#allocation0], 8
    %v32 = vld [vmem:[%s31] sm:%s25]
    %s33 = sshll.u32 1, 1
    %s34 = ssub.s32 %s33, 1
    %s35 = scalar_lea.vmem %s1, 1
    %36 = vst [vmem:[%s35] sm:%s34] %v32
    %s37 = scalar_lea.vmem [#allocation0], 16
    %v38 = vld [vmem:[%s37] sm:%s25]
    %s39 = sshll.u32 1, 1
    %s40 = ssub.s32 %s39, 1
    %s41 = smul.addr 1, 2
    %s42 = scalar_lea.vmem %s1, %s41
    %43 = vst [vmem:[%s42] sm:%s40] %v38
    %s44 = scalar_lea.vmem [#allocation0], 24
    %v45 = vld [vmem:[%s44] sm:%s25]
    %s46 = sshll.u32 1, 1
    %s47 = ssub.s32 %s46, 1
    %s48 = smul.addr 1, 3
    %s49 = scalar_lea.vmem %s1, %s48
    %50 = vst [vmem:[%s49] sm:%s47] %v45

// kernel: unet_up_forward.3
$region0: #{unet_up_forward.3}
  #allocation0 [shape = 'u32[]', space=smem, size = 0x4, offset = 0x4, fixed_abs, tag = 'smem constant byte address 0x4 - core index']
  #allocation1 [shape = 'u32[144,128]{1,0:T(1,128)}', space=vmem, size = 0x12000, scoped, tag = 'internal scratch']
  %s0 = inlined_call_operand.vmem [shape: f32[2,8,1024], index: 0, kind: input, shape index: {}, may-alias: {0,3}]
  %s1 = inlined_call_operand.vmem [shape: f32[1,8,1], index: 1, kind: input, shape index: {}]
  %s2 = inlined_call_operand.vmem [shape: f32[1,8,1], index: 2, kind: input, shape index: {}]
  %s3 = inlined_call_operand.vmem [shape: f32[2,8,1024], index: 3, kind: output, shape index: {}, may-alias: {0,3}]
  %s4 = sld [smem:[#allocation0]]
  $region45: #{unet_up_forward.3} parent=0
    _
  %s6 = ssub.s32 1, %s4
  %s7 = scalar_select 0, %s6, %s4
  loop: start=0, step=1, limit=4
  $region2: #{unet_up_forward.3} parent=0 // loop_pre_header
    _
  $region3: #{unet_up_forward.3} parent=0 // loop_header
    %s9 = sphi 0, %s13
    %p10 = scmp.ge.s32.totalorder %s9, 4
    %s16 = sphi 0, %s28
    %s17 = sphi 0, %s24
    %s18 = sphi 0, %s16
    %s19 = sphi 0, %s17
    %s20 = sphi 0, %s18
    %s21 = sphi 0, %s19
    %s33 = sphi 0, %s35
    %s36 = sphi 0, %s33
    %s37 = sphi 0, %s36
    %s53 = sphi 0, %s37
    %s57 = sphi 0, %s57
    %s59 = sphi 0, %s57
    %s60 = sphi 0, %s59
    %s74 = sphi 0, %s60
    %s78 = sphi 0, %s78
    %s80 = sphi 0, %s78
    %s81 = sphi 0, %s80
    %s95 = sphi 0, %s81
    %s103 = sphi 0, %s105
    %s106 = sphi 0, %s103
    %s107 = sphi 0, %s106
    %s123 = sphi 0, %s107
  $region4: #{unet_up_forward.3} parent=0 // loop_header_branch
    %12 = sbr.rel (%p10) target = $region8
  $region5: #{unet_up_forward.3} parent=0 // loop_body
    %s14 = ssub.s32 %s9, 1
    %s15 = ssub.s32 %s9, 2
    %s22 = sadd.s32 1, %s17
    %p23 = scmp.ge.s32.totalorder %s22, 1
    %s24 = scalar_select %p23, 0, %s22
    %s25 = sadd.s32 1, %s16
    %s26 = scalar_select %p23, %s25, %s16
    %p27 = scmp.ge.s32.totalorder %s26, 2
    %s28 = scalar_select %p27, 0, %s26
    %s29 = ssub.s32 %s16, %s28
    %s30 = ssub.s32 %s17, %s24
    %s31 = sor.u32 %s29, %s30
    %p32 = scmp.eq.s32.totalorder %s31, 0
    %s34 = sadd.s32 %s33, 1
    %s35 = scalar_select %p32, %s33, %s34
    %p38 = pneg %p32
    %p39 = scmp.eq.s32.totalorder %s9, 1
    %p40 = por %p38, %p39
    %p41 = scmp.ne.s32.totalorder %s33, %s36
    %p42 = scmp.eq.s32.totalorder %s9, 0
    %p43 = por %p41, %p42
    %p44 = scmp.ne.s32.totalorder %s33, %s36
    %p45 = scmp.eq.s32.totalorder %s14, 1
    %p46 = por %p44, %p45
    %p47 = scmp.ne.s32.totalorder %s36, %s37
    %p48 = scmp.eq.s32.totalorder %s14, 0
    %p49 = por %p47, %p48
    %p50 = scmp.ne.s32.totalorder %s36, %s37
    %p51 = scmp.eq.s32.totalorder %s15, 1
    %p52 = por %p50, %p51
    %p54 = scmp.ne.s32.totalorder %s37, %s53
    %p55 = scmp.eq.s32.totalorder %s15, 0
    %p56 = por %p54, %p55
    %s58 = sadd.s32 %s57, 1
    %p61 = scmp.eq.s32.totalorder %s9, 1
    %p62 = scmp.ne.s32.totalorder %s57, %s59
    %p63 = scmp.eq.s32.totalorder %s9, 0
    %p64 = por %p62, %p63
    %p65 = scmp.ne.s32.totalorder %s57, %s59
    %p66 = scmp.eq.s32.totalorder %s14, 1
    %p67 = por %p65, %p66
    %p68 = scmp.ne.s32.totalorder %s59, %s60
    %p69 = scmp.eq.s32.totalorder %s14, 0
    %p70 = por %p68, %p69
    %p71 = scmp.ne.s32.totalorder %s59, %s60
    %p72 = scmp.eq.s32.totalorder %s15, 1
    %p73 = por %p71, %p72
    %p75 = scmp.ne.s32.totalorder %s60, %s74
    %p76 = scmp.eq.s32.totalorder %s15, 0
    %p77 = por %p75, %p76
    %s79 = sadd.s32 %s78, 1
    %p82 = scmp.eq.s32.totalorder %s9, 1
    %p83 = scmp.ne.s32.totalorder %s78, %s80
    %p84 = scmp.eq.s32.totalorder %s9, 0
    %p85 = por %p83, %p84
    %p86 = scmp.ne.s32.totalorder %s78, %s80
    %p87 = scmp.eq.s32.totalorder %s14, 1
    %p88 = por %p86, %p87
    %p89 = scmp.ne.s32.totalorder %s80, %s81
    %p90 = scmp.eq.s32.totalorder %s14, 0
    %p91 = por %p89, %p90
    %p92 = scmp.ne.s32.totalorder %s80, %s81
    %p93 = scmp.eq.s32.totalorder %s15, 1
    %p94 = por %p92, %p93
    %p96 = scmp.ne.s32.totalorder %s81, %s95
    %p97 = scmp.eq.s32.totalorder %s15, 0
    %p98 = por %p96, %p97
    %s99 = ssub.s32 %s16, %s28
    %s100 = ssub.s32 %s17, %s24
    %s101 = sor.u32 %s99, %s100
    %p102 = scmp.eq.s32.totalorder %s101, 0
    %s104 = sadd.s32 %s103, 1
    %s105 = scalar_select %p102, %s103, %s104
    %p108 = pneg %p102
    %p109 = scmp.eq.s32.totalorder %s9, 1
    %p110 = por %p108, %p109
    %p111 = scmp.ne.s32.totalorder %s103, %s106
    %p112 = scmp.eq.s32.totalorder %s9, 0
    %p113 = por %p111, %p112
    %p114 = scmp.ne.s32.totalorder %s103, %s106
    %p115 = scmp.eq.s32.totalorder %s14, 1
    %p116 = por %p114, %p115
    %p117 = scmp.ne.s32.totalorder %s106, %s107
    %p118 = scmp.eq.s32.totalorder %s14, 0
    %p119 = por %p117, %p118
    %p120 = scmp.ne.s32.totalorder %s106, %s107
    %p121 = scmp.eq.s32.totalorder %s15, 1
    %p122 = por %p120, %p121
    %p124 = scmp.ne.s32.totalorder %s107, %s123
    %p125 = scmp.eq.s32.totalorder %s15, 0
    %p126 = por %p124, %p125
    %p127 = scmp.le.s32.totalorder 1, %s9
    %p128 = scmp.lt.s32.totalorder %s9, 3
    %p129 = pnand %p127, %p128
    %p130 = pneg %p129
    // Predicated region
    $region9: #{unet_up_forward.3} parent=5 // pred_check
      _
    $region10: #{unet_up_forward.3} parent=5 // pred_check_branch
      %132 = sbr.rel (%p129) target = $region12
    $region11: #{unet_up_forward.3} parent=5 // pred_region
      %s133 = ssub.s32 %s9, 1
      // Predicated region
      $region13: #{unet_up_forward.3} parent=11 // pred_check
        %p134 = pneg %p70
      $region14: #{unet_up_forward.3} parent=11 // pred_check_branch
        %136 = sbr.rel (%p134) target = $region16
      $region15: #{unet_up_forward.3} parent=11 // pred_region
        _
      $region16: #{unet_up_forward.3} parent=11 // pred_fallthru
        _
      // Predicated region
      $region17: #{unet_up_forward.3} parent=11 // pred_check
        %p137 = pneg %p91
      $region18: #{unet_up_forward.3} parent=11 // pred_check_branch
        %139 = sbr.rel (%p137) target = $region20
      $region19: #{unet_up_forward.3} parent=11 // pred_region
        _
      $region20: #{unet_up_forward.3} parent=11 // pred_fallthru
        _
    $region12: #{unet_up_forward.3} parent=5 // pred_fallthru
      _
    %p140 = scmp.lt.s32.totalorder %s9, 2
    // Predicated region
    $region21: #{unet_up_forward.3} parent=5 // pred_check
      %p141 = pneg %p140
    $region22: #{unet_up_forward.3} parent=5 // pred_check_branch
      %143 = sbr.rel (%p141) target = $region24
    $region23: #{unet_up_forward.3} parent=5 // pred_region
      // Predicated region
      $region25: #{unet_up_forward.3} parent=23 // pred_check
        %p144 = pneg %p43
      $region26: #{unet_up_forward.3} parent=23 // pred_check_branch
        %146 = sbr.rel (%p144) target = $region28
      $region27: #{unet_up_forward.3} parent=23 // pred_region
        %s147 = smul.u32 8, %s17
        %p148 = scmp.lt.s32.totalorder %s16, 1
        %s149 = scalar_select %p148, %s16, 1
        %p150 = scmp.lt.s32.totalorder %s147, 7
        %s151 = scalar_select %p150, %s147, 7
        %s152 = smul.addr %s149, 8
        %s153 = sadd.s32 %s151, %s152
        %s154 = smul.addr %s153, 8
        %s155 = scalar_lea.vmem %s0, %s154
        %s156 = smul.u32 8, %s17
      $region28: #{unet_up_forward.3} parent=23 // pred_fallthru
        _
    $region24: #{unet_up_forward.3} parent=5 // pred_fallthru
      _
    %p157 = scmp.le.s32.totalorder 1, %s9
    %p158 = scmp.lt.s32.totalorder %s9, 3
    %p159 = pnand %p157, %p158
    %p160 = pneg %p159
    // Predicated region
    $region29: #{unet_up_forward.3} parent=5 // pred_check
      _
    $region30: #{unet_up_forward.3} parent=5 // pred_check_branch
      %162 = sbr.rel (%p159) target = $region32
    $region31: #{unet_up_forward.3} parent=5 // pred_region
      %s163 = ssub.s32 %s9, 1
      %s164 = smul.u32 8, %s19
      %p165 = scmp.lt.s32.totalorder %s18, 1
      %s166 = scalar_select %p165, %s18, 1
      %p167 = scmp.lt.s32.totalorder %s164, 7
      %s168 = scalar_select %p167, %s164, 7
      %s169 = smul.addr %s166, 8
      %s170 = sadd.s32 %s168, %s169
      %s171 = smul.addr %s170, 8
      %s172 = scalar_lea.vmem %s0, %s171
      %p173 = pneg %p49
      %p174 = pneg %p46
      %p175 = pneg %p70
      %p176 = pneg %p67
      %p177 = pneg %p91
      %p178 = pneg %p88
      %p179 = pneg %p119
      %p180 = pneg %p116
      %s181 = smul.u32 8, %s19
      %p182 = scmp.lt.s32.totalorder %s18, 1
      %s183 = scalar_select %p182, %s18, 1
      %p184 = scmp.lt.s32.totalorder %s181, 7
      %s185 = scalar_select %p184, %s181, 7
      %s186 = smul.addr %s183, 8
      %s187 = sadd.s32 %s185, %s186
      %s188 = smul.addr %s187, 8
      %s189 = scalar_lea.vmem %s3, %s188
      %s190 = smul.u32 8, %s19
      %p191 = scmp.lt.s32.totalorder %s18, 1
      %s192 = scalar_select %p191, %s18, 1
      %p193 = scmp.lt.s32.totalorder %s190, 7
      %s194 = scalar_select %p193, %s190, 7
      %s195 = smul.addr %s192, 8
      %s196 = sadd.s32 %s194, %s195
      %s197 = smul.addr %s196, 8
      %s198 = scalar_lea.vmem %s0, %s197
      %s199 = smul.u32 8, %s19
      %s200 = smul.u32 8, %s19
      %p201 = scmp.lt.s32.totalorder %s18, 1
      %s202 = scalar_select %p201, %s18, 1
      %p203 = scmp.lt.s32.totalorder %s200, 7
      %s204 = scalar_select %p203, %s200, 7
      %s205 = smul.addr %s202, 8
      %s206 = sadd.s32 %s204, %s205
      %s207 = smul.addr %s206, 8
      %s208 = scalar_lea.vmem %s3, %s207
      %s209 = smul.u32 8, %s19
      %v210 = vld [vmem:[%s198] sm:$0xff]
      %v211 = vld [vmem:[%s198 + $0x8] sm:$0xff]
      %v212 = vld [vmem:[%s198 + $0x10] sm:$0xff]
      %v213 = vld [vmem:[%s198 + $0x18] sm:$0xff]
      %v214 = vld [vmem:[%s198 + $0x20] sm:$0xff]
      %v215 = vld [vmem:[%s198 + $0x28] sm:$0xff]
      %v216 = vld [vmem:[%s198 + $0x30] sm:$0xff]
      %v217 = vld [vmem:[%s198 + $0x38] sm:$0xff]
      %v218 = vld [vmem:[%s1] sm:$0xff]
      %220 = vset.pattern.permute.xlu0 0
      %221 = vperm.xlu0 %220, %v218
      %v222 = vpop.permute.xlu0 %221
      %v224 = vmul.f32 %v210, %v222
      %v225 = vmul.f32 %v211, %v222
      %v226 = vmul.f32 %v212, %v222
      %v227 = vmul.f32 %v213, %v222
      %v228 = vmul.f32 %v214, %v222
      %v229 = vmul.f32 %v215, %v222
      %v230 = vmul.f32 %v216, %v222
      %v231 = vmul.f32 %v217, %v222
      %v232 = vld [vmem:[%s2] sm:$0xff]
      %234 = vset.pattern.permute.xlu0 0
      %235 = vperm.xlu0 %234, %v232
      %v236 = vpop.permute.xlu0 %235
      %v238 = vadd.f32 %v224, %v236
      %v239 = vadd.f32 %v225, %v236
      %v240 = vadd.f32 %v226, %v236
      %v241 = vadd.f32 %v227, %v236
      %v242 = vadd.f32 %v228, %v236
      %v243 = vadd.f32 %v229, %v236
      %v244 = vadd.f32 %v230, %v236
      %v245 = vadd.f32 %v231, %v236
      %246 = vst [vmem:[%s208] sm:$0xff] %v238
      %247 = vst [vmem:[%s208 + $0x8] sm:$0xff] %v239
      %248 = vst [vmem:[%s208 + $0x10] sm:$0xff] %v240
      %249 = vst [vmem:[%s208 + $0x18] sm:$0xff] %v241
      %250 = vst [vmem:[%s208 + $0x20] sm:$0xff] %v242
      %251 = vst [vmem:[%s208 + $0x28] sm:$0xff] %v243
      %252 = vst [vmem:[%s208 + $0x30] sm:$0xff] %v244
      %253 = vst [vmem:[%s208 + $0x38] sm:$0xff] %v245
      %s254 = smul.u32 8, %s19
      %p255 = scmp.lt.s32.totalorder %s18, 1
      %s256 = scalar_select %p255, %s18, 1
      %p257 = scmp.lt.s32.totalorder %s254, 7
      %s258 = scalar_select %p257, %s254, 7
      %s259 = smul.addr %s256, 8
      %s260 = sadd.s32 %s258, %s259
      %s261 = smul.addr %s260, 8
      %s262 = scalar_lea.vmem %s3, %s261
      // Predicated region
      $region33: #{unet_up_forward.3} parent=31 // pred_check
        %p263 = pneg %p116
      $region34: #{unet_up_forward.3} parent=31 // pred_check_branch
        %265 = sbr.rel (%p263) target = $region36
      $region35: #{unet_up_forward.3} parent=31 // pred_region
        %s266 = smul.u32 8, %s19
      $region36: #{unet_up_forward.3} parent=31 // pred_fallthru
        _
    $region32: #{unet_up_forward.3} parent=5 // pred_fallthru
      _
    %p267 = scmp.le.s32.totalorder 2, %s9
    // Predicated region
    $region37: #{unet_up_forward.3} parent=5 // pred_check
      %p268 = pneg %p267
    $region38: #{unet_up_forward.3} parent=5 // pred_check_branch
      %270 = sbr.rel (%p268) target = $region40
    $region39: #{unet_up_forward.3} parent=5 // pred_region
      %s271 = ssub.s32 %s9, 2
      // Predicated region
      $region41: #{unet_up_forward.3} parent=39 // pred_check
        %p272 = pneg %p122
      $region42: #{unet_up_forward.3} parent=39 // pred_check_branch
        %274 = sbr.rel (%p272) target = $region44
      $region43: #{unet_up_forward.3} parent=39 // pred_region
        %s275 = smul.u32 8, %s21
        %p276 = scmp.lt.s32.totalorder %s20, 1
        %s277 = scalar_select %p276, %s20, 1
        %p278 = scmp.lt.s32.totalorder %s275, 7
        %s279 = scalar_select %p278, %s275, 7
        %s280 = smul.addr %s277, 8
        %s281 = sadd.s32 %s279, %s280
        %s282 = smul.addr %s281, 8
        %s283 = scalar_lea.vmem %s3, %s282
      $region44: #{unet_up_forward.3} parent=39 // pred_fallthru
        _
    $region40: #{unet_up_forward.3} parent=5 // pred_fallthru
      _
  $region6: #{unet_up_forward.3} parent=0 // loop_footer
    %s13 = sadd.s32 1, %s9
  $region7: #{unet_up_forward.3} parent=0 // loop_footer_branch
    %8 = sbr.rel target = $region3
  $region8: #{unet_up_forward.3} parent=0 // loop_exit
    _

// kernel: unet_up_forward.2
$region0: #{unet_up_forward.2}
  #allocation0 [shape = 'u32[]', space=smem, size = 0x4, offset = 0x4, fixed_abs, tag = 'smem constant byte address 0x4 - core index']
  #allocation1 [shape = 'u32[144,128]{1,0:T(1,128)}', space=vmem, size = 0x12000, scoped, tag = 'internal scratch']
  #allocation2 [shape = 'f32[8,578]{1,0:T(8,128)}', space=vmem, size = 0x5000, scoped, tag = 'scratch operand']
  %s0 = inlined_call_operand.vmem [shape: bf16[2,4,256], index: 0, kind: input, shape index: {}, may-alias: {0,1,2}]
  %s1 = inlined_call_operand.vmem [shape: bf16[2,4,256], index: 1, kind: input, shape index: {}, may-alias: {0,1,2}]
  %s2 = inlined_call_operand.vmem [shape: bf16[2,4,256], index: 2, kind: input, shape index: {}, may-alias: {0,1,2}]
  %s3 = inlined_call_operand.vmem [shape: bf16[2,4,1024], index: 3, kind: input, shape index: {}, may-alias: {3,4,5}]
  %s4 = inlined_call_operand.vmem [shape: bf16[2,4,1024], index: 4, kind: input, shape index: {}, may-alias: {3,4,5}]
  %s5 = inlined_call_operand.vmem [shape: bf16[2,4,1024], index: 5, kind: input, shape index: {}, may-alias: {3,4,5}]
  %s6 = inlined_call_operand.vmem [shape: bf16[128,512], index: 6, kind: input, shape index: {}]
  %s7 = inlined_call_operand.vmem [shape: bf16[128,32], index: 7, kind: input, shape index: {}]
  %s8 = inlined_call_operand.vmem [shape: bf16[128,32], index: 8, kind: input, shape index: {}]
  %s9 = inlined_call_operand.vmem [shape: f32[3,512], index: 9, kind: input, shape index: {}]
  %s10 = inlined_call_operand.vmem [shape: bf16[9,8,8], index: 10, kind: input, shape index: {}]
  %s11 = inlined_call_operand.vmem [shape: f32[8,1], index: 11, kind: input, shape index: {}]
  %s12 = inlined_call_operand.vmem [shape: f32[2,8,1024], index: 12, kind: output, shape index: {0}]
  %s13 = inlined_call_operand.vmem [shape: f32[2,2,8,2], index: 13, kind: output, shape index: {1}]
  %14 = xla_tuple %s12, %s13
  %s15 = sld [smem:[#allocation0]]
  $region89: #{unet_up_forward.2} parent=0
    _
  %s17 = ssub.s32 1, %s15
  %s18 = scalar_select 0, %s17, %s15
  loop: start=0, step=1, limit=6
  $region2: #{unet_up_forward.2} parent=0 // loop_pre_header
    _
  $region3: #{unet_up_forward.2} parent=0 // loop_header
    %s20 = sphi 0, %s24
    %p21 = scmp.ge.s32.totalorder %s20, 6
    %s27 = sphi 0, %s39
    %s28 = sphi 0, %s35
    %s29 = sphi 0, %s27
    %s30 = sphi 0, %s28
    %s31 = sphi 0, %s29
    %s32 = sphi 0, %s30
    %s44 = sphi 0, %s46
    %s47 = sphi 0, %s44
    %s48 = sphi 0, %s47
    %s64 = sphi 0, %s48
    %s78 = sphi 0, %s80
    %s81 = sphi 0, %s78
    %s82 = sphi 0, %s81
    %s98 = sphi 0, %s82
    %s112 = sphi 0, %s114
    %s115 = sphi 0, %s112
    %s116 = sphi 0, %s115
    %s132 = sphi 0, %s116
    %s140 = sphi 0, %s142
    %s143 = sphi 0, %s140
    %s144 = sphi 0, %s143
    %s160 = sphi 0, %s144
    %s176 = sphi 0, %s178
    %s179 = sphi 0, %s176
    %s180 = sphi 0, %s179
    %s196 = sphi 0, %s180
    %s212 = sphi 0, %s214
    %s215 = sphi 0, %s212
    %s216 = sphi 0, %s215
    %s232 = sphi 0, %s216
    %s236 = sphi 0, %s236
    %s238 = sphi 0, %s236
    %s239 = sphi 0, %s238
    %s253 = sphi 0, %s239
    %s257 = sphi 0, %s257
    %s259 = sphi 0, %s257
    %s260 = sphi 0, %s259
    %s274 = sphi 0, %s260
    %s278 = sphi 0, %s278
    %s280 = sphi 0, %s278
    %s281 = sphi 0, %s280
    %s295 = sphi 0, %s281
    %s299 = sphi 0, %s299
    %s301 = sphi 0, %s299
    %s302 = sphi 0, %s301
    %s316 = sphi 0, %s302
    %s320 = sphi 0, %s320
    %s322 = sphi 0, %s320
    %s323 = sphi 0, %s322
    %s337 = sphi 0, %s323
    %s341 = sphi 0, %s341
    %s343 = sphi 0, %s341
    %s344 = sphi 0, %s343
    %s358 = sphi 0, %s344
    %s366 = sphi 0, %s368
    %s369 = sphi 0, %s366
    %s370 = sphi 0, %s369
    %s386 = sphi 0, %s370
    %s394 = sphi 0, %s396
    %s397 = sphi 0, %s394
    %s398 = sphi 0, %s397
    %s414 = sphi 0, %s398
  $region4: #{unet_up_forward.2} parent=0 // loop_header_branch
    %23 = sbr.rel (%p21) target = $region8
  $region5: #{unet_up_forward.2} parent=0 // loop_body
    %s25 = ssub.s32 %s20, 1
    %s26 = ssub.s32 %s20, 2
    %s33 = sadd.s32 1, %s28
    %p34 = scmp.ge.s32.totalorder %s33, 2
    %s35 = scalar_select %p34, 0, %s33
    %s36 = sadd.s32 1, %s27
    %s37 = scalar_select %p34, %s36, %s27
    %p38 = scmp.ge.s32.totalorder %s37, 2
    %s39 = scalar_select %p38, 0, %s37
    %s40 = ssub.s32 %s27, %s39
    %s41 = ssub.s32 %s28, %s35
    %s42 = sor.u32 %s40, %s41
    %p43 = scmp.eq.s32.totalorder %s42, 0
    %s45 = sadd.s32 %s44, 1
    %s46 = scalar_select %p43, %s44, %s45
    %p49 = pneg %p43
    %p50 = scmp.eq.s32.totalorder %s20, 3
    %p51 = por %p49, %p50
    %p52 = scmp.ne.s32.totalorder %s44, %s47
    %p53 = scmp.eq.s32.totalorder %s20, 0
    %p54 = por %p52, %p53
    %p55 = scmp.ne.s32.totalorder %s44, %s47
    %p56 = scmp.eq.s32.totalorder %s25, 3
    %p57 = por %p55, %p56
    %p58 = scmp.ne.s32.totalorder %s47, %s48
    %p59 = scmp.eq.s32.totalorder %s25, 0
    %p60 = por %p58, %p59
    %p61 = scmp.ne.s32.totalorder %s47, %s48
    %p62 = scmp.eq.s32.totalorder %s26, 3
    %p63 = por %p61, %p62
    %p65 = scmp.ne.s32.totalorder %s48, %s64
    %p66 = scmp.eq.s32.totalorder %s26, 0
    %p67 = por %p65, %p66
    %s68 = ssub.s32 %s28, 1
    %p69 = scmp.gt.s32.totalorder %s68, 0
    %s70 = scalar_select %p69, %s68, 0
    %s71 = ssub.s32 %s35, 1
    %p72 = scmp.gt.s32.totalorder %s71, 0
    %s73 = scalar_select %p72, %s71, 0
    %s74 = ssub.s32 %s27, %s39
    %s75 = ssub.s32 %s70, %s73
    %s76 = sor.u32 %s74, %s75
    %p77 = scmp.eq.s32.totalorder %s76, 0
    %s79 = sadd.s32 %s78, 1
    %s80 = scalar_select %p77, %s78, %s79
    %p83 = pneg %p77
    %p84 = scmp.eq.s32.totalorder %s20, 3
    %p85 = por %p83, %p84
    %p86 = scmp.ne.s32.totalorder %s78, %s81
    %p87 = scmp.eq.s32.totalorder %s20, 0
    %p88 = por %p86, %p87
    %p89 = scmp.ne.s32.totalorder %s78, %s81
    %p90 = scmp.eq.s32.totalorder %s25, 3
    %p91 = por %p89, %p90
    %p92 = scmp.ne.s32.totalorder %s81, %s82
    %p93 = scmp.eq.s32.totalorder %s25, 0
    %p94 = por %p92, %p93
    %p95 = scmp.ne.s32.totalorder %s81, %s82
    %p96 = scmp.eq.s32.totalorder %s26, 3
    %p97 = por %p95, %p96
    %p99 = scmp.ne.s32.totalorder %s82, %s98
    %p100 = scmp.eq.s32.totalorder %s26, 0
    %p101 = por %p99, %p100
    %s102 = sadd.s32 %s28, 1
    %p103 = scmp.lt.s32.totalorder %s102, 1
    %s104 = scalar_select %p103, %s102, 1
    %s105 = sadd.s32 %s35, 1
    %p106 = scmp.lt.s32.totalorder %s105, 1
    %s107 = scalar_select %p106, %s105, 1
    %s108 = ssub.s32 %s27, %s39
    %s109 = ssub.s32 %s104, %s107
    %s110 = sor.u32 %s108, %s109
    %p111 = scmp.eq.s32.totalorder %s110, 0
    %s113 = sadd.s32 %s112, 1
    %s114 = scalar_select %p111, %s112, %s113
    %p117 = pneg %p111
    %p118 = scmp.eq.s32.totalorder %s20, 3
    %p119 = por %p117, %p118
    %p120 = scmp.ne.s32.totalorder %s112, %s115
    %p121 = scmp.eq.s32.totalorder %s20, 0
    %p122 = por %p120, %p121
    %p123 = scmp.ne.s32.totalorder %s112, %s115
    %p124 = scmp.eq.s32.totalorder %s25, 3
    %p125 = por %p123, %p124
    %p126 = scmp.ne.s32.totalorder %s115, %s116
    %p127 = scmp.eq.s32.totalorder %s25, 0
    %p128 = por %p126, %p127
    %p129 = scmp.ne.s32.totalorder %s115, %s116
    %p130 = scmp.eq.s32.totalorder %s26, 3
    %p131 = por %p129, %p130
    %p133 = scmp.ne.s32.totalorder %s116, %s132
    %p134 = scmp.eq.s32.totalorder %s26, 0
    %p135 = por %p133, %p134
    %s136 = ssub.s32 %s27, %s39
    %s137 = ssub.s32 %s28, %s35
    %s138 = sor.u32 %s136, %s137
    %p139 = scmp.eq.s32.totalorder %s138, 0
    %s141 = sadd.s32 %s140, 1
    %s142 = scalar_select %p139, %s140, %s141
    %p145 = pneg %p139
    %p146 = scmp.eq.s32.totalorder %s20, 3
    %p147 = por %p145, %p146
    %p148 = scmp.ne.s32.totalorder %s140, %s143
    %p149 = scmp.eq.s32.totalorder %s20, 0
    %p150 = por %p148, %p149
    %p151 = scmp.ne.s32.totalorder %s140, %s143
    %p152 = scmp.eq.s32.totalorder %s25, 3
    %p153 = por %p151, %p152
    %p154 = scmp.ne.s32.totalorder %s143, %s144
    %p155 = scmp.eq.s32.totalorder %s25, 0
    %p156 = por %p154, %p155
    %p157 = scmp.ne.s32.totalorder %s143, %s144
    %p158 = scmp.eq.s32.totalorder %s26, 3
    %p159 = por %p157, %p158
    %p161 = scmp.ne.s32.totalorder %s144, %s160
    %p162 = scmp.eq.s32.totalorder %s26, 0
    %p163 = por %p161, %p162
    %s164 = smul.u32 %s28, 2
    %s165 = ssub.s32 %s164, 1
    %p166 = scmp.gt.s32.totalorder %s165, 0
    %s167 = scalar_select %p166, %s165, 0
    %s168 = smul.u32 %s35, 2
    %s169 = ssub.s32 %s168, 1
    %p170 = scmp.gt.s32.totalorder %s169, 0
    %s171 = scalar_select %p170, %s169, 0
    %s172 = ssub.s32 %s27, %s39
    %s173 = ssub.s32 %s167, %s171
    %s174 = sor.u32 %s172, %s173
    %p175 = scmp.eq.s32.totalorder %s174, 0
    %s177 = sadd.s32 %s176, 1
    %s178 = scalar_select %p175, %s176, %s177
    %p181 = pneg %p175
    %p182 = scmp.eq.s32.totalorder %s20, 3
    %p183 = por %p181, %p182
    %p184 = scmp.ne.s32.totalorder %s176, %s179
    %p185 = scmp.eq.s32.totalorder %s20, 0
    %p186 = por %p184, %p185
    %p187 = scmp.ne.s32.totalorder %s176, %s179
    %p188 = scmp.eq.s32.totalorder %s25, 3
    %p189 = por %p187, %p188
    %p190 = scmp.ne.s32.totalorder %s179, %s180
    %p191 = scmp.eq.s32.totalorder %s25, 0
    %p192 = por %p190, %p191
    %p193 = scmp.ne.s32.totalorder %s179, %s180
    %p194 = scmp.eq.s32.totalorder %s26, 3
    %p195 = por %p193, %p194
    %p197 = scmp.ne.s32.totalorder %s180, %s196
    %p198 = scmp.eq.s32.totalorder %s26, 0
    %p199 = por %p197, %p198
    %s200 = sadd.s32 %s28, 1
    %s201 = smul.u32 %s200, 2
    %p202 = scmp.lt.s32.totalorder %s201, 3
    %s203 = scalar_select %p202, %s201, 3
    %s204 = sadd.s32 %s35, 1
    %s205 = smul.u32 %s204, 2
    %p206 = scmp.lt.s32.totalorder %s205, 3
    %s207 = scalar_select %p206, %s205, 3
    %s208 = ssub.s32 %s27, %s39
    %s209 = ssub.s32 %s203, %s207
    %s210 = sor.u32 %s208, %s209
    %p211 = scmp.eq.s32.totalorder %s210, 0
    %s213 = sadd.s32 %s212, 1
    %s214 = scalar_select %p211, %s212, %s213
    %p217 = pneg %p211
    %p218 = scmp.eq.s32.totalorder %s20, 3
    %p219 = por %p217, %p218
    %p220 = scmp.ne.s32.totalorder %s212, %s215
    %p221 = scmp.eq.s32.totalorder %s20, 0
    %p222 = por %p220, %p221
    %p223 = scmp.ne.s32.totalorder %s212, %s215
    %p224 = scmp.eq.s32.totalorder %s25, 3
    %p225 = por %p223, %p224
    %p226 = scmp.ne.s32.totalorder %s215, %s216
    %p227 = scmp.eq.s32.totalorder %s25, 0
    %p228 = por %p226, %p227
    %p229 = scmp.ne.s32.totalorder %s215, %s216
    %p230 = scmp.eq.s32.totalorder %s26, 3
    %p231 = por %p229, %p230
    %p233 = scmp.ne.s32.totalorder %s216, %s232
    %p234 = scmp.eq.s32.totalorder %s26, 0
    %p235 = por %p233, %p234
    %s237 = sadd.s32 %s236, 1
    %p240 = scmp.eq.s32.totalorder %s20, 3
    %p241 = scmp.ne.s32.totalorder %s236, %s238
    %p242 = scmp.eq.s32.totalorder %s20, 0
    %p243 = por %p241, %p242
    %p244 = scmp.ne.s32.totalorder %s236, %s238
    %p245 = scmp.eq.s32.totalorder %s25, 3
    %p246 = por %p244, %p245
    %p247 = scmp.ne.s32.totalorder %s238, %s239
    %p248 = scmp.eq.s32.totalorder %s25, 0
    %p249 = por %p247, %p248
    %p250 = scmp.ne.s32.totalorder %s238, %s239
    %p251 = scmp.eq.s32.totalorder %s26, 3
    %p252 = por %p250, %p251
    %p254 = scmp.ne.s32.totalorder %s239, %s253
    %p255 = scmp.eq.s32.totalorder %s26, 0
    %p256 = por %p254, %p255
    %s258 = sadd.s32 %s257, 1
    %p261 = scmp.eq.s32.totalorder %s20, 3
    %p262 = scmp.ne.s32.totalorder %s257, %s259
    %p263 = scmp.eq.s32.totalorder %s20, 0
    %p264 = por %p262, %p263
    %p265 = scmp.ne.s32.totalorder %s257, %s259
    %p266 = scmp.eq.s32.totalorder %s25, 3
    %p267 = por %p265, %p266
    %p268 = scmp.ne.s32.totalorder %s259, %s260
    %p269 = scmp.eq.s32.totalorder %s25, 0
    %p270 = por %p268, %p269
    %p271 = scmp.ne.s32.totalorder %s259, %s260
    %p272 = scmp.eq.s32.totalorder %s26, 3
    %p273 = por %p271, %p272
    %p275 = scmp.ne.s32.totalorder %s260, %s274
    %p276 = scmp.eq.s32.totalorder %s26, 0
    %p277 = por %p275, %p276
    %s279 = sadd.s32 %s278, 1
    %p282 = scmp.eq.s32.totalorder %s20, 3
    %p283 = scmp.ne.s32.totalorder %s278, %s280
    %p284 = scmp.eq.s32.totalorder %s20, 0
    %p285 = por %p283, %p284
    %p286 = scmp.ne.s32.totalorder %s278, %s280
    %p287 = scmp.eq.s32.totalorder %s25, 3
    %p288 = por %p286, %p287
    %p289 = scmp.ne.s32.totalorder %s280, %s281
    %p290 = scmp.eq.s32.totalorder %s25, 0
    %p291 = por %p289, %p290
    %p292 = scmp.ne.s32.totalorder %s280, %s281
    %p293 = scmp.eq.s32.totalorder %s26, 3
    %p294 = por %p292, %p293
    %p296 = scmp.ne.s32.totalorder %s281, %s295
    %p297 = scmp.eq.s32.totalorder %s26, 0
    %p298 = por %p296, %p297
    %s300 = sadd.s32 %s299, 1
    %p303 = scmp.eq.s32.totalorder %s20, 3
    %p304 = scmp.ne.s32.totalorder %s299, %s301
    %p305 = scmp.eq.s32.totalorder %s20, 0
    %p306 = por %p304, %p305
    %p307 = scmp.ne.s32.totalorder %s299, %s301
    %p308 = scmp.eq.s32.totalorder %s25, 3
    %p309 = por %p307, %p308
    %p310 = scmp.ne.s32.totalorder %s301, %s302
    %p311 = scmp.eq.s32.totalorder %s25, 0
    %p312 = por %p310, %p311
    %p313 = scmp.ne.s32.totalorder %s301, %s302
    %p314 = scmp.eq.s32.totalorder %s26, 3
    %p315 = por %p313, %p314
    %p317 = scmp.ne.s32.totalorder %s302, %s316
    %p318 = scmp.eq.s32.totalorder %s26, 0
    %p319 = por %p317, %p318
    %s321 = sadd.s32 %s320, 1
    %p324 = scmp.eq.s32.totalorder %s20, 3
    %p325 = scmp.ne.s32.totalorder %s320, %s322
    %p326 = scmp.eq.s32.totalorder %s20, 0
    %p327 = por %p325, %p326
    %p328 = scmp.ne.s32.totalorder %s320, %s322
    %p329 = scmp.eq.s32.totalorder %s25, 3
    %p330 = por %p328, %p329
    %p331 = scmp.ne.s32.totalorder %s322, %s323
    %p332 = scmp.eq.s32.totalorder %s25, 0
    %p333 = por %p331, %p332
    %p334 = scmp.ne.s32.totalorder %s322, %s323
    %p335 = scmp.eq.s32.totalorder %s26, 3
    %p336 = por %p334, %p335
    %p338 = scmp.ne.s32.totalorder %s323, %s337
    %p339 = scmp.eq.s32.totalorder %s26, 0
    %p340 = por %p338, %p339
    %s342 = sadd.s32 %s341, 1
    %p345 = scmp.eq.s32.totalorder %s20, 3
    %p346 = scmp.ne.s32.totalorder %s341, %s343
    %p347 = scmp.eq.s32.totalorder %s20, 0
    %p348 = por %p346, %p347
    %p349 = scmp.ne.s32.totalorder %s341, %s343
    %p350 = scmp.eq.s32.totalorder %s25, 3
    %p351 = por %p349, %p350
    %p352 = scmp.ne.s32.totalorder %s343, %s344
    %p353 = scmp.eq.s32.totalorder %s25, 0
    %p354 = por %p352, %p353
    %p355 = scmp.ne.s32.totalorder %s343, %s344
    %p356 = scmp.eq.s32.totalorder %s26, 3
    %p357 = por %p355, %p356
    %p359 = scmp.ne.s32.totalorder %s344, %s358
    %p360 = scmp.eq.s32.totalorder %s26, 0
    %p361 = por %p359, %p360
    %s362 = ssub.s32 %s27, %s39
    %s363 = ssub.s32 %s28, %s35
    %s364 = sor.u32 %s362, %s363
    %p365 = scmp.eq.s32.totalorder %s364, 0
    %s367 = sadd.s32 %s366, 1
    %s368 = scalar_select %p365, %s366, %s367
    %p371 = pneg %p365
    %p372 = scmp.eq.s32.totalorder %s20, 3
    %p373 = por %p371, %p372
    %p374 = scmp.ne.s32.totalorder %s366, %s369
    %p375 = scmp.eq.s32.totalorder %s20, 0
    %p376 = por %p374, %p375
    %p377 = scmp.ne.s32.totalorder %s366, %s369
    %p378 = scmp.eq.s32.totalorder %s25, 3
    %p379 = por %p377, %p378
    %p380 = scmp.ne.s32.totalorder %s369, %s370
    %p381 = scmp.eq.s32.totalorder %s25, 0
    %p382 = por %p380, %p381
    %p383 = scmp.ne.s32.totalorder %s369, %s370
    %p384 = scmp.eq.s32.totalorder %s26, 3
    %p385 = por %p383, %p384
    %p387 = scmp.ne.s32.totalorder %s370, %s386
    %p388 = scmp.eq.s32.totalorder %s26, 0
    %p389 = por %p387, %p388
    %s390 = ssub.s32 %s27, %s39
    %s391 = ssub.s32 %s28, %s35
    %s392 = sor.u32 %s390, %s391
    %p393 = scmp.eq.s32.totalorder %s392, 0
    %s395 = sadd.s32 %s394, 1
    %s396 = scalar_select %p393, %s394, %s395
    %p399 = pneg %p393
    %p400 = scmp.eq.s32.totalorder %s20, 3
    %p401 = por %p399, %p400
    %p402 = scmp.ne.s32.totalorder %s394, %s397
    %p403 = scmp.eq.s32.totalorder %s20, 0
    %p404 = por %p402, %p403
    %p405 = scmp.ne.s32.totalorder %s394, %s397
    %p406 = scmp.eq.s32.totalorder %s25, 3
    %p407 = por %p405, %p406
    %p408 = scmp.ne.s32.totalorder %s397, %s398
    %p409 = scmp.eq.s32.totalorder %s25, 0
    %p410 = por %p408, %p409
    %p411 = scmp.ne.s32.totalorder %s397, %s398
    %p412 = scmp.eq.s32.totalorder %s26, 3
    %p413 = por %p411, %p412
    %p415 = scmp.ne.s32.totalorder %s398, %s414
    %p416 = scmp.eq.s32.totalorder %s26, 0
    %p417 = por %p415, %p416
    %p418 = scmp.le.s32.totalorder 1, %s20
    %p419 = scmp.lt.s32.totalorder %s20, 5
    %p420 = pnand %p418, %p419
    %p421 = pneg %p420
    // Predicated region
    $region9: #{unet_up_forward.2} parent=5 // pred_check
      _
    $region10: #{unet_up_forward.2} parent=5 // pred_check_branch
      %423 = sbr.rel (%p420) target = $region12
    $region11: #{unet_up_forward.2} parent=5 // pred_region
      %s424 = ssub.s32 %s20, 1
      // Predicated region
      $region13: #{unet_up_forward.2} parent=11 // pred_check
        %p425 = pneg %p249
      $region14: #{unet_up_forward.2} parent=11 // pred_check_branch
        %427 = sbr.rel (%p425) target = $region16
      $region15: #{unet_up_forward.2} parent=11 // pred_region
        _
      $region16: #{unet_up_forward.2} parent=11 // pred_fallthru
        _
      // Predicated region
      $region17: #{unet_up_forward.2} parent=11 // pred_check
        %p428 = pneg %p270
      $region18: #{unet_up_forward.2} parent=11 // pred_check_branch
        %430 = sbr.rel (%p428) target = $region20
      $region19: #{unet_up_forward.2} parent=11 // pred_region
        _
      $region20: #{unet_up_forward.2} parent=11 // pred_fallthru
        _
      // Predicated region
      $region21: #{unet_up_forward.2} parent=11 // pred_check
        %p431 = pneg %p291
      $region22: #{unet_up_forward.2} parent=11 // pred_check_branch
        %433 = sbr.rel (%p431) target = $region24
      $region23: #{unet_up_forward.2} parent=11 // pred_region
        _
      $region24: #{unet_up_forward.2} parent=11 // pred_fallthru
        _
      // Predicated region
      $region25: #{unet_up_forward.2} parent=11 // pred_check
        %p434 = pneg %p312
      $region26: #{unet_up_forward.2} parent=11 // pred_check_branch
        %436 = sbr.rel (%p434) target = $region28
      $region27: #{unet_up_forward.2} parent=11 // pred_region
        _
      $region28: #{unet_up_forward.2} parent=11 // pred_fallthru
        _
      // Predicated region
      $region29: #{unet_up_forward.2} parent=11 // pred_check
        %p437 = pneg %p333
      $region30: #{unet_up_forward.2} parent=11 // pred_check_branch
        %439 = sbr.rel (%p437) target = $region32
      $region31: #{unet_up_forward.2} parent=11 // pred_region
        _
      $region32: #{unet_up_forward.2} parent=11 // pred_fallthru
        _
      // Predicated region
      $region33: #{unet_up_forward.2} parent=11 // pred_check
        %p440 = pneg %p354
      $region34: #{unet_up_forward.2} parent=11 // pred_check_branch
        %442 = sbr.rel (%p440) target = $region36
      $region35: #{unet_up_forward.2} parent=11 // pred_region
        _
      $region36: #{unet_up_forward.2} parent=11 // pred_fallthru
        _
    $region12: #{unet_up_forward.2} parent=5 // pred_fallthru
      _
    %p443 = scmp.lt.s32.totalorder %s20, 4
    // Predicated region
    $region37: #{unet_up_forward.2} parent=5 // pred_check
      %p444 = pneg %p443
    $region38: #{unet_up_forward.2} parent=5 // pred_check_branch
      %446 = sbr.rel (%p444) target = $region40
    $region39: #{unet_up_forward.2} parent=5 // pred_region
      // Predicated region
      $region41: #{unet_up_forward.2} parent=39 // pred_check
        %p447 = pneg %p54
      $region42: #{unet_up_forward.2} parent=39 // pred_check_branch
        %449 = sbr.rel (%p447) target = $region44
      $region43: #{unet_up_forward.2} parent=39 // pred_region
        %p450 = scmp.lt.s32.totalorder %s27, 1
        %s451 = scalar_select %p450, %s27, 1
        %p452 = scmp.lt.s32.totalorder %s28, 1
        %s453 = scalar_select %p452, %s28, 1
        %s454 = smul.addr %s451, 2
        %s455 = sadd.s32 %s453, %s454
        %s456 = smul.addr %s455, 2
        %s457 = scalar_lea.vmem %s0, %s456
      $region44: #{unet_up_forward.2} parent=39 // pred_fallthru
        _
      // Predicated region
      $region45: #{unet_up_forward.2} parent=39 // pred_check
        %p458 = pneg %p88
      $region46: #{unet_up_forward.2} parent=39 // pred_check_branch
        %460 = sbr.rel (%p458) target = $region48
      $region47: #{unet_up_forward.2} parent=39 // pred_region
        %s461 = ssub.s32 %s28, 1
        %p462 = scmp.gt.s32.totalorder %s461, 0
        %s463 = scalar_select %p462, %s461, 0
        %p464 = scmp.lt.s32.totalorder %s27, 1
        %s465 = scalar_select %p464, %s27, 1
        %p466 = scmp.lt.s32.totalorder %s463, 1
        %s467 = scalar_select %p466, %s463, 1
        %s468 = smul.addr %s465, 2
        %s469 = sadd.s32 %s467, %s468
        %s470 = smul.addr %s469, 2
        %s471 = scalar_lea.vmem %s1, %s470
        %s472 = ssub.s32 %s28, 1
        %p473 = scmp.gt.s32.totalorder %s472, 0
        %s474 = scalar_select %p473, %s472, 0
      $region48: #{unet_up_forward.2} parent=39 // pred_fallthru
        _
      // Predicated region
      $region49: #{unet_up_forward.2} parent=39 // pred_check
        %p475 = pneg %p122
      $region50: #{unet_up_forward.2} parent=39 // pred_check_branch
        %477 = sbr.rel (%p475) target = $region52
      $region51: #{unet_up_forward.2} parent=39 // pred_region
        %s478 = sadd.s32 %s28, 1
        %p479 = scmp.lt.s32.totalorder %s478, 1
        %s480 = scalar_select %p479, %s478, 1
        %p481 = scmp.lt.s32.totalorder %s27, 1
        %s482 = scalar_select %p481, %s27, 1
        %p483 = scmp.lt.s32.totalorder %s480, 1
        %s484 = scalar_select %p483, %s480, 1
        %s485 = smul.addr %s482, 2
        %s486 = sadd.s32 %s484, %s485
        %s487 = smul.addr %s486, 2
        %s488 = scalar_lea.vmem %s2, %s487
        %s489 = sadd.s32 %s28, 1
        %p490 = scmp.lt.s32.totalorder %s489, 1
        %s491 = scalar_select %p490, %s489, 1
      $region52: #{unet_up_forward.2} parent=39 // pred_fallthru
        _
      // Predicated region
      $region53: #{unet_up_forward.2} parent=39 // pred_check
        %p492 = pneg %p150
      $region54: #{unet_up_forward.2} parent=39 // pred_check_branch
        %494 = sbr.rel (%p492) target = $region56
      $region55: #{unet_up_forward.2} parent=39 // pred_region
        %s495 = smul.u32 4, %s28
        %p496 = scmp.lt.s32.totalorder %s27, 1
        %s497 = scalar_select %p496, %s27, 1
        %p498 = scmp.lt.s32.totalorder %s495, 7
        %s499 = scalar_select %p498, %s495, 7
        %s500 = smul.addr %s497, 8
        %s501 = sadd.s32 %s499, %s500
        %s502 = smul.addr %s501, 2
        %s503 = scalar_lea.vmem %s3, %s502
        %s504 = smul.u32 4, %s28
      $region56: #{unet_up_forward.2} parent=39 // pred_fallthru
        _
      // Predicated region
      $region57: #{unet_up_forward.2} parent=39 // pred_check
        %p505 = pneg %p186
      $region58: #{unet_up_forward.2} parent=39 // pred_check_branch
        %507 = sbr.rel (%p505) target = $region60
      $region59: #{unet_up_forward.2} parent=39 // pred_region
        %s508 = smul.u32 %s28, 2
        %s509 = ssub.s32 %s508, 1
        %p510 = scmp.gt.s32.totalorder %s509, 0
        %s511 = scalar_select %p510, %s509, 0
        %s512 = smul.u32 2, %s511
        %p513 = scmp.lt.s32.totalorder %s27, 1
        %s514 = scalar_select %p513, %s27, 1
        %p515 = scmp.lt.s32.totalorder %s512, 7
        %s516 = scalar_select %p515, %s512, 7
        %s517 = smul.addr %s514, 8
        %s518 = sadd.s32 %s516, %s517
        %s519 = smul.addr %s518, 2
        %s520 = scalar_lea.vmem %s4, %s519
        %s521 = smul.u32 %s28, 2
        %s522 = ssub.s32 %s521, 1
        %p523 = scmp.gt.s32.totalorder %s522, 0
        %s524 = scalar_select %p523, %s522, 0
        %s525 = smul.u32 2, %s524
      $region60: #{unet_up_forward.2} parent=39 // pred_fallthru
        _
      // Predicated region
      $region61: #{unet_up_forward.2} parent=39 // pred_check
        %p526 = pneg %p222
      $region62: #{unet_up_forward.2} parent=39 // pred_check_branch
        %528 = sbr.rel (%p526) target = $region64
      $region63: #{unet_up_forward.2} parent=39 // pred_region
        %s529 = sadd.s32 %s28, 1
        %s530 = smul.u32 %s529, 2
        %p531 = scmp.lt.s32.totalorder %s530, 3
        %s532 = scalar_select %p531, %s530, 3
        %s533 = smul.u32 2, %s532
        %p534 = scmp.lt.s32.totalorder %s27, 1
        %s535 = scalar_select %p534, %s27, 1
        %p536 = scmp.lt.s32.totalorder %s533, 7
        %s537 = scalar_select %p536, %s533, 7
        %s538 = smul.addr %s535, 8
        %s539 = sadd.s32 %s537, %s538
        %s540 = smul.addr %s539, 2
        %s541 = scalar_lea.vmem %s5, %s540
        %s542 = sadd.s32 %s28, 1
        %s543 = smul.u32 %s542, 2
        %p544 = scmp.lt.s32.totalorder %s543, 3
        %s545 = scalar_select %p544, %s543, 3
        %s546 = smul.u32 2, %s545
      $region64: #{unet_up_forward.2} parent=39 // pred_fallthru
        _
    $region40: #{unet_up_forward.2} parent=5 // pred_fallthru
      _
    %p547 = scmp.le.s32.totalorder 1, %s20
    %p548 = scmp.lt.s32.totalorder %s20, 5
    %p549 = pnand %p547, %p548
    %p550 = pneg %p549
    // Predicated region
    $region65: #{unet_up_forward.2} parent=5 // pred_check
      _
    $region66: #{unet_up_forward.2} parent=5 // pred_check_branch
      %552 = sbr.rel (%p549) target = $region68
    $region67: #{unet_up_forward.2} parent=5 // pred_region
      %s553 = ssub.s32 %s20, 1
      %p554 = scmp.lt.s32.totalorder %s29, 1
      %s555 = scalar_select %p554, %s29, 1
      %p556 = scmp.lt.s32.totalorder %s30, 1
      %s557 = scalar_select %p556, %s30, 1
      %s558 = smul.addr %s555, 2
      %s559 = sadd.s32 %s557, %s558
      %s560 = smul.addr %s559, 2
      %s561 = scalar_lea.vmem %s0, %s560
      %p562 = pneg %p60
      %p563 = pneg %p57
      %s564 = ssub.s32 %s30, 1
      %p565 = scmp.gt.s32.totalorder %s564, 0
      %s566 = scalar_select %p565, %s564, 0
      %p567 = scmp.lt.s32.totalorder %s29, 1
      %s568 = scalar_select %p567, %s29, 1
      %p569 = scmp.lt.s32.totalorder %s566, 1
      %s570 = scalar_select %p569, %s566, 1
      %s571 = smul.addr %s568, 2
      %s572 = sadd.s32 %s570, %s571
      %s573 = smul.addr %s572, 2
      %s574 = scalar_lea.vmem %s1, %s573
      %p575 = pneg %p94
      %p576 = pneg %p91
      %s577 = sadd.s32 %s30, 1
      %p578 = scmp.lt.s32.totalorder %s577, 1
      %s579 = scalar_select %p578, %s577, 1
      %p580 = scmp.lt.s32.totalorder %s29, 1
      %s581 = scalar_select %p580, %s29, 1
      %p582 = scmp.lt.s32.totalorder %s579, 1
      %s583 = scalar_select %p582, %s579, 1
      %s584 = smul.addr %s581, 2
      %s585 = sadd.s32 %s583, %s584
      %s586 = smul.addr %s585, 2
      %s587 = scalar_lea.vmem %s2, %s586
      %p588 = pneg %p128
      %p589 = pneg %p125
      %s590 = smul.u32 4, %s30
      %p591 = scmp.lt.s32.totalorder %s29, 1
      %s592 = scalar_select %p591, %s29, 1
      %p593 = scmp.lt.s32.totalorder %s590, 7
      %s594 = scalar_select %p593, %s590, 7
      %s595 = smul.addr %s592, 8
      %s596 = sadd.s32 %s594, %s595
      %s597 = smul.addr %s596, 2
      %s598 = scalar_lea.vmem %s3, %s597
      %p599 = pneg %p156
      %p600 = pneg %p153
      %s601 = smul.u32 %s30, 2
      %s602 = ssub.s32 %s601, 1
      %p603 = scmp.gt.s32.totalorder %s602, 0
      %s604 = scalar_select %p603, %s602, 0
      %s605 = smul.u32 2, %s604
      %p606 = scmp.lt.s32.totalorder %s29, 1
      %s607 = scalar_select %p606, %s29, 1
      %p608 = scmp.lt.s32.totalorder %s605, 7
      %s609 = scalar_select %p608, %s605, 7
      %s610 = smul.addr %s607, 8
      %s611 = sadd.s32 %s609, %s610
      %s612 = smul.addr %s611, 2
      %s613 = scalar_lea.vmem %s4, %s612
      %p614 = pneg %p192
      %p615 = pneg %p189
      %s616 = sadd.s32 %s30, 1
      %s617 = smul.u32 %s616, 2
      %p618 = scmp.lt.s32.totalorder %s617, 3
      %s619 = scalar_select %p618, %s617, 3
      %s620 = smul.u32 2, %s619
      %p621 = scmp.lt.s32.totalorder %s29, 1
      %s622 = scalar_select %p621, %s29, 1
      %p623 = scmp.lt.s32.totalorder %s620, 7
      %s624 = scalar_select %p623, %s620, 7
      %s625 = smul.addr %s622, 8
      %s626 = sadd.s32 %s624, %s625
      %s627 = smul.addr %s626, 2
      %s628 = scalar_lea.vmem %s5, %s627
      %p629 = pneg %p228
      %p630 = pneg %p225
      %p631 = pneg %p249
      %p632 = pneg %p246
      %p633 = pneg %p270
      %p634 = pneg %p267
      %p635 = pneg %p291
      %p636 = pneg %p288
      %p637 = pneg %p312
      %p638 = pneg %p309
      %p639 = pneg %p333
      %p640 = pneg %p330
      %p641 = pneg %p354
      %p642 = pneg %p351
      %p643 = pneg %p382
      %p644 = pneg %p379
      %s645 = smul.u32 4, %s30
      %p646 = scmp.lt.s32.totalorder %s29, 1
      %s647 = scalar_select %p646, %s29, 1
      %p648 = scmp.lt.s32.totalorder %s645, 7
      %s649 = scalar_select %p648, %s645, 7
      %s650 = smul.addr %s647, 8
      %s651 = sadd.s32 %s649, %s650
      %s652 = smul.addr %s651, 8
      %s653 = scalar_lea.vmem %s12, %s652
      %p654 = pneg %p410
      %p655 = pneg %p407
      %p656 = scmp.lt.s32.totalorder %s29, 1
      %s657 = scalar_select %p656, %s29, 1
      %p658 = scmp.lt.s32.totalorder %s30, 1
      %s659 = scalar_select %p658, %s30, 1
      %s660 = smul.addr %s657, 2
      %s661 = sadd.s32 %s659, %s660
      %s662 = smul.addr %s661, 8
      %s663 = scalar_lea.vmem %s13, %s662
      %p664 = scmp.lt.s32.totalorder %s29, 1
      %s665 = scalar_select %p664, %s29, 1
      %p666 = scmp.lt.s32.totalorder %s30, 1
      %s667 = scalar_select %p666, %s30, 1
      %s668 = smul.addr %s665, 2
      %s669 = sadd.s32 %s667, %s668
      %s670 = smul.addr %s669, 2
      %s671 = scalar_lea.vmem %s0, %s670
      %s672 = ssub.s32 %s30, 1
      %p673 = scmp.gt.s32.totalorder %s672, 0
      %s674 = scalar_select %p673, %s672, 0
      %p675 = scmp.lt.s32.totalorder %s29, 1
      %s676 = scalar_select %p675, %s29, 1
      %p677 = scmp.lt.s32.totalorder %s674, 1
      %s678 = scalar_select %p677, %s674, 1
      %s679 = smul.addr %s676, 2
      %s680 = sadd.s32 %s678, %s679
      %s681 = smul.addr %s680, 2
      %s682 = scalar_lea.vmem %s1, %s681
      %s683 = ssub.s32 %s30, 1
      %p684 = scmp.gt.s32.totalorder %s683, 0
      %s685 = scalar_select %p684, %s683, 0
      %s686 = sadd.s32 %s30, 1
      %p687 = scmp.lt.s32.totalorder %s686, 1
      %s688 = scalar_select %p687, %s686, 1
      %p689 = scmp.lt.s32.totalorder %s29, 1
      %s690 = scalar_select %p689, %s29, 1
      %p691 = scmp.lt.s32.totalorder %s688, 1
      %s692 = scalar_select %p691, %s688, 1
      %s693 = smul.addr %s690, 2
      %s694 = sadd.s32 %s692, %s693
      %s695 = smul.addr %s694, 2
      %s696 = scalar_lea.vmem %s2, %s695
      %s697 = sadd.s32 %s30, 1
      %p698 = scmp.lt.s32.totalorder %s697, 1
      %s699 = scalar_select %p698, %s697, 1
      %s700 = smul.u32 4, %s30
      %p701 = scmp.lt.s32.totalorder %s29, 1
      %s702 = scalar_select %p701, %s29, 1
      %p703 = scmp.lt.s32.totalorder %s700, 7
      %s704 = scalar_select %p703, %s700, 7
      %s705 = smul.addr %s702, 8
      %s706 = sadd.s32 %s704, %s705
      %s707 = smul.addr %s706, 2
      %s708 = scalar_lea.vmem %s3, %s707
      %s709 = smul.u32 4, %s30
      %s710 = smul.u32 %s30, 2
      %s711 = ssub.s32 %s710, 1
      %p712 = scmp.gt.s32.totalorder %s711, 0
      %s713 = scalar_select %p712, %s711, 0
      %s714 = smul.u32 2, %s713
      %p715 = scmp.lt.s32.totalorder %s29, 1
      %s716 = scalar_select %p715, %s29, 1
      %p717 = scmp.lt.s32.totalorder %s714, 7
      %s718 = scalar_select %p717, %s714, 7
      %s719 = smul.addr %s716, 8
      %s720 = sadd.s32 %s718, %s719
      %s721 = smul.addr %s720, 2
      %s722 = scalar_lea.vmem %s4, %s721
      %s723 = smul.u32 %s30, 2
      %s724 = ssub.s32 %s723, 1
      %p725 = scmp.gt.s32.totalorder %s724, 0
      %s726 = scalar_select %p725, %s724, 0
      %s727 = smul.u32 2, %s726
      %s728 = sadd.s32 %s30, 1
      %s729 = smul.u32 %s728, 2
      %p730 = scmp.lt.s32.totalorder %s729, 3
      %s731 = scalar_select %p730, %s729, 3
      %s732 = smul.u32 2, %s731
      %p733 = scmp.lt.s32.totalorder %s29, 1
      %s734 = scalar_select %p733, %s29, 1
      %p735 = scmp.lt.s32.totalorder %s732, 7
      %s736 = scalar_select %p735, %s732, 7
      %s737 = smul.addr %s734, 8
      %s738 = sadd.s32 %s736, %s737
      %s739 = smul.addr %s738, 2
      %s740 = scalar_lea.vmem %s5, %s739
      %s741 = sadd.s32 %s30, 1
      %s742 = smul.u32 %s741, 2
      %p743 = scmp.lt.s32.totalorder %s742, 3
      %s744 = scalar_select %p743, %s742, 3
      %s745 = smul.u32 2, %s744
      %s746 = smul.u32 4, %s30
      %p747 = scmp.lt.s32.totalorder %s29, 1
      %s748 = scalar_select %p747, %s29, 1
      %p749 = scmp.lt.s32.totalorder %s746, 7
      %s750 = scalar_select %p749, %s746, 7
      %s751 = smul.addr %s748, 8
      %s752 = sadd.s32 %s750, %s751
      %s753 = smul.addr %s752, 8
      %s754 = scalar_lea.vmem %s12, %s753
      %s755 = smul.u32 4, %s30
      %p756 = scmp.lt.s32.totalorder %s29, 1
      %s757 = scalar_select %p756, %s29, 1
      %p758 = scmp.lt.s32.totalorder %s30, 1
      %s759 = scalar_select %p758, %s30, 1
      %s760 = smul.addr %s757, 2
      %s761 = sadd.s32 %s759, %s760
      %s762 = smul.addr %s761, 8
      %s763 = scalar_lea.vmem %s13, %s762
      %v765 = vld [vmem:[%s671] sm:$0x3]
      %v766 = vld [vmem:[%s6] sm:$0xff]
      %v767 = vld [vmem:[%s6 + $0x8] sm:$0xff]
      %v768 = vld [vmem:[%s6 + $0x10] sm:$0xff]
      %v769 = vld [vmem:[%s6 + $0x18] sm:$0xff]
      %v770 = vld [vmem:[%s6 + $0x20] sm:$0xff]
      %v771 = vld [vmem:[%s6 + $0x28] sm:$0xff]
      %v772 = vld [vmem:[%s6 + $0x30] sm:$0xff]
      %v773 = vld [vmem:[%s6 + $0x38] sm:$0xff]
      %v774 = vld [vmem:[%s6 + $0x40] sm:$0xff]
      %v775 = vld [vmem:[%s6 + $0x48] sm:$0xff]
      %v776 = vld [vmem:[%s6 + $0x50] sm:$0xff]
      %v777 = vld [vmem:[%s6 + $0x58] sm:$0xff]
      %v778 = vld [vmem:[%s6 + $0x60] sm:$0xff]
      %v779 = vld [vmem:[%s6 + $0x68] sm:$0xff]
      %v780 = vld [vmem:[%s6 + $0x70] sm:$0xff]
      %v781 = vld [vmem:[%s6 + $0x78] sm:$0xff]
      %v782 = vld [vmem:[%s6 + $0x80] sm:$0xff]
      %v783 = vld [vmem:[%s6 + $0x88] sm:$0xff]
      %v784 = vld [vmem:[%s6 + $0x90] sm:$0xff]
      %v785 = vld [vmem:[%s6 + $0x98] sm:$0xff]
      %v786 = vld [vmem:[%s6 + $0xa0] sm:$0xff]
      %v787 = vld [vmem:[%s6 + $0xa8] sm:$0xff]
      %v788 = vld [vmem:[%s6 + $0xb0] sm:$0xff]
      %v789 = vld [vmem:[%s6 + $0xb8] sm:$0xff]
      %v790 = vld [vmem:[%s6 + $0xc0] sm:$0xff]
      %v791 = vld [vmem:[%s6 + $0xc8] sm:$0xff]
      %v792 = vld [vmem:[%s6 + $0xd0] sm:$0xff]
      %v793 = vld [vmem:[%s6 + $0xd8] sm:$0xff]
      %v794 = vld [vmem:[%s6 + $0xe0] sm:$0xff]
      %v795 = vld [vmem:[%s6 + $0xe8] sm:$0xff]
      %v796 = vld [vmem:[%s6 + $0xf0] sm:$0xff]
      %v797 = vld [vmem:[%s6 + $0xf8] sm:$0xff]
      %v830 = vunpack.c.l.b16 %v766
      %v831 = vunpack.c.h.b16 %v766
      %v832 = vunpack.c.l.b16 %v767
      %v833 = vunpack.c.h.b16 %v767
      %v834 = vunpack.c.l.b16 %v768
      %v835 = vunpack.c.h.b16 %v768
      %v836 = vunpack.c.l.b16 %v769
      %v837 = vunpack.c.h.b16 %v769
      %v838 = vunpack.c.l.b16 %v770
      %v839 = vunpack.c.h.b16 %v770
      %v840 = vunpack.c.l.b16 %v771
      %v841 = vunpack.c.h.b16 %v771
      %v842 = vunpack.c.l.b16 %v772
      %v843 = vunpack.c.h.b16 %v772
      %v844 = vunpack.c.l.b16 %v773
      %v845 = vunpack.c.h.b16 %v773
      %v846 = vunpack.c.l.b16 %v774
      %v847 = vunpack.c.h.b16 %v774
      %v848 = vunpack.c.l.b16 %v775
      %v849 = vunpack.c.h.b16 %v775
      %v850 = vunpack.c.l.b16 %v776
      %v851 = vunpack.c.h.b16 %v776
      %v852 = vunpack.c.l.b16 %v777
      %v853 = vunpack.c.h.b16 %v777
      %v854 = vunpack.c.l.b16 %v778
      %v855 = vunpack.c.h.b16 %v778
      %v856 = vunpack.c.l.b16 %v779
      %v857 = vunpack.c.h.b16 %v779
      %v858 = vunpack.c.l.b16 %v780
      %v859 = vunpack.c.h.b16 %v780
      %v860 = vunpack.c.l.b16 %v781
      %v861 = vunpack.c.h.b16 %v781
      %v862 = vunpack.c.l.b16 %v782
      %v863 = vunpack.c.h.b16 %v782
      %v864 = vunpack.c.l.b16 %v783
      %v865 = vunpack.c.h.b16 %v783
      %v866 = vunpack.c.l.b16 %v784
      %v867 = vunpack.c.h.b16 %v784
      %v868 = vunpack.c.l.b16 %v785
      %v869 = vunpack.c.h.b16 %v785
      %v870 = vunpack.c.l.b16 %v786
      %v871 = vunpack.c.h.b16 %v786
      %v872 = vunpack.c.l.b16 %v787
      %v873 = vunpack.c.h.b16 %v787
      %v874 = vunpack.c.l.b16 %v788
      %v875 = vunpack.c.h.b16 %v788
      %v876 = vunpack.c.l.b16 %v789
      %v877 = vunpack.c.h.b16 %v789
      %v878 = vunpack.c.l.b16 %v790
      %v879 = vunpack.c.h.b16 %v790
      %v880 = vunpack.c.l.b16 %v791
      %v881 = vunpack.c.h.b16 %v791
      %v882 = vunpack.c.l.b16 %v792
      %v883 = vunpack.c.h.b16 %v792
      %v884 = vunpack.c.l.b16 %v793
      %v885 = vunpack.c.h.b16 %v793
      %v886 = vunpack.c.l.b16 %v794
      %v887 = vunpack.c.h.b16 %v794
      %v888 = vunpack.c.l.b16 %v795
      %v889 = vunpack.c.h.b16 %v795
      %v890 = vunpack.c.l.b16 %v796
      %v891 = vunpack.c.h.b16 %v796
      %v892 = vunpack.c.l.b16 %v797
      %v893 = vunpack.c.h.b16 %v797
      %v894 = vpack.c.b16 %v834, %v830
      %v895 = vpack.c.b16 %v835, %v831
      %v896 = vpack.c.b16 %v836, %v832
      %v897 = vpack.c.b16 %v837, %v833
      %v898 = vpack.c.b16 %v842, %v838
      %v899 = vpack.c.b16 %v843, %v839
      %v900 = vpack.c.b16 %v844, %v840
      %v901 = vpack.c.b16 %v845, %v841
      %v902 = vpack.c.b16 %v850, %v846
      %v903 = vpack.c.b16 %v851, %v847
      %v904 = vpack.c.b16 %v852, %v848
      %v905 = vpack.c.b16 %v853, %v849
      %v906 = vpack.c.b16 %v858, %v854
      %v907 = vpack.c.b16 %v859, %v855
      %v908 = vpack.c.b16 %v860, %v856
      %v909 = vpack.c.b16 %v861, %v857
      %v910 = vpack.c.b16 %v866, %v862
      %v911 = vpack.c.b16 %v867, %v863
      %v912 = vpack.c.b16 %v868, %v864
      %v913 = vpack.c.b16 %v869, %v865
      %v914 = vpack.c.b16 %v874, %v870
      %v915 = vpack.c.b16 %v875, %v871
      %v916 = vpack.c.b16 %v876, %v872
      %v917 = vpack.c.b16 %v877, %v873
      %v918 = vpack.c.b16 %v882, %v878
      %v919 = vpack.c.b16 %v883, %v879
      %v920 = vpack.c.b16 %v884, %v880
      %v921 = vpack.c.b16 %v885, %v881
      %v922 = vpack.c.b16 %v890, %v886
      %v923 = vpack.c.b16 %v891, %v887
      %v924 = vpack.c.b16 %v892, %v888
      %v925 = vpack.c.b16 %v893, %v889
      %958 = vmatprep.subr.bf16.mxu0 %v923
      %959 = vmatpush1.bf16.msra.mxu0 %v922
      %960 = vmatprep.subr.bf16.mxu0 %v919
      %961 = vmatpush1.bf16.msra.mxu0 %v918
      %962 = vmatprep.subr.bf16.mxu0 %v915
      %963 = vmatpush1.bf16.msra.mxu0 %v914
      %964 = vmatprep.subr.bf16.mxu0 %v911
      %965 = vmatpush1.bf16.msra.mxu0 %v910
      %966 = vmatprep.subr.bf16.mxu0 %v907
      %967 = vmatpush1.bf16.msra.mxu0 %v906
      %968 = vmatprep.subr.bf16.mxu0 %v903
      %969 = vmatpush1.bf16.msra.mxu0 %v902
      %970 = vmatprep.subr.bf16.mxu0 %v899
      %971 = vmatpush1.bf16.msra.mxu0 %v898
      %972 = vmatprep.subr.bf16.mxu0 %v895
      %973 = vmatpush1.bf16.msra.mxu0 %v894
      %974 = vmatprep.subr.bf16.mxu0 0
      %975 = vmatpush2.bf16.msra.mxu0 0
      %976 = vmatprep.subr.bf16.mxu0 0
      %977 = vmatpush2.bf16.msra.mxu0 0
      %978 = vmatprep.subr.bf16.mxu0 0
      %979 = vmatpush2.bf16.msra.mxu0 0
      %980 = vmatprep.subr.bf16.mxu0 0
      %981 = vmatpush2.bf16.msra.mxu0 0
      %982 = vmatprep.subr.bf16.mxu0 0
      %983 = vmatpush2.bf16.msra.mxu0 0
      %984 = vmatprep.subr.bf16.mxu0 0
      %985 = vmatpush2.bf16.msra.mxu0 0
      %986 = vmatprep.subr.bf16.mxu0 0
      %987 = vmatpush2.bf16.msra.mxu0 0
      %988 = vmatprep.subr.bf16.mxu0 0
      %989 = vmatpush2.bf16.msra.mxu0 0
      %990 = vmatprep.mubr.bf16.mxu0 0
      %991 = vmatmul.mubr.bf16.gmra.mxu0 %v765
      %v992 = vpop.f32.mrf.mxu0
      %v993 = vadd.f32 0.0, %v992
      %v994 = vpop.f32.mrf.mxu0
      %v995 = vadd.f32 0.0, %v994
      %v996 = vpop.f32.mrf.mxu0
      %v997 = vpop.f32.mrf.mxu0
      %998 = vdwg.mxu0
      %999 = vmatprep.subr.bf16.mxu0 %v925
      %1000 = vmatpush1.bf16.msra.mxu0 %v924
      %1001 = vmatprep.subr.bf16.mxu0 %v921
      %1002 = vmatpush1.bf16.msra.mxu0 %v920
      %1003 = vmatprep.subr.bf16.mxu0 %v917
      %1004 = vmatpush1.bf16.msra.mxu0 %v916
      %1005 = vmatprep.subr.bf16.mxu0 %v913
      %1006 = vmatpush1.bf16.msra.mxu0 %v912
      %1007 = vmatprep.subr.bf16.mxu0 %v909
      %1008 = vmatpush1.bf16.msra.mxu0 %v908
      %1009 = vmatprep.subr.bf16.mxu0 %v905
      %1010 = vmatpush1.bf16.msra.mxu0 %v904
      %1011 = vmatprep.subr.bf16.mxu0 %v901
      %1012 = vmatpush1.bf16.msra.mxu0 %v900
      %1013 = vmatprep.subr.bf16.mxu0 %v897
      %1014 = vmatpush1.bf16.msra.mxu0 %v896
      %1015 = vmatprep.subr.bf16.mxu0 0
      %1016 = vmatpush2.bf16.msra.mxu0 0
      %1017 = vmatprep.subr.bf16.mxu0 0
      %1018 = vmatpush2.bf16.msra.mxu0 0
      %1019 = vmatprep.subr.bf16.mxu0 0
      %1020 = vmatpush2.bf16.msra.mxu0 0
      %1021 = vmatprep.subr.bf16.mxu0 0
      %1022 = vmatpush2.bf16.msra.mxu0 0
      %1023 = vmatprep.subr.bf16.mxu0 0
      %1024 = vmatpush2.bf16.msra.mxu0 0
      %1025 = vmatprep.subr.bf16.mxu0 0
      %1026 = vmatpush2.bf16.msra.mxu0 0
      %1027 = vmatprep.subr.bf16.mxu0 0
      %1028 = vmatpush2.bf16.msra.mxu0 0
      %1029 = vmatprep.subr.bf16.mxu0 0
      %1030 = vmatpush2.bf16.msra.mxu0 0
      %1031 = vmatprep.mubr.bf16.mxu0 0
      %1032 = vmatmul.mubr.bf16.gmra.mxu0 %v765
      %v1033 = vpop.f32.mrf.mxu0
      %v1034 = vadd.f32 0.0, %v1033
      %v1035 = vpop.f32.mrf.mxu0
      %v1036 = vadd.f32 0.0, %v1035
      %v1037 = vpop.f32.mrf.mxu0
      %v1038 = vpop.f32.mrf.mxu0
      %1039 = vdwg.mxu0
      %v1040 = vld [vmem:[%s708] sm:$0xff]
      %v1041 = vunpack.c.l.bf16 %v1040
      %v1042 = vunpack.c.h.bf16 %v1040
      %vm1043 = vcmask 7168
      %1044 = vst.msk [vmem:[#allocation2] sm:$0xff] %vm1043, 0.0
      %vm1045 = vcmask 540168
      %1046 = vst.msk [vmem:[#allocation2 + $0x20] sm:$0xff] %vm1045, 0.0
      %p1047 = scmp.gt.s32.totalorder %s30, 0
      %s1048 = scalar_select %p1047, 1, 0
      %s1049 = scvt.s32.f32 %s1048
      %p1050 = scmp.lt.s32.totalorder %s30, 1
      %s1051 = scalar_select %p1050, 1, 0
      %s1052 = scvt.s32.f32 %s1051
      %v1053 = vld [vmem:[%s682] sm:$0x3]
      %v1054 = vld [vmem:[%s7] sm:$0xf]
      %v1055 = vld [vmem:[%s7 + $0x4] sm:$0xf]
      %v1056 = vld [vmem:[%s7 + $0x8] sm:$0xf]
      %v1057 = vld [vmem:[%s7 + $0xc] sm:$0xf]
      %v1058 = vld [vmem:[%s7 + $0x10] sm:$0xf]
      %v1059 = vld [vmem:[%s7 + $0x14] sm:$0xf]
      %v1060 = vld [vmem:[%s7 + $0x18] sm:$0xf]
      %v1061 = vld [vmem:[%s7 + $0x1c] sm:$0xf]
      %v1062 = vld [vmem:[%s7 + $0x20] sm:$0xf]
      %v1063 = vld [vmem:[%s7 + $0x24] sm:$0xf]
      %v1064 = vld [vmem:[%s7 + $0x28] sm:$0xf]
      %v1065 = vld [vmem:[%s7 + $0x2c] sm:$0xf]
      %v1066 = vld [vmem:[%s7 + $0x30] sm:$0xf]
      %v1067 = vld [vmem:[%s7 + $0x34] sm:$0xf]
      %v1068 = vld [vmem:[%s7 + $0x38] sm:$0xf]
      %v1069 = vld [vmem:[%s7 + $0x3c] sm:$0xf]
      %v1086 = vunpack.c.l.b16 %v1054
      %v1087 = vunpack.c.l.b16 %v1055
      %v1088 = vunpack.c.l.b16 %v1056
      %v1089 = vunpack.c.l.b16 %v1057
      %v1090 = vunpack.c.l.b16 %v1058
      %v1091 = vunpack.c.l.b16 %v1059
      %v1092 = vunpack.c.l.b16 %v1060
      %v1093 = vunpack.c.l.b16 %v1061
      %v1094 = vunpack.c.l.b16 %v1062
      %v1095 = vunpack.c.l.b16 %v1063
      %v1096 = vunpack.c.l.b16 %v1064
      %v1097 = vunpack.c.l.b16 %v1065
      %v1098 = vunpack.c.l.b16 %v1066
      %v1099 = vunpack.c.l.b16 %v1067
      %v1100 = vunpack.c.l.b16 %v1068
      %v1101 = vunpack.c.l.b16 %v1069
      %v1102 = vpack.c.b16 %v1087, %v1086
      %v1103 = vpack.c.b16 %v1089, %v1088
      %v1104 = vpack.c.b16 %v1091, %v1090
      %v1105 = vpack.c.b16 %v1093, %v1092
      %v1106 = vpack.c.b16 %v1095, %v1094
      %v1107 = vpack.c.b16 %v1097, %v1096
      %v1108 = vpack.c.b16 %v1099, %v1098
      %v1109 = vpack.c.b16 %v1101, %v1100
      %1118 = vmatprep.subr.bf16.mxu0 0
      %1119 = vmatpush1.bf16.msra.mxu0 %v1109
      %1120 = vmatprep.subr.bf16.mxu0 0
      %1121 = vmatpush1.bf16.msra.mxu0 %v1108
      %1122 = vmatprep.subr.bf16.mxu0 0
      %1123 = vmatpush1.bf16.msra.mxu0 %v1107
      %1124 = vmatprep.subr.bf16.mxu0 0
      %1125 = vmatpush1.bf16.msra.mxu0 %v1106
      %1126 = vmatprep.subr.bf16.mxu0 0
      %1127 = vmatpush1.bf16.msra.mxu0 %v1105
      %1128 = vmatprep.subr.bf16.mxu0 0
      %1129 = vmatpush1.bf16.msra.mxu0 %v1104
      %1130 = vmatprep.subr.bf16.mxu0 0
      %1131 = vmatpush1.bf16.msra.mxu0 %v1103
      %1132 = vmatprep.subr.bf16.mxu0 0
      %1133 = vmatpush1.bf16.msra.mxu0 %v1102
      %1134 = vmatprep.subr.bf16.mxu0 0
      %1135 = vmatpush2.bf16.msra.mxu0 0
      %1136 = vmatprep.subr.bf16.mxu0 0
      %1137 = vmatpush2.bf16.msra.mxu0 0
      %1138 = vmatprep.subr.bf16.mxu0 0
      %1139 = vmatpush2.bf16.msra.mxu0 0
      %1140 = vmatprep.subr.bf16.mxu0 0
      %1141 = vmatpush2.bf16.msra.mxu0 0
      %1142 = vmatprep.subr.bf16.mxu0 0
      %1143 = vmatpush2.bf16.msra.mxu0 0
      %1144 = vmatprep.subr.bf16.mxu0 0
      %1145 = vmatpush2.bf16.msra.mxu0 0
      %1146 = vmatprep.subr.bf16.mxu0 0
      %1147 = vmatpush2.bf16.msra.mxu0 0
      %1148 = vmatprep.subr.bf16.mxu0 0
      %1149 = vmatpush2.bf16.msra.mxu0 0
      %1150 = vmatprep.mubr.bf16.mxu0 0
      %1151 = vmatmul.mubr.bf16.gmra.mxu0 %v1053
      %v1152 = vpop.f32.mrf.mxu0
      %v1153 = vadd.f32 0.0, %v1152
      %v1154 = vpop.f32.mrf.mxu0
      %v1155 = vpop.f32.mrf.mxu0
      %v1156 = vpop.f32.mrf.mxu0
      %1157 = vdwg.mxu0
      %v1158 = vstv %s1049
      %v1159 = vmul.f32 %v1153, %v1158
      %v1160 = vld [vmem:[%s696] sm:$0x3]
      %v1161 = vld [vmem:[%s8] sm:$0xf]
      %v1162 = vld [vmem:[%s8 + $0x4] sm:$0xf]
      %v1163 = vld [vmem:[%s8 + $0x8] sm:$0xf]
      %v1164 = vld [vmem:[%s8 + $0xc] sm:$0xf]
      %v1165 = vld [vmem:[%s8 + $0x10] sm:$0xf]
      %v1166 = vld [vmem:[%s8 + $0x14] sm:$0xf]
      %v1167 = vld [vmem:[%s8 + $0x18] sm:$0xf]
      %v1168 = vld [vmem:[%s8 + $0x1c] sm:$0xf]
      %v1169 = vld [vmem:[%s8 + $0x20] sm:$0xf]
      %v1170 = vld [vmem:[%s8 + $0x24] sm:$0xf]
      %v1171 = vld [vmem:[%s8 + $0x28] sm:$0xf]
      %v1172 = vld [vmem:[%s8 + $0x2c] sm:$0xf]
      %v1173 = vld [vmem:[%s8 + $0x30] sm:$0xf]
      %v1174 = vld [vmem:[%s8 + $0x34] sm:$0xf]
      %v1175 = vld [vmem:[%s8 + $0x38] sm:$0xf]
      %v1176 = vld [vmem:[%s8 + $0x3c] sm:$0xf]
      %v1193 = vunpack.c.l.b16 %v1161
      %v1194 = vunpack.c.l.b16 %v1162
      %v1195 = vunpack.c.l.b16 %v1163
      %v1196 = vunpack.c.l.b16 %v1164
      %v1197 = vunpack.c.l.b16 %v1165
      %v1198 = vunpack.c.l.b16 %v1166
      %v1199 = vunpack.c.l.b16 %v1167
      %v1200 = vunpack.c.l.b16 %v1168
      %v1201 = vunpack.c.l.b16 %v1169
      %v1202 = vunpack.c.l.b16 %v1170
      %v1203 = vunpack.c.l.b16 %v1171
      %v1204 = vunpack.c.l.b16 %v1172
      %v1205 = vunpack.c.l.b16 %v1173
      %v1206 = vunpack.c.l.b16 %v1174
      %v1207 = vunpack.c.l.b16 %v1175
      %v1208 = vunpack.c.l.b16 %v1176
      %v1209 = vpack.c.b16 %v1194, %v1193
      %v1210 = vpack.c.b16 %v1196, %v1195
      %v1211 = vpack.c.b16 %v1198, %v1197
      %v1212 = vpack.c.b16 %v1200, %v1199
      %v1213 = vpack.c.b16 %v1202, %v1201
      %v1214 = vpack.c.b16 %v1204, %v1203
      %v1215 = vpack.c.b16 %v1206, %v1205
      %v1216 = vpack.c.b16 %v1208, %v1207
      %1225 = vmatprep.subr.bf16.mxu0 0
      %1226 = vmatpush1.bf16.msra.mxu0 %v1216
      %1227 = vmatprep.subr.bf16.mxu0 0
      %1228 = vmatpush1.bf16.msra.mxu0 %v1215
      %1229 = vmatprep.subr.bf16.mxu0 0
      %1230 = vmatpush1.bf16.msra.mxu0 %v1214
      %1231 = vmatprep.subr.bf16.mxu0 0
      %1232 = vmatpush1.bf16.msra.mxu0 %v1213
      %1233 = vmatprep.subr.bf16.mxu0 0
      %1234 = vmatpush1.bf16.msra.mxu0 %v1212
      %1235 = vmatprep.subr.bf16.mxu0 0
      %1236 = vmatpush1.bf16.msra.mxu0 %v1211
      %1237 = vmatprep.subr.bf16.mxu0 0
      %1238 = vmatpush1.bf16.msra.mxu0 %v1210
      %1239 = vmatprep.subr.bf16.mxu0 0
      %1240 = vmatpush1.bf16.msra.mxu0 %v1209
      %1241 = vmatprep.subr.bf16.mxu0 0
      %1242 = vmatpush2.bf16.msra.mxu0 0
      %1243 = vmatprep.subr.bf16.mxu0 0
      %1244 = vmatpush2.bf16.msra.mxu0 0
      %1245 = vmatprep.subr.bf16.mxu0 0
      %1246 = vmatpush2.bf16.msra.mxu0 0
      %1247 = vmatprep.subr.bf16.mxu0 0
      %1248 = vmatpush2.bf16.msra.mxu0 0
      %1249 = vmatprep.subr.bf16.mxu0 0
      %1250 = vmatpush2.bf16.msra.mxu0 0
      %1251 = vmatprep.subr.bf16.mxu0 0
      %1252 = vmatpush2.bf16.msra.mxu0 0
      %1253 = vmatprep.subr.bf16.mxu0 0
      %1254 = vmatpush2.bf16.msra.mxu0 0
      %1255 = vmatprep.subr.bf16.mxu0 0
      %1256 = vmatpush2.bf16.msra.mxu0 0
      %1257 = vmatprep.mubr.bf16.mxu0 0
      %1258 = vmatmul.mubr.bf16.gmra.mxu0 %v1160
      %v1259 = vpop.f32.mrf.mxu0
      %v1260 = vadd.f32 0.0, %v1259
      %v1261 = vpop.f32.mrf.mxu0
      %v1262 = vpop.f32.mrf.mxu0
      %v1263 = vpop.f32.mrf.mxu0
      %1264 = vdwg.mxu0
      %v1265 = vstv %s1052
      %v1266 = vmul.f32 %v1260, %v1265
      %v1267 = vld [vmem:[%s722 + $0x2] sm:$0x3]
      %v1268 = vunpack.c.l.bf16 %v1267
      %v1269 = vmul.f32 %v1268, %v1158
      %v1270 = vld [vmem:[%s740] sm:$0x3]
      %v1271 = vunpack.c.l.bf16 %v1270
      %v1272 = vmul.f32 %v1271, %v1265
      %1274 = vrot.lane.b32.xlu0 %v1159, 1
      %v1275 = vpop.permute.xlu0 %1274
      %vm1277 = vcmask 265224
      %1278 = vst.msk [vmem:[#allocation2] sm:$0xf] %vm1277, %v1275
      %v1280 = vcombine.low %v1269, %v1269
      %1281 = vrot.lane.b32.xlu0 %v1280, 33
      %v1282 = vpop.permute.xlu0 %1281
      %vm1284 = vcmask 269324
      %1285 = vst.msk [vmem:[#allocation2] sm:$0xf0] %vm1284, %v1282
      %1287 = vrot.lane.b32.xlu0 %v1266, 33
      %v1288 = vpop.permute.xlu0 %1287
      %vm1290 = vcmask 527624
      %1291 = vst.msk [vmem:[#allocation2 + $0x20] sm:$0xf] %vm1290, %v1288
      %v1293 = vcombine.low %v1272, %v1272
      %1294 = vrot.lane.b32.xlu0 %v1293, 33
      %v1295 = vpop.permute.xlu0 %1294
      %vm1297 = vcmask 531724
      %1298 = vst.msk [vmem:[#allocation2 + $0x20] sm:$0xf0] %vm1297, %v1295
      %1303 = vrot.lane.b32.xlu0 %v993, 33
      %v1304 = vpop.permute.xlu0 %1303
      %1305 = vrot.lane.b32.xlu0 %v995, 33
      %v1306 = vpop.permute.xlu0 %1305
      %1307 = vrot.lane.b32.xlu0 %v1034, 33
      %v1308 = vpop.permute.xlu0 %1307
      %1309 = vrot.lane.b32.xlu0 %v1036, 33
      %v1310 = vpop.permute.xlu0 %1309
      %vm1311 = vcmask 269312
      %v1312 = vsel %vm1311, %v1304, %v1306
      %v1313 = vsel %vm1311, %v1306, %v1308
      %v1314 = vsel %vm1311, %v1308, %v1310
      %vm1320 = vcmask 1043720
      %1321 = vst.msk [vmem:[#allocation2] sm:$0xf] %vm1320, %v1304
      %1322 = vst [vmem:[#allocation2 + $0x8] sm:$0xf] %v1312
      %1323 = vst [vmem:[#allocation2 + $0x10] sm:$0xf] %v1313
      %1324 = vst [vmem:[#allocation2 + $0x18] sm:$0xf] %v1314
      %vm1325 = vcmask 265216
      %1326 = vst.msk [vmem:[#allocation2 + $0x20] sm:$0xf] %vm1325, %v1310
      %v1329 = vcombine.low %v1041, %v1041
      %v1330 = vcombine.low %v1042, %v1042
      %1331 = vrot.lane.b32.xlu0 %v1329, 33
      %v1332 = vpop.permute.xlu0 %1331
      %1333 = vrot.lane.b32.xlu0 %v1041, 33
      %v1334 = vpop.permute.xlu0 %1333
      %1335 = vrot.lane.b32.xlu0 %v1330, 33
      %v1336 = vpop.permute.xlu0 %1335
      %1337 = vrot.lane.b32.xlu0 %v1042, 33
      %v1338 = vpop.permute.xlu0 %1337
      %v1339 = vsel %vm1311, %v1332, %v1334
      %v1340 = vsel %vm1311, %v1334, %v1336
      %v1341 = vsel %vm1311, %v1336, %v1338
      %vm1347 = vcmask 1047820
      %1348 = vst.msk [vmem:[#allocation2] sm:$0xf0] %vm1347, %v1332
      %1349 = vst [vmem:[#allocation2 + $0x8] sm:$0xf0] %v1339
      %1350 = vst [vmem:[#allocation2 + $0x10] sm:$0xf0] %v1340
      %1351 = vst [vmem:[#allocation2 + $0x18] sm:$0xf0] %v1341
      %vm1352 = vcmask 269316
      %1353 = vst.msk [vmem:[#allocation2 + $0x20] sm:$0xf0] %vm1352, %v1338
      %v1354 = vld [vmem:[%s9] ss:$4 sm:$0xf]
      %v1355 = vld [vmem:[#allocation2] sm:$0xff]
      %v1356 = vld [vmem:[#allocation2 + $0x8] sm:$0xff]
      %v1357 = vld [vmem:[#allocation2 + $0x10] sm:$0xff]
      %v1358 = vld [vmem:[#allocation2 + $0x18] sm:$0xff]
      %v1360 = vlaneseq
      %v1361 = vshrl.u32 %v1360, 7
      %v1362 = vsub.s32 0, %v1361
      %v1363 = vrot.slane %v1354, %v1362
      %v1364 = vlaneseq
      %v1365 = vshrl.u32 %v1364, 7
      %v1366 = vsub.s32 1, %v1365
      %v1367 = vrot.slane %v1354, %v1366
      %v1368 = vlaneseq
      %v1369 = vshrl.u32 %v1368, 7
      %v1370 = vsub.s32 2, %v1369
      %v1371 = vrot.slane %v1354, %v1370
      %v1372 = vlaneseq
      %v1373 = vshrl.u32 %v1372, 7
      %v1374 = vsub.s32 3, %v1373
      %v1375 = vrot.slane %v1354, %v1374
      %v1380 = vmul.f32 %v1355, %v1363
      %v1381 = vmul.f32 %v1356, %v1367
      %v1382 = vmul.f32 %v1357, %v1371
      %v1383 = vmul.f32 %v1358, %v1375
      %v1384 = vpack.c.bf16 %v1380, %v1380
      %v1385 = vpack.c.bf16 %v1381, %v1381
      %v1386 = vpack.c.bf16 %v1382, %v1382
      %v1387 = vpack.c.bf16 %v1383, %v1383
      %v1388 = vld [vmem:[%s10] sm:$0xf]
      %v1389 = vld [vmem:[#allocation2 + $0x20] sm:$0xff]
      %1390 = vrot.lane.b32.xlu0 %v1363, 32
      %v1391 = vpop.permute.xlu0 %1390
      %1392 = vrot.lane.b32.xlu0 %v1367, 32
      %v1393 = vpop.permute.xlu0 %1392
      %1394 = vrot.lane.b32.xlu0 %v1371, 32
      %v1395 = vpop.permute.xlu0 %1394
      %1396 = vrot.lane.b32.xlu0 %v1375, 32
      %v1397 = vpop.permute.xlu0 %1396
      %vm1398 = vcmask 261120
      %v1399 = vsel %vm1398, %v1391, %v1393
      %v1400 = vsel %vm1398, %v1393, %v1395
      %v1401 = vsel %vm1398, %v1395, %v1397
      %v1407 = vmul.f32 %v1355, %v1391
      %v1408 = vmul.f32 %v1356, %v1399
      %v1409 = vmul.f32 %v1357, %v1400
      %v1410 = vmul.f32 %v1358, %v1401
      %v1411 = vmul.f32 %v1389, %v1397
      %v1412 = vpack.c.bf16 %v1407, %v1407
      %v1413 = vpack.c.bf16 %v1408, %v1408
      %v1414 = vpack.c.bf16 %v1409, %v1409
      %v1415 = vpack.c.bf16 %v1410, %v1410
      %v1416 = vpack.c.bf16 %v1411, %v1411
      %s1417 = scalar_lea.vmem %s10, 12
      %v1418 = vld [vmem:[%s1417] sm:$0xf]
      %1424 = vrot.lane.b32.xlu0 %v1412, 96
      %v1425 = vpop.permute.xlu0 %1424
      %1426 = vrot.lane.b32.xlu0 %v1413, 96
      %v1427 = vpop.permute.xlu0 %1426
      %1428 = vrot.lane.b32.xlu0 %v1414, 96
      %v1429 = vpop.permute.xlu0 %1428
      %1430 = vrot.lane.b32.xlu0 %v1415, 96
      %v1431 = vpop.permute.xlu0 %1430
      %1432 = vrot.lane.b32.xlu0 %v1416, 96
      %v1433 = vpop.permute.xlu0 %1432
      %vm1434 = vcmask 785408
      %v1435 = vsel %vm1434, %v1425, %v1427
      %v1436 = vsel %vm1434, %v1427, %v1429
      %v1437 = vsel %vm1434, %v1429, %v1431
      %v1438 = vsel %vm1434, %v1431, %v1433
      %vm1439 = vcmask 64512
      %v1441 = vsel %vm1439, %v1418, 0
      %vm1443 = vcmask 1043456
      %v1445 = vsel %vm1443, %v1435, 0
      %v1448 = vsel %vm1443, %v1436, 0
      %v1451 = vsel %vm1443, %v1437, 0
      %v1454 = vsel %vm1443, %v1438, 0
      %1456 = vmatprep.subr.bf16.mxu0 0
      %1457 = vmatpush1.bf16.msra.mxu0 0
      %1458 = vmatprep.subr.bf16.mxu0 0
      %1459 = vmatpush1.bf16.msra.mxu0 0
      %1460 = vmatprep.subr.bf16.mxu0 0
      %1461 = vmatpush1.bf16.msra.mxu0 0
      %1462 = vmatprep.subr.bf16.mxu0 0
      %1463 = vmatpush1.bf16.msra.mxu0 0
      %1464 = vmatprep.subr.bf16.mxu0 0
      %1465 = vmatpush1.bf16.msra.mxu0 0
      %1466 = vmatprep.subr.bf16.mxu0 0
      %1467 = vmatpush1.bf16.msra.mxu0 0
      %1468 = vmatprep.subr.bf16.mxu0 0
      %1469 = vmatpush1.bf16.msra.mxu0 0
      %1470 = vmatprep.subr.bf16.mxu0 %v1448
      %1471 = vmatpush1.bf16.msra.mxu0 %v1445
      %1472 = vmatprep.subr.bf16.mxu0 0
      %1473 = vmatpush2.bf16.msra.mxu0 0
      %1474 = vmatprep.subr.bf16.mxu0 0
      %1475 = vmatpush2.bf16.msra.mxu0 0
      %1476 = vmatprep.subr.bf16.mxu0 0
      %1477 = vmatpush2.bf16.msra.mxu0 0
      %1478 = vmatprep.subr.bf16.mxu0 0
      %1479 = vmatpush2.bf16.msra.mxu0 0
      %1480 = vmatprep.subr.bf16.mxu0 0
      %1481 = vmatpush2.bf16.msra.mxu0 0
      %1482 = vmatprep.subr.bf16.mxu0 0
      %1483 = vmatpush2.bf16.msra.mxu0 0
      %1484 = vmatprep.subr.bf16.mxu0 0
      %1485 = vmatpush2.bf16.msra.mxu0 0
      %1486 = vmatprep.subr.bf16.mxu0 0
      %1487 = vmatpush2.bf16.msra.mxu0 0
      %1488 = vmatprep.mubr.bf16.mxu0 0
      %1489 = vmatmul.mubr.bf16.gmra.mxu0 %v1441
      %v1490 = vpop.f32.mrf.mxu0
      %v1491 = vadd.f32 0.0, %v1490
      %v1492 = vpop.f32.mrf.mxu0
      %v1493 = vadd.f32 0.0, %v1492
      %v1494 = vpop.f32.mrf.mxu0
      %v1495 = vpop.f32.mrf.mxu0
      %1496 = vdwg.mxu0
      %1497 = vmatprep.subr.bf16.mxu0 0
      %1498 = vmatpush1.bf16.msra.mxu0 0
      %1499 = vmatprep.subr.bf16.mxu0 0
      %1500 = vmatpush1.bf16.msra.mxu0 0
      %1501 = vmatprep.subr.bf16.mxu0 0
      %1502 = vmatpush1.bf16.msra.mxu0 0
      %1503 = vmatprep.subr.bf16.mxu0 0
      %1504 = vmatpush1.bf16.msra.mxu0 0
      %1505 = vmatprep.subr.bf16.mxu0 0
      %1506 = vmatpush1.bf16.msra.mxu0 0
      %1507 = vmatprep.subr.bf16.mxu0 0
      %1508 = vmatpush1.bf16.msra.mxu0 0
      %1509 = vmatprep.subr.bf16.mxu0 0
      %1510 = vmatpush1.bf16.msra.mxu0 0
      %1511 = vmatprep.subr.bf16.mxu0 %v1454
      %1512 = vmatpush1.bf16.msra.mxu0 %v1451
      %1513 = vmatprep.subr.bf16.mxu0 0
      %1514 = vmatpush2.bf16.msra.mxu0 0
      %1515 = vmatprep.subr.bf16.mxu0 0
      %1516 = vmatpush2.bf16.msra.mxu0 0
      %1517 = vmatprep.subr.bf16.mxu0 0
      %1518 = vmatpush2.bf16.msra.mxu0 0
      %1519 = vmatprep.subr.bf16.mxu0 0
      %1520 = vmatpush2.bf16.msra.mxu0 0
      %1521 = vmatprep.subr.bf16.mxu0 0
      %1522 = vmatpush2.bf16.msra.mxu0 0
      %1523 = vmatprep.subr.bf16.mxu0 0
      %1524 = vmatpush2.bf16.msra.mxu0 0
      %1525 = vmatprep.subr.bf16.mxu0 0
      %1526 = vmatpush2.bf16.msra.mxu0 0
      %1527 = vmatprep.subr.bf16.mxu0 0
      %1528 = vmatpush2.bf16.msra.mxu0 0
      %1529 = vmatprep.mubr.bf16.mxu0 0
      %1530 = vmatmul.mubr.bf16.gmra.mxu0 %v1441
      %v1531 = vpop.f32.mrf.mxu0
      %v1532 = vadd.f32 0.0, %v1531
      %v1533 = vpop.f32.mrf.mxu0
      %v1534 = vadd.f32 0.0, %v1533
      %v1535 = vpop.f32.mrf.mxu0
      %v1536 = vpop.f32.mrf.mxu0
      %1537 = vdwg.mxu0
      %v1539 = vsel %vm1439, %v1388, 0
      %v1542 = vsel %vm1443, %v1384, 0
      %v1545 = vsel %vm1443, %v1385, 0
      %v1548 = vsel %vm1443, %v1386, 0
      %v1551 = vsel %vm1443, %v1387, 0
      %1553 = vmatprep.subr.bf16.mxu0 0
      %1554 = vmatpush1.bf16.msra.mxu0 0
      %1555 = vmatprep.subr.bf16.mxu0 0
      %1556 = vmatpush1.bf16.msra.mxu0 0
      %1557 = vmatprep.subr.bf16.mxu0 0
      %1558 = vmatpush1.bf16.msra.mxu0 0
      %1559 = vmatprep.subr.bf16.mxu0 0
      %1560 = vmatpush1.bf16.msra.mxu0 0
      %1561 = vmatprep.subr.bf16.mxu0 0
      %1562 = vmatpush1.bf16.msra.mxu0 0
      %1563 = vmatprep.subr.bf16.mxu0 0
      %1564 = vmatpush1.bf16.msra.mxu0 0
      %1565 = vmatprep.subr.bf16.mxu0 0
      %1566 = vmatpush1.bf16.msra.mxu0 0
      %1567 = vmatprep.subr.bf16.mxu0 %v1545
      %1568 = vmatpush1.bf16.msra.mxu0 %v1542
      %1569 = vmatprep.subr.bf16.mxu0 0
      %1570 = vmatpush2.bf16.msra.mxu0 0
      %1571 = vmatprep.subr.bf16.mxu0 0
      %1572 = vmatpush2.bf16.msra.mxu0 0
      %1573 = vmatprep.subr.bf16.mxu0 0
      %1574 = vmatpush2.bf16.msra.mxu0 0
      %1575 = vmatprep.subr.bf16.mxu0 0
      %1576 = vmatpush2.bf16.msra.mxu0 0
      %1577 = vmatprep.subr.bf16.mxu0 0
      %1578 = vmatpush2.bf16.msra.mxu0 0
      %1579 = vmatprep.subr.bf16.mxu0 0
      %1580 = vmatpush2.bf16.msra.mxu0 0
      %1581 = vmatprep.subr.bf16.mxu0 0
      %1582 = vmatpush2.bf16.msra.mxu0 0
      %1583 = vmatprep.subr.bf16.mxu0 0
      %1584 = vmatpush2.bf16.msra.mxu0 0
      %1585 = vmatprep.mubr.bf16.mxu0 0
      %1586 = vmatmul.mubr.bf16.gmra.mxu0 %v1539
      %v1587 = vpop.f32.mrf.mxu0
      %v1588 = vadd.f32 %v1491, %v1587
      %v1589 = vpop.f32.mrf.mxu0
      %v1590 = vadd.f32 %v1493, %v1589
      %v1591 = vpop.f32.mrf.mxu0
      %v1592 = vpop.f32.mrf.mxu0
      %1593 = vdwg.mxu0
      %1594 = vmatprep.subr.bf16.mxu0 0
      %1595 = vmatpush1.bf16.msra.mxu0 0
      %1596 = vmatprep.subr.bf16.mxu0 0
      %1597 = vmatpush1.bf16.msra.mxu0 0
      %1598 = vmatprep.subr.bf16.mxu0 0
      %1599 = vmatpush1.bf16.msra.mxu0 0
      %1600 = vmatprep.subr.bf16.mxu0 0
      %1601 = vmatpush1.bf16.msra.mxu0 0
      %1602 = vmatprep.subr.bf16.mxu0 0
      %1603 = vmatpush1.bf16.msra.mxu0 0
      %1604 = vmatprep.subr.bf16.mxu0 0
      %1605 = vmatpush1.bf16.msra.mxu0 0
      %1606 = vmatprep.subr.bf16.mxu0 0
      %1607 = vmatpush1.bf16.msra.mxu0 0
      %1608 = vmatprep.subr.bf16.mxu0 %v1551
      %1609 = vmatpush1.bf16.msra.mxu0 %v1548
      %1610 = vmatprep.subr.bf16.mxu0 0
      %1611 = vmatpush2.bf16.msra.mxu0 0
      %1612 = vmatprep.subr.bf16.mxu0 0
      %1613 = vmatpush2.bf16.msra.mxu0 0
      %1614 = vmatprep.subr.bf16.mxu0 0
      %1615 = vmatpush2.bf16.msra.mxu0 0
      %1616 = vmatprep.subr.bf16.mxu0 0
      %1617 = vmatpush2.bf16.msra.mxu0 0
      %1618 = vmatprep.subr.bf16.mxu0 0
      %1619 = vmatpush2.bf16.msra.mxu0 0
      %1620 = vmatprep.subr.bf16.mxu0 0
      %1621 = vmatpush2.bf16.msra.mxu0 0
      %1622 = vmatprep.subr.bf16.mxu0 0
      %1623 = vmatpush2.bf16.msra.mxu0 0
      %1624 = vmatprep.subr.bf16.mxu0 0
      %1625 = vmatpush2.bf16.msra.mxu0 0
      %1626 = vmatprep.mubr.bf16.mxu0 0
      %1627 = vmatmul.mubr.bf16.gmra.mxu0 %v1539
      %v1628 = vpop.f32.mrf.mxu0
      %v1629 = vadd.f32 %v1532, %v1628
      %v1630 = vpop.f32.mrf.mxu0
      %v1631 = vadd.f32 %v1534, %v1630
      %v1632 = vpop.f32.mrf.mxu0
      %v1633 = vpop.f32.mrf.mxu0
      %1634 = vdwg.mxu0
      %1635 = vrot.lane.b32.xlu0 %v1363, 64
      %v1636 = vpop.permute.xlu0 %1635
      %1637 = vrot.lane.b32.xlu0 %v1367, 64
      %v1638 = vpop.permute.xlu0 %1637
      %1639 = vrot.lane.b32.xlu0 %v1371, 64
      %v1640 = vpop.permute.xlu0 %1639
      %1641 = vrot.lane.b32.xlu0 %v1375, 64
      %v1642 = vpop.permute.xlu0 %1641
      %vm1643 = vcmask 523264
      %v1644 = vsel %vm1643, %v1636, %v1638
      %v1645 = vsel %vm1643, %v1638, %v1640
      %v1646 = vsel %vm1643, %v1640, %v1642
      %v1652 = vmul.f32 %v1355, %v1636
      %v1653 = vmul.f32 %v1356, %v1644
      %v1654 = vmul.f32 %v1357, %v1645
      %v1655 = vmul.f32 %v1358, %v1646
      %v1656 = vmul.f32 %v1389, %v1642
      %v1657 = vpack.c.bf16 %v1652, %v1652
      %v1658 = vpack.c.bf16 %v1653, %v1653
      %v1659 = vpack.c.bf16 %v1654, %v1654
      %v1660 = vpack.c.bf16 %v1655, %v1655
      %v1661 = vpack.c.bf16 %v1656, %v1656
      %s1662 = scalar_lea.vmem %s10, 24
      %v1663 = vld [vmem:[%s1662] sm:$0xf]
      %1669 = vrot.lane.b32.xlu0 %v1657, 64
      %v1670 = vpop.permute.xlu0 %1669
      %1671 = vrot.lane.b32.xlu0 %v1658, 64
      %v1672 = vpop.permute.xlu0 %1671
      %1673 = vrot.lane.b32.xlu0 %v1659, 64
      %v1674 = vpop.permute.xlu0 %1673
      %1675 = vrot.lane.b32.xlu0 %v1660, 64
      %v1676 = vpop.permute.xlu0 %1675
      %1677 = vrot.lane.b32.xlu0 %v1661, 64
      %v1678 = vpop.permute.xlu0 %1677
      %vm1679 = vcmask 523264
      %v1680 = vsel %vm1679, %v1670, %v1672
      %v1681 = vsel %vm1679, %v1672, %v1674
      %v1682 = vsel %vm1679, %v1674, %v1676
      %v1683 = vsel %vm1679, %v1676, %v1678
      %v1685 = vsel %vm1439, %v1663, 0
      %v1688 = vsel %vm1443, %v1680, 0
      %v1691 = vsel %vm1443, %v1681, 0
      %v1694 = vsel %vm1443, %v1682, 0
      %v1697 = vsel %vm1443, %v1683, 0
      %1699 = vmatprep.subr.bf16.mxu0 0
      %1700 = vmatpush1.bf16.msra.mxu0 0
      %1701 = vmatprep.subr.bf16.mxu0 0
      %1702 = vmatpush1.bf16.msra.mxu0 0
      %1703 = vmatprep.subr.bf16.mxu0 0
      %1704 = vmatpush1.bf16.msra.mxu0 0
      %1705 = vmatprep.subr.bf16.mxu0 0
      %1706 = vmatpush1.bf16.msra.mxu0 0
      %1707 = vmatprep.subr.bf16.mxu0 0
      %1708 = vmatpush1.bf16.msra.mxu0 0
      %1709 = vmatprep.subr.bf16.mxu0 0
      %1710 = vmatpush1.bf16.msra.mxu0 0
      %1711 = vmatprep.subr.bf16.mxu0 0
      %1712 = vmatpush1.bf16.msra.mxu0 0
      %1713 = vmatprep.subr.bf16.mxu0 %v1691
      %1714 = vmatpush1.bf16.msra.mxu0 %v1688
      %1715 = vmatprep.subr.bf16.mxu0 0
      %1716 = vmatpush2.bf16.msra.mxu0 0
      %1717 = vmatprep.subr.bf16.mxu0 0
      %1718 = vmatpush2.bf16.msra.mxu0 0
      %1719 = vmatprep.subr.bf16.mxu0 0
      %1720 = vmatpush2.bf16.msra.mxu0 0
      %1721 = vmatprep.subr.bf16.mxu0 0
      %1722 = vmatpush2.bf16.msra.mxu0 0
      %1723 = vmatprep.subr.bf16.mxu0 0
      %1724 = vmatpush2.bf16.msra.mxu0 0
      %1725 = vmatprep.subr.bf16.mxu0 0
      %1726 = vmatpush2.bf16.msra.mxu0 0
      %1727 = vmatprep.subr.bf16.mxu0 0
      %1728 = vmatpush2.bf16.msra.mxu0 0
      %1729 = vmatprep.subr.bf16.mxu0 0
      %1730 = vmatpush2.bf16.msra.mxu0 0
      %1731 = vmatprep.mubr.bf16.mxu0 0
      %1732 = vmatmul.mubr.bf16.gmra.mxu0 %v1685
      %v1733 = vpop.f32.mrf.mxu0
      %v1734 = vadd.f32 0.0, %v1733
      %v1735 = vpop.f32.mrf.mxu0
      %v1736 = vadd.f32 0.0, %v1735
      %v1737 = vpop.f32.mrf.mxu0
      %v1738 = vpop.f32.mrf.mxu0
      %1739 = vdwg.mxu0
      %1740 = vmatprep.subr.bf16.mxu0 0
      %1741 = vmatpush1.bf16.msra.mxu0 0
      %1742 = vmatprep.subr.bf16.mxu0 0
      %1743 = vmatpush1.bf16.msra.mxu0 0
      %1744 = vmatprep.subr.bf16.mxu0 0
      %1745 = vmatpush1.bf16.msra.mxu0 0
      %1746 = vmatprep.subr.bf16.mxu0 0
      %1747 = vmatpush1.bf16.msra.mxu0 0
      %1748 = vmatprep.subr.bf16.mxu0 0
      %1749 = vmatpush1.bf16.msra.mxu0 0
      %1750 = vmatprep.subr.bf16.mxu0 0
      %1751 = vmatpush1.bf16.msra.mxu0 0
      %1752 = vmatprep.subr.bf16.mxu0 0
      %1753 = vmatpush1.bf16.msra.mxu0 0
      %1754 = vmatprep.subr.bf16.mxu0 %v1697
      %1755 = vmatpush1.bf16.msra.mxu0 %v1694
      %1756 = vmatprep.subr.bf16.mxu0 0
      %1757 = vmatpush2.bf16.msra.mxu0 0
      %1758 = vmatprep.subr.bf16.mxu0 0
      %1759 = vmatpush2.bf16.msra.mxu0 0
      %1760 = vmatprep.subr.bf16.mxu0 0
      %1761 = vmatpush2.bf16.msra.mxu0 0
      %1762 = vmatprep.subr.bf16.mxu0 0
      %1763 = vmatpush2.bf16.msra.mxu0 0
      %1764 = vmatprep.subr.bf16.mxu0 0
      %1765 = vmatpush2.bf16.msra.mxu0 0
      %1766 = vmatprep.subr.bf16.mxu0 0
      %1767 = vmatpush2.bf16.msra.mxu0 0
      %1768 = vmatprep.subr.bf16.mxu0 0
      %1769 = vmatpush2.bf16.msra.mxu0 0
      %1770 = vmatprep.subr.bf16.mxu0 0
      %1771 = vmatpush2.bf16.msra.mxu0 0
      %1772 = vmatprep.mubr.bf16.mxu0 0
      %1773 = vmatmul.mubr.bf16.gmra.mxu0 %v1685
      %v1774 = vpop.f32.mrf.mxu0
      %v1775 = vadd.f32 0.0, %v1774
      %v1776 = vpop.f32.mrf.mxu0
      %v1777 = vadd.f32 0.0, %v1776
      %v1778 = vpop.f32.mrf.mxu0
      %v1779 = vpop.f32.mrf.mxu0
      %1780 = vdwg.mxu0
      %v1781 = vadd.f32 %v1588, %v1734
      %v1782 = vadd.f32 %v1590, %v1736
      %v1783 = vadd.f32 %v1629, %v1775
      %v1784 = vadd.f32 %v1631, %v1777
      %s1785 = scalar_lea.vmem %s9, 1
      %v1786 = vld [vmem:[%s1785] ss:$4 sm:$0xf]
      %v1788 = vlaneseq
      %v1789 = vshrl.u32 %v1788, 7
      %v1790 = vsub.s32 0, %v1789
      %v1791 = vrot.slane %v1786, %v1790
      %v1792 = vlaneseq
      %v1793 = vshrl.u32 %v1792, 7
      %v1794 = vsub.s32 1, %v1793
      %v1795 = vrot.slane %v1786, %v1794
      %v1796 = vlaneseq
      %v1797 = vshrl.u32 %v1796, 7
      %v1798 = vsub.s32 2, %v1797
      %v1799 = vrot.slane %v1786, %v1798
      %v1800 = vlaneseq
      %v1801 = vshrl.u32 %v1800, 7
      %v1802 = vsub.s32 3, %v1801
      %v1803 = vrot.slane %v1786, %v1802
      %1804 = vrot.lane.b32.xlu0 %v1791, 1
      %v1805 = vpop.permute.xlu0 %1804
      %1806 = vrot.lane.b32.xlu0 %v1795, 1
      %v1807 = vpop.permute.xlu0 %1806
      %1808 = vrot.lane.b32.xlu0 %v1799, 1
      %v1809 = vpop.permute.xlu0 %1808
      %1810 = vrot.lane.b32.xlu0 %v1803, 1
      %v1811 = vpop.permute.xlu0 %1810
      %v1812 = vsel %vm1043, %v1805, %v1807
      %v1813 = vsel %vm1043, %v1807, %v1809
      %v1814 = vsel %vm1043, %v1809, %v1811
      %v1820 = vmul.f32 %v1355, %v1805
      %v1821 = vmul.f32 %v1356, %v1812
      %v1822 = vmul.f32 %v1357, %v1813
      %v1823 = vmul.f32 %v1358, %v1814
      %v1824 = vmul.f32 %v1389, %v1811
      %v1825 = vpack.c.bf16 %v1820, %v1820
      %v1826 = vpack.c.bf16 %v1821, %v1821
      %v1827 = vpack.c.bf16 %v1822, %v1822
      %v1828 = vpack.c.bf16 %v1823, %v1823
      %v1829 = vpack.c.bf16 %v1824, %v1824
      %s1830 = scalar_lea.vmem %s10, 4
      %v1831 = vld [vmem:[%s1830] sm:$0xf]
      %1837 = vrot.lane.b32.xlu0 %v1825, 127
      %v1838 = vpop.permute.xlu0 %1837
      %1839 = vrot.lane.b32.xlu0 %v1826, 127
      %v1840 = vpop.permute.xlu0 %1839
      %1841 = vrot.lane.b32.xlu0 %v1827, 127
      %v1842 = vpop.permute.xlu0 %1841
      %1843 = vrot.lane.b32.xlu0 %v1828, 127
      %v1844 = vpop.permute.xlu0 %1843
      %1845 = vrot.lane.b32.xlu0 %v1829, 127
      %v1846 = vpop.permute.xlu0 %1845
      %vm1847 = vcmask 1039360
      %v1848 = vsel %vm1847, %v1838, %v1840
      %v1849 = vsel %vm1847, %v1840, %v1842
      %v1850 = vsel %vm1847, %v1842, %v1844
      %v1851 = vsel %vm1847, %v1844, %v1846
      %v1853 = vsel %vm1439, %v1831, 0
      %v1856 = vsel %vm1443, %v1848, 0
      %v1859 = vsel %vm1443, %v1849, 0
      %v1862 = vsel %vm1443, %v1850, 0
      %v1865 = vsel %vm1443, %v1851, 0
      %1867 = vmatprep.subr.bf16.mxu0 0
      %1868 = vmatpush1.bf16.msra.mxu0 0
      %1869 = vmatprep.subr.bf16.mxu0 0
      %1870 = vmatpush1.bf16.msra.mxu0 0
      %1871 = vmatprep.subr.bf16.mxu0 0
      %1872 = vmatpush1.bf16.msra.mxu0 0
      %1873 = vmatprep.subr.bf16.mxu0 0
      %1874 = vmatpush1.bf16.msra.mxu0 0
      %1875 = vmatprep.subr.bf16.mxu0 0
      %1876 = vmatpush1.bf16.msra.mxu0 0
      %1877 = vmatprep.subr.bf16.mxu0 0
      %1878 = vmatpush1.bf16.msra.mxu0 0
      %1879 = vmatprep.subr.bf16.mxu0 0
      %1880 = vmatpush1.bf16.msra.mxu0 0
      %1881 = vmatprep.subr.bf16.mxu0 %v1859
      %1882 = vmatpush1.bf16.msra.mxu0 %v1856
      %1883 = vmatprep.subr.bf16.mxu0 0
      %1884 = vmatpush2.bf16.msra.mxu0 0
      %1885 = vmatprep.subr.bf16.mxu0 0
      %1886 = vmatpush2.bf16.msra.mxu0 0
      %1887 = vmatprep.subr.bf16.mxu0 0
      %1888 = vmatpush2.bf16.msra.mxu0 0
      %1889 = vmatprep.subr.bf16.mxu0 0
      %1890 = vmatpush2.bf16.msra.mxu0 0
      %1891 = vmatprep.subr.bf16.mxu0 0
      %1892 = vmatpush2.bf16.msra.mxu0 0
      %1893 = vmatprep.subr.bf16.mxu0 0
      %1894 = vmatpush2.bf16.msra.mxu0 0
      %1895 = vmatprep.subr.bf16.mxu0 0
      %1896 = vmatpush2.bf16.msra.mxu0 0
      %1897 = vmatprep.subr.bf16.mxu0 0
      %1898 = vmatpush2.bf16.msra.mxu0 0
      %1899 = vmatprep.mubr.bf16.mxu0 0
      %1900 = vmatmul.mubr.bf16.gmra.mxu0 %v1853
      %v1901 = vpop.f32.mrf.mxu0
      %v1902 = vadd.f32 0.0, %v1901
      %v1903 = vpop.f32.mrf.mxu0
      %v1904 = vadd.f32 0.0, %v1903
      %v1905 = vpop.f32.mrf.mxu0
      %v1906 = vpop.f32.mrf.mxu0
      %1907 = vdwg.mxu0
      %1908 = vmatprep.subr.bf16.mxu0 0
      %1909 = vmatpush1.bf16.msra.mxu0 0
      %1910 = vmatprep.subr.bf16.mxu0 0
      %1911 = vmatpush1.bf16.msra.mxu0 0
      %1912 = vmatprep.subr.bf16.mxu0 0
      %1913 = vmatpush1.bf16.msra.mxu0 0
      %1914 = vmatprep.subr.bf16.mxu0 0
      %1915 = vmatpush1.bf16.msra.mxu0 0
      %1916 = vmatprep.subr.bf16.mxu0 0
      %1917 = vmatpush1.bf16.msra.mxu0 0
      %1918 = vmatprep.subr.bf16.mxu0 0
      %1919 = vmatpush1.bf16.msra.mxu0 0
      %1920 = vmatprep.subr.bf16.mxu0 0
      %1921 = vmatpush1.bf16.msra.mxu0 0
      %1922 = vmatprep.subr.bf16.mxu0 %v1865
      %1923 = vmatpush1.bf16.msra.mxu0 %v1862
      %1924 = vmatprep.subr.bf16.mxu0 0
      %1925 = vmatpush2.bf16.msra.mxu0 0
      %1926 = vmatprep.subr.bf16.mxu0 0
      %1927 = vmatpush2.bf16.msra.mxu0 0
      %1928 = vmatprep.subr.bf16.mxu0 0
      %1929 = vmatpush2.bf16.msra.mxu0 0
      %1930 = vmatprep.subr.bf16.mxu0 0
      %1931 = vmatpush2.bf16.msra.mxu0 0
      %1932 = vmatprep.subr.bf16.mxu0 0
      %1933 = vmatpush2.bf16.msra.mxu0 0
      %1934 = vmatprep.subr.bf16.mxu0 0
      %1935 = vmatpush2.bf16.msra.mxu0 0
      %1936 = vmatprep.subr.bf16.mxu0 0
      %1937 = vmatpush2.bf16.msra.mxu0 0
      %1938 = vmatprep.subr.bf16.mxu0 0
      %1939 = vmatpush2.bf16.msra.mxu0 0
      %1940 = vmatprep.mubr.bf16.mxu0 0
      %1941 = vmatmul.mubr.bf16.gmra.mxu0 %v1853
      %v1942 = vpop.f32.mrf.mxu0
      %v1943 = vadd.f32 0.0, %v1942
      %v1944 = vpop.f32.mrf.mxu0
      %v1945 = vadd.f32 0.0, %v1944
      %v1946 = vpop.f32.mrf.mxu0
      %v1947 = vpop.f32.mrf.mxu0
      %1948 = vdwg.mxu0
      %v1949 = vadd.f32 %v1781, %v1902
      %v1950 = vadd.f32 %v1782, %v1904
      %v1951 = vadd.f32 %v1783, %v1943
      %v1952 = vadd.f32 %v1784, %v1945
      %1953 = vrot.lane.b32.xlu0 %v1791, 33
      %v1954 = vpop.permute.xlu0 %1953
      %1955 = vrot.lane.b32.xlu0 %v1795, 33
      %v1956 = vpop.permute.xlu0 %1955
      %1957 = vrot.lane.b32.xlu0 %v1799, 33
      %v1958 = vpop.permute.xlu0 %1957
      %1959 = vrot.lane.b32.xlu0 %v1803, 33
      %v1960 = vpop.permute.xlu0 %1959
      %v1961 = vsel %vm1311, %v1954, %v1956
      %v1962 = vsel %vm1311, %v1956, %v1958
      %v1963 = vsel %vm1311, %v1958, %v1960
      %v1969 = vmul.f32 %v1355, %v1954
      %v1970 = vmul.f32 %v1356, %v1961
      %v1971 = vmul.f32 %v1357, %v1962
      %v1972 = vmul.f32 %v1358, %v1963
      %v1973 = vmul.f32 %v1389, %v1960
      %v1974 = vpack.c.bf16 %v1969, %v1969
      %v1975 = vpack.c.bf16 %v1970, %v1970
      %v1976 = vpack.c.bf16 %v1971, %v1971
      %v1977 = vpack.c.bf16 %v1972, %v1972
      %v1978 = vpack.c.bf16 %v1973, %v1973
      %s1979 = scalar_lea.vmem %s10, 16
      %v1980 = vld [vmem:[%s1979] sm:$0xf]
      %1986 = vrot.lane.b32.xlu0 %v1974, 95
      %v1987 = vpop.permute.xlu0 %1986
      %1988 = vrot.lane.b32.xlu0 %v1975, 95
      %v1989 = vpop.permute.xlu0 %1988
      %1990 = vrot.lane.b32.xlu0 %v1976, 95
      %v1991 = vpop.permute.xlu0 %1990
      %1992 = vrot.lane.b32.xlu0 %v1977, 95
      %v1993 = vpop.permute.xlu0 %1992
      %1994 = vrot.lane.b32.xlu0 %v1978, 95
      %v1995 = vpop.permute.xlu0 %1994
      %vm1996 = vcmask 777216
      %v1997 = vsel %vm1996, %v1987, %v1989
      %v1998 = vsel %vm1996, %v1989, %v1991
      %v1999 = vsel %vm1996, %v1991, %v1993
      %v2000 = vsel %vm1996, %v1993, %v1995
      %v2002 = vsel %vm1439, %v1980, 0
      %v2005 = vsel %vm1443, %v1997, 0
      %v2008 = vsel %vm1443, %v1998, 0
      %v2011 = vsel %vm1443, %v1999, 0
      %v2014 = vsel %vm1443, %v2000, 0
      %2016 = vmatprep.subr.bf16.mxu0 0
      %2017 = vmatpush1.bf16.msra.mxu0 0
      %2018 = vmatprep.subr.bf16.mxu0 0
      %2019 = vmatpush1.bf16.msra.mxu0 0
      %2020 = vmatprep.subr.bf16.mxu0 0
      %2021 = vmatpush1.bf16.msra.mxu0 0
      %2022 = vmatprep.subr.bf16.mxu0 0
      %2023 = vmatpush1.bf16.msra.mxu0 0
      %2024 = vmatprep.subr.bf16.mxu0 0
      %2025 = vmatpush1.bf16.msra.mxu0 0
      %2026 = vmatprep.subr.bf16.mxu0 0
      %2027 = vmatpush1.bf16.msra.mxu0 0
      %2028 = vmatprep.subr.bf16.mxu0 0
      %2029 = vmatpush1.bf16.msra.mxu0 0
      %2030 = vmatprep.subr.bf16.mxu0 %v2008
      %2031 = vmatpush1.bf16.msra.mxu0 %v2005
      %2032 = vmatprep.subr.bf16.mxu0 0
      %2033 = vmatpush2.bf16.msra.mxu0 0
      %2034 = vmatprep.subr.bf16.mxu0 0
      %2035 = vmatpush2.bf16.msra.mxu0 0
      %2036 = vmatprep.subr.bf16.mxu0 0
      %2037 = vmatpush2.bf16.msra.mxu0 0
      %2038 = vmatprep.subr.bf16.mxu0 0
      %2039 = vmatpush2.bf16.msra.mxu0 0
      %2040 = vmatprep.subr.bf16.mxu0 0
      %2041 = vmatpush2.bf16.msra.mxu0 0
      %2042 = vmatprep.subr.bf16.mxu0 0
      %2043 = vmatpush2.bf16.msra.mxu0 0
      %2044 = vmatprep.subr.bf16.mxu0 0
      %2045 = vmatpush2.bf16.msra.mxu0 0
      %2046 = vmatprep.subr.bf16.mxu0 0
      %2047 = vmatpush2.bf16.msra.mxu0 0
      %2048 = vmatprep.mubr.bf16.mxu0 0
      %2049 = vmatmul.mubr.bf16.gmra.mxu0 %v2002
      %v2050 = vpop.f32.mrf.mxu0
      %v2051 = vadd.f32 0.0, %v2050
      %v2052 = vpop.f32.mrf.mxu0
      %v2053 = vadd.f32 0.0, %v2052
      %v2054 = vpop.f32.mrf.mxu0
      %v2055 = vpop.f32.mrf.mxu0
      %2056 = vdwg.mxu0
      %2057 = vmatprep.subr.bf16.mxu0 0
      %2058 = vmatpush1.bf16.msra.mxu0 0
      %2059 = vmatprep.subr.bf16.mxu0 0
      %2060 = vmatpush1.bf16.msra.mxu0 0
      %2061 = vmatprep.subr.bf16.mxu0 0
      %2062 = vmatpush1.bf16.msra.mxu0 0
      %2063 = vmatprep.subr.bf16.mxu0 0
      %2064 = vmatpush1.bf16.msra.mxu0 0
      %2065 = vmatprep.subr.bf16.mxu0 0
      %2066 = vmatpush1.bf16.msra.mxu0 0
      %2067 = vmatprep.subr.bf16.mxu0 0
      %2068 = vmatpush1.bf16.msra.mxu0 0
      %2069 = vmatprep.subr.bf16.mxu0 0
      %2070 = vmatpush1.bf16.msra.mxu0 0
      %2071 = vmatprep.subr.bf16.mxu0 %v2014
      %2072 = vmatpush1.bf16.msra.mxu0 %v2011
      %2073 = vmatprep.subr.bf16.mxu0 0
      %2074 = vmatpush2.bf16.msra.mxu0 0
      %2075 = vmatprep.subr.bf16.mxu0 0
      %2076 = vmatpush2.bf16.msra.mxu0 0
      %2077 = vmatprep.subr.bf16.mxu0 0
      %2078 = vmatpush2.bf16.msra.mxu0 0
      %2079 = vmatprep.subr.bf16.mxu0 0
      %2080 = vmatpush2.bf16.msra.mxu0 0
      %2081 = vmatprep.subr.bf16.mxu0 0
      %2082 = vmatpush2.bf16.msra.mxu0 0
      %2083 = vmatprep.subr.bf16.mxu0 0
      %2084 = vmatpush2.bf16.msra.mxu0 0
      %2085 = vmatprep.subr.bf16.mxu0 0
      %2086 = vmatpush2.bf16.msra.mxu0 0
      %2087 = vmatprep.subr.bf16.mxu0 0
      %2088 = vmatpush2.bf16.msra.mxu0 0
      %2089 = vmatprep.mubr.bf16.mxu0 0
      %2090 = vmatmul.mubr.bf16.gmra.mxu0 %v2002
      %v2091 = vpop.f32.mrf.mxu0
      %v2092 = vadd.f32 0.0, %v2091
      %v2093 = vpop.f32.mrf.mxu0
      %v2094 = vadd.f32 0.0, %v2093
      %v2095 = vpop.f32.mrf.mxu0
      %v2096 = vpop.f32.mrf.mxu0
      %2097 = vdwg.mxu0
      %v2098 = vadd.f32 %v1949, %v2051
      %v2099 = vadd.f32 %v1950, %v2053
      %v2100 = vadd.f32 %v1951, %v2092
      %v2101 = vadd.f32 %v1952, %v2094
      %2102 = vrot.lane.b32.xlu0 %v1791, 65
      %v2103 = vpop.permute.xlu0 %2102
      %2104 = vrot.lane.b32.xlu0 %v1795, 65
      %v2105 = vpop.permute.xlu0 %2104
      %2106 = vrot.lane.b32.xlu0 %v1799, 65
      %v2107 = vpop.permute.xlu0 %2106
      %2108 = vrot.lane.b32.xlu0 %v1803, 65
      %v2109 = vpop.permute.xlu0 %2108
      %vm2110 = vcmask 531456
      %v2111 = vsel %vm2110, %v2103, %v2105
      %v2112 = vsel %vm2110, %v2105, %v2107
      %v2113 = vsel %vm2110, %v2107, %v2109
      %v2119 = vmul.f32 %v1355, %v2103
      %v2120 = vmul.f32 %v1356, %v2111
      %v2121 = vmul.f32 %v1357, %v2112
      %v2122 = vmul.f32 %v1358, %v2113
      %v2123 = vmul.f32 %v1389, %v2109
      %v2124 = vpack.c.bf16 %v2119, %v2119
      %v2125 = vpack.c.bf16 %v2120, %v2120
      %v2126 = vpack.c.bf16 %v2121, %v2121
      %v2127 = vpack.c.bf16 %v2122, %v2122
      %v2128 = vpack.c.bf16 %v2123, %v2123
      %s2129 = scalar_lea.vmem %s10, 28
      %v2130 = vld [vmem:[%s2129] sm:$0xf]
      %2136 = vrot.lane.b32.xlu0 %v2124, 63
      %v2137 = vpop.permute.xlu0 %2136
      %2138 = vrot.lane.b32.xlu0 %v2125, 63
      %v2139 = vpop.permute.xlu0 %2138
      %2140 = vrot.lane.b32.xlu0 %v2126, 63
      %v2141 = vpop.permute.xlu0 %2140
      %2142 = vrot.lane.b32.xlu0 %v2127, 63
      %v2143 = vpop.permute.xlu0 %2142
      %2144 = vrot.lane.b32.xlu0 %v2128, 63
      %v2145 = vpop.permute.xlu0 %2144
      %vm2146 = vcmask 515072
      %v2147 = vsel %vm2146, %v2137, %v2139
      %v2148 = vsel %vm2146, %v2139, %v2141
      %v2149 = vsel %vm2146, %v2141, %v2143
      %v2150 = vsel %vm2146, %v2143, %v2145
      %v2152 = vsel %vm1439, %v2130, 0
      %v2155 = vsel %vm1443, %v2147, 0
      %v2158 = vsel %vm1443, %v2148, 0
      %v2161 = vsel %vm1443, %v2149, 0
      %v2164 = vsel %vm1443, %v2150, 0
      %2166 = vmatprep.subr.bf16.mxu0 0
      %2167 = vmatpush1.bf16.msra.mxu0 0
      %2168 = vmatprep.subr.bf16.mxu0 0
      %2169 = vmatpush1.bf16.msra.mxu0 0
      %2170 = vmatprep.subr.bf16.mxu0 0
      %2171 = vmatpush1.bf16.msra.mxu0 0
      %2172 = vmatprep.subr.bf16.mxu0 0
      %2173 = vmatpush1.bf16.msra.mxu0 0
      %2174 = vmatprep.subr.bf16.mxu0 0
      %2175 = vmatpush1.bf16.msra.mxu0 0
      %2176 = vmatprep.subr.bf16.mxu0 0
      %2177 = vmatpush1.bf16.msra.mxu0 0
      %2178 = vmatprep.subr.bf16.mxu0 0
      %2179 = vmatpush1.bf16.msra.mxu0 0
      %2180 = vmatprep.subr.bf16.mxu0 %v2158
      %2181 = vmatpush1.bf16.msra.mxu0 %v2155
      %2182 = vmatprep.subr.bf16.mxu0 0
      %2183 = vmatpush2.bf16.msra.mxu0 0
      %2184 = vmatprep.subr.bf16.mxu0 0
      %2185 = vmatpush2.bf16.msra.mxu0 0
      %2186 = vmatprep.subr.bf16.mxu0 0
      %2187 = vmatpush2.bf16.msra.mxu0 0
      %2188 = vmatprep.subr.bf16.mxu0 0
      %2189 = vmatpush2.bf16.msra.mxu0 0
      %2190 = vmatprep.subr.bf16.mxu0 0
      %2191 = vmatpush2.bf16.msra.mxu0 0
      %2192 = vmatprep.subr.bf16.mxu0 0
      %2193 = vmatpush2.bf16.msra.mxu0 0
      %2194 = vmatprep.subr.bf16.mxu0 0
      %2195 = vmatpush2.bf16.msra.mxu0 0
      %2196 = vmatprep.subr.bf16.mxu0 0
      %2197 = vmatpush2.bf16.msra.mxu0 0
      %2198 = vmatprep.mubr.bf16.mxu0 0
      %2199 = vmatmul.mubr.bf16.gmra.mxu0 %v2152
      %v2200 = vpop.f32.mrf.mxu0
      %v2201 = vadd.f32 0.0, %v2200
      %v2202 = vpop.f32.mrf.mxu0
      %v2203 = vadd.f32 0.0, %v2202
      %v2204 = vpop.f32.mrf.mxu0
      %v2205 = vpop.f32.mrf.mxu0
      %2206 = vdwg.mxu0
      %2207 = vmatprep.subr.bf16.mxu0 0
      %2208 = vmatpush1.bf16.msra.mxu0 0
      %2209 = vmatprep.subr.bf16.mxu0 0
      %2210 = vmatpush1.bf16.msra.mxu0 0
      %2211 = vmatprep.subr.bf16.mxu0 0
      %2212 = vmatpush1.bf16.msra.mxu0 0
      %2213 = vmatprep.subr.bf16.mxu0 0
      %2214 = vmatpush1.bf16.msra.mxu0 0
      %2215 = vmatprep.subr.bf16.mxu0 0
      %2216 = vmatpush1.bf16.msra.mxu0 0
      %2217 = vmatprep.subr.bf16.mxu0 0
      %2218 = vmatpush1.bf16.msra.mxu0 0
      %2219 = vmatprep.subr.bf16.mxu0 0
      %2220 = vmatpush1.bf16.msra.mxu0 0
      %2221 = vmatprep.subr.bf16.mxu0 %v2164
      %2222 = vmatpush1.bf16.msra.mxu0 %v2161
      %2223 = vmatprep.subr.bf16.mxu0 0
      %2224 = vmatpush2.bf16.msra.mxu0 0
      %2225 = vmatprep.subr.bf16.mxu0 0
      %2226 = vmatpush2.bf16.msra.mxu0 0
      %2227 = vmatprep.subr.bf16.mxu0 0
      %2228 = vmatpush2.bf16.msra.mxu0 0
      %2229 = vmatprep.subr.bf16.mxu0 0
      %2230 = vmatpush2.bf16.msra.mxu0 0
      %2231 = vmatprep.subr.bf16.mxu0 0
      %2232 = vmatpush2.bf16.msra.mxu0 0
      %2233 = vmatprep.subr.bf16.mxu0 0
      %2234 = vmatpush2.bf16.msra.mxu0 0
      %2235 = vmatprep.subr.bf16.mxu0 0
      %2236 = vmatpush2.bf16.msra.mxu0 0
      %2237 = vmatprep.subr.bf16.mxu0 0
      %2238 = vmatpush2.bf16.msra.mxu0 0
      %2239 = vmatprep.mubr.bf16.mxu0 0
      %2240 = vmatmul.mubr.bf16.gmra.mxu0 %v2152
      %v2241 = vpop.f32.mrf.mxu0
      %v2242 = vadd.f32 0.0, %v2241
      %v2243 = vpop.f32.mrf.mxu0
      %v2244 = vadd.f32 0.0, %v2243
      %v2245 = vpop.f32.mrf.mxu0
      %v2246 = vpop.f32.mrf.mxu0
      %2247 = vdwg.mxu0
      %v2248 = vadd.f32 %v2098, %v2201
      %v2249 = vadd.f32 %v2099, %v2203
      %v2250 = vadd.f32 %v2100, %v2242
      %v2251 = vadd.f32 %v2101, %v2244
      %s2252 = scalar_lea.vmem %s9, 2
      %v2253 = vld [vmem:[%s2252] ss:$4 sm:$0xf]
      %v2255 = vlaneseq
      %v2256 = vshrl.u32 %v2255, 7
      %v2257 = vsub.s32 0, %v2256
      %v2258 = vrot.slane %v2253, %v2257
      %v2259 = vlaneseq
      %v2260 = vshrl.u32 %v2259, 7
      %v2261 = vsub.s32 1, %v2260
      %v2262 = vrot.slane %v2253, %v2261
      %v2263 = vlaneseq
      %v2264 = vshrl.u32 %v2263, 7
      %v2265 = vsub.s32 2, %v2264
      %v2266 = vrot.slane %v2253, %v2265
      %v2267 = vlaneseq
      %v2268 = vshrl.u32 %v2267, 7
      %v2269 = vsub.s32 3, %v2268
      %v2270 = vrot.slane %v2253, %v2269
      %2271 = vrot.lane.b32.xlu0 %v2258, 2
      %v2272 = vpop.permute.xlu0 %2271
      %2273 = vrot.lane.b32.xlu0 %v2262, 2
      %v2274 = vpop.permute.xlu0 %2273
      %2275 = vrot.lane.b32.xlu0 %v2266, 2
      %v2276 = vpop.permute.xlu0 %2275
      %2277 = vrot.lane.b32.xlu0 %v2270, 2
      %v2278 = vpop.permute.xlu0 %2277
      %vm2279 = vcmask 15360
      %v2280 = vsel %vm2279, %v2272, %v2274
      %v2281 = vsel %vm2279, %v2274, %v2276
      %v2282 = vsel %vm2279, %v2276, %v2278
      %v2288 = vmul.f32 %v1355, %v2272
      %v2289 = vmul.f32 %v1356, %v2280
      %v2290 = vmul.f32 %v1357, %v2281
      %v2291 = vmul.f32 %v1358, %v2282
      %v2292 = vmul.f32 %v1389, %v2278
      %v2293 = vpack.c.bf16 %v2288, %v2288
      %v2294 = vpack.c.bf16 %v2289, %v2289
      %v2295 = vpack.c.bf16 %v2290, %v2290
      %v2296 = vpack.c.bf16 %v2291, %v2291
      %v2297 = vpack.c.bf16 %v2292, %v2292
      %s2298 = scalar_lea.vmem %s10, 8
      %v2299 = vld [vmem:[%s2298] sm:$0xf]
      %2305 = vrot.lane.b32.xlu0 %v2293, 126
      %v2306 = vpop.permute.xlu0 %2305
      %2307 = vrot.lane.b32.xlu0 %v2294, 126
      %v2308 = vpop.permute.xlu0 %2307
      %2309 = vrot.lane.b32.xlu0 %v2295, 126
      %v2310 = vpop.permute.xlu0 %2309
      %2311 = vrot.lane.b32.xlu0 %v2296, 126
      %v2312 = vpop.permute.xlu0 %2311
      %2313 = vrot.lane.b32.xlu0 %v2297, 126
      %v2314 = vpop.permute.xlu0 %2313
      %vm2315 = vcmask 1031168
      %v2316 = vsel %vm2315, %v2306, %v2308
      %v2317 = vsel %vm2315, %v2308, %v2310
      %v2318 = vsel %vm2315, %v2310, %v2312
      %v2319 = vsel %vm2315, %v2312, %v2314
      %v2321 = vsel %vm1439, %v2299, 0
      %v2324 = vsel %vm1443, %v2316, 0
      %v2327 = vsel %vm1443, %v2317, 0
      %v2330 = vsel %vm1443, %v2318, 0
      %v2333 = vsel %vm1443, %v2319, 0
      %2335 = vmatprep.subr.bf16.mxu0 0
      %2336 = vmatpush1.bf16.msra.mxu0 0
      %2337 = vmatprep.subr.bf16.mxu0 0
      %2338 = vmatpush1.bf16.msra.mxu0 0
      %2339 = vmatprep.subr.bf16.mxu0 0
      %2340 = vmatpush1.bf16.msra.mxu0 0
      %2341 = vmatprep.subr.bf16.mxu0 0
      %2342 = vmatpush1.bf16.msra.mxu0 0
      %2343 = vmatprep.subr.bf16.mxu0 0
      %2344 = vmatpush1.bf16.msra.mxu0 0
      %2345 = vmatprep.subr.bf16.mxu0 0
      %2346 = vmatpush1.bf16.msra.mxu0 0
      %2347 = vmatprep.subr.bf16.mxu0 0
      %2348 = vmatpush1.bf16.msra.mxu0 0
      %2349 = vmatprep.subr.bf16.mxu0 %v2327
      %2350 = vmatpush1.bf16.msra.mxu0 %v2324
      %2351 = vmatprep.subr.bf16.mxu0 0
      %2352 = vmatpush2.bf16.msra.mxu0 0
      %2353 = vmatprep.subr.bf16.mxu0 0
      %2354 = vmatpush2.bf16.msra.mxu0 0
      %2355 = vmatprep.subr.bf16.mxu0 0
      %2356 = vmatpush2.bf16.msra.mxu0 0
      %2357 = vmatprep.subr.bf16.mxu0 0
      %2358 = vmatpush2.bf16.msra.mxu0 0
      %2359 = vmatprep.subr.bf16.mxu0 0
      %2360 = vmatpush2.bf16.msra.mxu0 0
      %2361 = vmatprep.subr.bf16.mxu0 0
      %2362 = vmatpush2.bf16.msra.mxu0 0
      %2363 = vmatprep.subr.bf16.mxu0 0
      %2364 = vmatpush2.bf16.msra.mxu0 0
      %2365 = vmatprep.subr.bf16.mxu0 0
      %2366 = vmatpush2.bf16.msra.mxu0 0
      %2367 = vmatprep.mubr.bf16.mxu0 0
      %2368 = vmatmul.mubr.bf16.gmra.mxu0 %v2321
      %v2369 = vpop.f32.mrf.mxu0
      %v2370 = vadd.f32 0.0, %v2369
      %v2371 = vpop.f32.mrf.mxu0
      %v2372 = vadd.f32 0.0, %v2371
      %v2373 = vpop.f32.mrf.mxu0
      %v2374 = vpop.f32.mrf.mxu0
      %2375 = vdwg.mxu0
      %2376 = vmatprep.subr.bf16.mxu0 0
      %2377 = vmatpush1.bf16.msra.mxu0 0
      %2378 = vmatprep.subr.bf16.mxu0 0
      %2379 = vmatpush1.bf16.msra.mxu0 0
      %2380 = vmatprep.subr.bf16.mxu0 0
      %2381 = vmatpush1.bf16.msra.mxu0 0
      %2382 = vmatprep.subr.bf16.mxu0 0
      %2383 = vmatpush1.bf16.msra.mxu0 0
      %2384 = vmatprep.subr.bf16.mxu0 0
      %2385 = vmatpush1.bf16.msra.mxu0 0
      %2386 = vmatprep.subr.bf16.mxu0 0
      %2387 = vmatpush1.bf16.msra.mxu0 0
      %2388 = vmatprep.subr.bf16.mxu0 0
      %2389 = vmatpush1.bf16.msra.mxu0 0
      %2390 = vmatprep.subr.bf16.mxu0 %v2333
      %2391 = vmatpush1.bf16.msra.mxu0 %v2330
      %2392 = vmatprep.subr.bf16.mxu0 0
      %2393 = vmatpush2.bf16.msra.mxu0 0
      %2394 = vmatprep.subr.bf16.mxu0 0
      %2395 = vmatpush2.bf16.msra.mxu0 0
      %2396 = vmatprep.subr.bf16.mxu0 0
      %2397 = vmatpush2.bf16.msra.mxu0 0
      %2398 = vmatprep.subr.bf16.mxu0 0
      %2399 = vmatpush2.bf16.msra.mxu0 0
      %2400 = vmatprep.subr.bf16.mxu0 0
      %2401 = vmatpush2.bf16.msra.mxu0 0
      %2402 = vmatprep.subr.bf16.mxu0 0
      %2403 = vmatpush2.bf16.msra.mxu0 0
      %2404 = vmatprep.subr.bf16.mxu0 0
      %2405 = vmatpush2.bf16.msra.mxu0 0
      %2406 = vmatprep.subr.bf16.mxu0 0
      %2407 = vmatpush2.bf16.msra.mxu0 0
      %2408 = vmatprep.mubr.bf16.mxu0 0
      %2409 = vmatmul.mubr.bf16.gmra.mxu0 %v2321
      %v2410 = vpop.f32.mrf.mxu0
      %v2411 = vadd.f32 0.0, %v2410
      %v2412 = vpop.f32.mrf.mxu0
      %v2413 = vadd.f32 0.0, %v2412
      %v2414 = vpop.f32.mrf.mxu0
      %v2415 = vpop.f32.mrf.mxu0
      %2416 = vdwg.mxu0
      %v2417 = vadd.f32 %v2248, %v2370
      %v2418 = vadd.f32 %v2249, %v2372
      %v2419 = vadd.f32 %v2250, %v2411
      %v2420 = vadd.f32 %v2251, %v2413
      %2421 = vrot.lane.b32.xlu0 %v2258, 34
      %v2422 = vpop.permute.xlu0 %2421
      %2423 = vrot.lane.b32.xlu0 %v2262, 34
      %v2424 = vpop.permute.xlu0 %2423
      %2425 = vrot.lane.b32.xlu0 %v2266, 34
      %v2426 = vpop.permute.xlu0 %2425
      %2427 = vrot.lane.b32.xlu0 %v2270, 34
      %v2428 = vpop.permute.xlu0 %2427
      %vm2429 = vcmask 277504
      %v2430 = vsel %vm2429, %v2422, %v2424
      %v2431 = vsel %vm2429, %v2424, %v2426
      %v2432 = vsel %vm2429, %v2426, %v2428
      %v2438 = vmul.f32 %v1355, %v2422
      %v2439 = vmul.f32 %v1356, %v2430
      %v2440 = vmul.f32 %v1357, %v2431
      %v2441 = vmul.f32 %v1358, %v2432
      %v2442 = vmul.f32 %v1389, %v2428
      %v2443 = vpack.c.bf16 %v2438, %v2438
      %v2444 = vpack.c.bf16 %v2439, %v2439
      %v2445 = vpack.c.bf16 %v2440, %v2440
      %v2446 = vpack.c.bf16 %v2441, %v2441
      %v2447 = vpack.c.bf16 %v2442, %v2442
      %s2448 = scalar_lea.vmem %s10, 20
      %v2449 = vld [vmem:[%s2448] sm:$0xf]
      %2455 = vrot.lane.b32.xlu0 %v2443, 94
      %v2456 = vpop.permute.xlu0 %2455
      %2457 = vrot.lane.b32.xlu0 %v2444, 94
      %v2458 = vpop.permute.xlu0 %2457
      %2459 = vrot.lane.b32.xlu0 %v2445, 94
      %v2460 = vpop.permute.xlu0 %2459
      %2461 = vrot.lane.b32.xlu0 %v2446, 94
      %v2462 = vpop.permute.xlu0 %2461
      %2463 = vrot.lane.b32.xlu0 %v2447, 94
      %v2464 = vpop.permute.xlu0 %2463
      %vm2465 = vcmask 769024
      %v2466 = vsel %vm2465, %v2456, %v2458
      %v2467 = vsel %vm2465, %v2458, %v2460
      %v2468 = vsel %vm2465, %v2460, %v2462
      %v2469 = vsel %vm2465, %v2462, %v2464
      %v2471 = vsel %vm1439, %v2449, 0
      %v2474 = vsel %vm1443, %v2466, 0
      %v2477 = vsel %vm1443, %v2467, 0
      %v2480 = vsel %vm1443, %v2468, 0
      %v2483 = vsel %vm1443, %v2469, 0
      %2485 = vmatprep.subr.bf16.mxu0 0
      %2486 = vmatpush1.bf16.msra.mxu0 0
      %2487 = vmatprep.subr.bf16.mxu0 0
      %2488 = vmatpush1.bf16.msra.mxu0 0
      %2489 = vmatprep.subr.bf16.mxu0 0
      %2490 = vmatpush1.bf16.msra.mxu0 0
      %2491 = vmatprep.subr.bf16.mxu0 0
      %2492 = vmatpush1.bf16.msra.mxu0 0
      %2493 = vmatprep.subr.bf16.mxu0 0
      %2494 = vmatpush1.bf16.msra.mxu0 0
      %2495 = vmatprep.subr.bf16.mxu0 0
      %2496 = vmatpush1.bf16.msra.mxu0 0
      %2497 = vmatprep.subr.bf16.mxu0 0
      %2498 = vmatpush1.bf16.msra.mxu0 0
      %2499 = vmatprep.subr.bf16.mxu0 %v2477
      %2500 = vmatpush1.bf16.msra.mxu0 %v2474
      %2501 = vmatprep.subr.bf16.mxu0 0
      %2502 = vmatpush2.bf16.msra.mxu0 0
      %2503 = vmatprep.subr.bf16.mxu0 0
      %2504 = vmatpush2.bf16.msra.mxu0 0
      %2505 = vmatprep.subr.bf16.mxu0 0
      %2506 = vmatpush2.bf16.msra.mxu0 0
      %2507 = vmatprep.subr.bf16.mxu0 0
      %2508 = vmatpush2.bf16.msra.mxu0 0
      %2509 = vmatprep.subr.bf16.mxu0 0
      %2510 = vmatpush2.bf16.msra.mxu0 0
      %2511 = vmatprep.subr.bf16.mxu0 0
      %2512 = vmatpush2.bf16.msra.mxu0 0
      %2513 = vmatprep.subr.bf16.mxu0 0
      %2514 = vmatpush2.bf16.msra.mxu0 0
      %2515 = vmatprep.subr.bf16.mxu0 0
      %2516 = vmatpush2.bf16.msra.mxu0 0
      %2517 = vmatprep.mubr.bf16.mxu0 0
      %2518 = vmatmul.mubr.bf16.gmra.mxu0 %v2471
      %v2519 = vpop.f32.mrf.mxu0
      %v2520 = vadd.f32 0.0, %v2519
      %v2521 = vpop.f32.mrf.mxu0
      %v2522 = vadd.f32 0.0, %v2521
      %v2523 = vpop.f32.mrf.mxu0
      %v2524 = vpop.f32.mrf.mxu0
      %2525 = vdwg.mxu0
      %2526 = vmatprep.subr.bf16.mxu0 0
      %2527 = vmatpush1.bf16.msra.mxu0 0
      %2528 = vmatprep.subr.bf16.mxu0 0
      %2529 = vmatpush1.bf16.msra.mxu0 0
      %2530 = vmatprep.subr.bf16.mxu0 0
      %2531 = vmatpush1.bf16.msra.mxu0 0
      %2532 = vmatprep.subr.bf16.mxu0 0
      %2533 = vmatpush1.bf16.msra.mxu0 0
      %2534 = vmatprep.subr.bf16.mxu0 0
      %2535 = vmatpush1.bf16.msra.mxu0 0
      %2536 = vmatprep.subr.bf16.mxu0 0
      %2537 = vmatpush1.bf16.msra.mxu0 0
      %2538 = vmatprep.subr.bf16.mxu0 0
      %2539 = vmatpush1.bf16.msra.mxu0 0
      %2540 = vmatprep.subr.bf16.mxu0 %v2483
      %2541 = vmatpush1.bf16.msra.mxu0 %v2480
      %2542 = vmatprep.subr.bf16.mxu0 0
      %2543 = vmatpush2.bf16.msra.mxu0 0
      %2544 = vmatprep.subr.bf16.mxu0 0
      %2545 = vmatpush2.bf16.msra.mxu0 0
      %2546 = vmatprep.subr.bf16.mxu0 0
      %2547 = vmatpush2.bf16.msra.mxu0 0
      %2548 = vmatprep.subr.bf16.mxu0 0
      %2549 = vmatpush2.bf16.msra.mxu0 0
      %2550 = vmatprep.subr.bf16.mxu0 0
      %2551 = vmatpush2.bf16.msra.mxu0 0
      %2552 = vmatprep.subr.bf16.mxu0 0
      %2553 = vmatpush2.bf16.msra.mxu0 0
      %2554 = vmatprep.subr.bf16.mxu0 0
      %2555 = vmatpush2.bf16.msra.mxu0 0
      %2556 = vmatprep.subr.bf16.mxu0 0
      %2557 = vmatpush2.bf16.msra.mxu0 0
      %2558 = vmatprep.mubr.bf16.mxu0 0
      %2559 = vmatmul.mubr.bf16.gmra.mxu0 %v2471
      %v2560 = vpop.f32.mrf.mxu0
      %v2561 = vadd.f32 0.0, %v2560
      %v2562 = vpop.f32.mrf.mxu0
      %v2563 = vadd.f32 0.0, %v2562
      %v2564 = vpop.f32.mrf.mxu0
      %v2565 = vpop.f32.mrf.mxu0
      %2566 = vdwg.mxu0
      %v2567 = vadd.f32 %v2417, %v2520
      %v2568 = vadd.f32 %v2418, %v2522
      %v2569 = vadd.f32 %v2419, %v2561
      %v2570 = vadd.f32 %v2420, %v2563
      %2571 = vrot.lane.b32.xlu0 %v2258, 66
      %v2572 = vpop.permute.xlu0 %2571
      %2573 = vrot.lane.b32.xlu0 %v2262, 66
      %v2574 = vpop.permute.xlu0 %2573
      %2575 = vrot.lane.b32.xlu0 %v2266, 66
      %v2576 = vpop.permute.xlu0 %2575
      %2577 = vrot.lane.b32.xlu0 %v2270, 66
      %v2578 = vpop.permute.xlu0 %2577
      %vm2579 = vcmask 539648
      %v2580 = vsel %vm2579, %v2572, %v2574
      %v2581 = vsel %vm2579, %v2574, %v2576
      %v2582 = vsel %vm2579, %v2576, %v2578
      %v2588 = vmul.f32 %v1355, %v2572
      %v2589 = vmul.f32 %v1356, %v2580
      %v2590 = vmul.f32 %v1357, %v2581
      %v2591 = vmul.f32 %v1358, %v2582
      %v2592 = vmul.f32 %v1389, %v2578
      %v2593 = vpack.c.bf16 %v2588, %v2588
      %v2594 = vpack.c.bf16 %v2589, %v2589
      %v2595 = vpack.c.bf16 %v2590, %v2590
      %v2596 = vpack.c.bf16 %v2591, %v2591
      %v2597 = vpack.c.bf16 %v2592, %v2592
      %s2598 = scalar_lea.vmem %s10, 32
      %v2599 = vld [vmem:[%s2598] sm:$0xf]
      %2605 = vrot.lane.b32.xlu0 %v2593, 62
      %v2606 = vpop.permute.xlu0 %2605
      %2607 = vrot.lane.b32.xlu0 %v2594, 62
      %v2608 = vpop.permute.xlu0 %2607
      %2609 = vrot.lane.b32.xlu0 %v2595, 62
      %v2610 = vpop.permute.xlu0 %2609
      %2611 = vrot.lane.b32.xlu0 %v2596, 62
      %v2612 = vpop.permute.xlu0 %2611
      %2613 = vrot.lane.b32.xlu0 %v2597, 62
      %v2614 = vpop.permute.xlu0 %2613
      %vm2615 = vcmask 506880
      %v2616 = vsel %vm2615, %v2606, %v2608
      %v2617 = vsel %vm2615, %v2608, %v2610
      %v2618 = vsel %vm2615, %v2610, %v2612
      %v2619 = vsel %vm2615, %v2612, %v2614
      %v2621 = vsel %vm1439, %v2599, 0
      %v2624 = vsel %vm1443, %v2616, 0
      %v2627 = vsel %vm1443, %v2617, 0
      %v2630 = vsel %vm1443, %v2618, 0
      %v2633 = vsel %vm1443, %v2619, 0
      %2635 = vmatprep.subr.bf16.mxu0 0
      %2636 = vmatpush1.bf16.msra.mxu0 0
      %2637 = vmatprep.subr.bf16.mxu0 0
      %2638 = vmatpush1.bf16.msra.mxu0 0
      %2639 = vmatprep.subr.bf16.mxu0 0
      %2640 = vmatpush1.bf16.msra.mxu0 0
      %2641 = vmatprep.subr.bf16.mxu0 0
      %2642 = vmatpush1.bf16.msra.mxu0 0
      %2643 = vmatprep.subr.bf16.mxu0 0
      %2644 = vmatpush1.bf16.msra.mxu0 0
      %2645 = vmatprep.subr.bf16.mxu0 0
      %2646 = vmatpush1.bf16.msra.mxu0 0
      %2647 = vmatprep.subr.bf16.mxu0 0
      %2648 = vmatpush1.bf16.msra.mxu0 0
      %2649 = vmatprep.subr.bf16.mxu0 %v2627
      %2650 = vmatpush1.bf16.msra.mxu0 %v2624
      %2651 = vmatprep.subr.bf16.mxu0 0
      %2652 = vmatpush2.bf16.msra.mxu0 0
      %2653 = vmatprep.subr.bf16.mxu0 0
      %2654 = vmatpush2.bf16.msra.mxu0 0
      %2655 = vmatprep.subr.bf16.mxu0 0
      %2656 = vmatpush2.bf16.msra.mxu0 0
      %2657 = vmatprep.subr.bf16.mxu0 0
      %2658 = vmatpush2.bf16.msra.mxu0 0
      %2659 = vmatprep.subr.bf16.mxu0 0
      %2660 = vmatpush2.bf16.msra.mxu0 0
      %2661 = vmatprep.subr.bf16.mxu0 0
      %2662 = vmatpush2.bf16.msra.mxu0 0
      %2663 = vmatprep.subr.bf16.mxu0 0
      %2664 = vmatpush2.bf16.msra.mxu0 0
      %2665 = vmatprep.subr.bf16.mxu0 0
      %2666 = vmatpush2.bf16.msra.mxu0 0
      %2667 = vmatprep.mubr.bf16.mxu0 0
      %2668 = vmatmul.mubr.bf16.gmra.mxu0 %v2621
      %v2669 = vpop.f32.mrf.mxu0
      %v2670 = vadd.f32 0.0, %v2669
      %v2671 = vpop.f32.mrf.mxu0
      %v2672 = vadd.f32 0.0, %v2671
      %v2673 = vpop.f32.mrf.mxu0
      %v2674 = vpop.f32.mrf.mxu0
      %2675 = vdwg.mxu0
      %2676 = vmatprep.subr.bf16.mxu0 0
      %2677 = vmatpush1.bf16.msra.mxu0 0
      %2678 = vmatprep.subr.bf16.mxu0 0
      %2679 = vmatpush1.bf16.msra.mxu0 0
      %2680 = vmatprep.subr.bf16.mxu0 0
      %2681 = vmatpush1.bf16.msra.mxu0 0
      %2682 = vmatprep.subr.bf16.mxu0 0
      %2683 = vmatpush1.bf16.msra.mxu0 0
      %2684 = vmatprep.subr.bf16.mxu0 0
      %2685 = vmatpush1.bf16.msra.mxu0 0
      %2686 = vmatprep.subr.bf16.mxu0 0
      %2687 = vmatpush1.bf16.msra.mxu0 0
      %2688 = vmatprep.subr.bf16.mxu0 0
      %2689 = vmatpush1.bf16.msra.mxu0 0
      %2690 = vmatprep.subr.bf16.mxu0 %v2633
      %2691 = vmatpush1.bf16.msra.mxu0 %v2630
      %2692 = vmatprep.subr.bf16.mxu0 0
      %2693 = vmatpush2.bf16.msra.mxu0 0
      %2694 = vmatprep.subr.bf16.mxu0 0
      %2695 = vmatpush2.bf16.msra.mxu0 0
      %2696 = vmatprep.subr.bf16.mxu0 0
      %2697 = vmatpush2.bf16.msra.mxu0 0
      %2698 = vmatprep.subr.bf16.mxu0 0
      %2699 = vmatpush2.bf16.msra.mxu0 0
      %2700 = vmatprep.subr.bf16.mxu0 0
      %2701 = vmatpush2.bf16.msra.mxu0 0
      %2702 = vmatprep.subr.bf16.mxu0 0
      %2703 = vmatpush2.bf16.msra.mxu0 0
      %2704 = vmatprep.subr.bf16.mxu0 0
      %2705 = vmatpush2.bf16.msra.mxu0 0
      %2706 = vmatprep.subr.bf16.mxu0 0
      %2707 = vmatpush2.bf16.msra.mxu0 0
      %2708 = vmatprep.mubr.bf16.mxu0 0
      %2709 = vmatmul.mubr.bf16.gmra.mxu0 %v2621
      %v2710 = vpop.f32.mrf.mxu0
      %v2711 = vadd.f32 0.0, %v2710
      %v2712 = vpop.f32.mrf.mxu0
      %v2713 = vadd.f32 0.0, %v2712
      %v2714 = vpop.f32.mrf.mxu0
      %v2715 = vpop.f32.mrf.mxu0
      %2716 = vdwg.mxu0
      %v2717 = vadd.f32 %v2567, %v2670
      %v2718 = vadd.f32 %v2568, %v2672
      %v2719 = vadd.f32 %v2569, %v2711
      %v2720 = vadd.f32 %v2570, %v2713
      %v2721 = vld [vmem:[%s11] sm:$0xff]
      %2723 = vset.pattern.permute.xlu0 0
      %2724 = vperm.xlu0 %2723, %v2721
      %v2725 = vpop.permute.xlu0 %2724
      %v2727 = vadd.f32 %v2717, %v2725
      %v2728 = vadd.f32 %v2718, %v2725
      %v2729 = vadd.f32 %v2719, %v2725
      %v2730 = vadd.f32 %v2720, %v2725
      %v2731 = vmax.f32 %v2727, 0.0
      %v2732 = vmax.f32 %v2728, 0.0
      %v2733 = vmax.f32 %v2729, 0.0
      %v2734 = vmax.f32 %v2730, 0.0
      %v2735 = vadd.f32 %v2731, %v2732
      %v2736 = vadd.f32 %v2735, %v2733
      %v2737 = vadd.f32 %v2736, %v2734
      %2738 = vadd.xlane.f32.xlu0 %v2737
      %v2739 = vpop.xlane.xlu0 %2738
      %v2740 = vmul.f32 %v2731, %v2731
      %v2741 = vmul.f32 %v2732, %v2732
      %v2742 = vmul.f32 %v2733, %v2733
      %v2743 = vmul.f32 %v2734, %v2734
      %v2744 = vadd.f32 %v2740, %v2741
      %v2745 = vadd.f32 %v2744, %v2742
      %v2746 = vadd.f32 %v2745, %v2743
      %2747 = vadd.xlane.f32.xlu0 %v2746
      %v2748 = vpop.xlane.xlu0 %2747
      %v2749 = vsel %vm1043, %v2739, %v2748
      %2750 = vst.msk [vmem:[%s763] sm:$0xff] %vm2279, %v2749
      %2751 = vst [vmem:[%s754] sm:$0xff] %v2731
      %2752 = vst [vmem:[%s754 + $0x8] sm:$0xff] %v2732
      %2753 = vst [vmem:[%s754 + $0x10] sm:$0xff] %v2733
      %2754 = vst [vmem:[%s754 + $0x18] sm:$0xff] %v2734
      %s2755 = smul.u32 4, %s30
      %p2756 = scmp.lt.s32.totalorder %s29, 1
      %s2757 = scalar_select %p2756, %s29, 1
      %p2758 = scmp.lt.s32.totalorder %s2755, 7
      %s2759 = scalar_select %p2758, %s2755, 7
      %s2760 = smul.addr %s2757, 8
      %s2761 = sadd.s32 %s2759, %s2760
      %s2762 = smul.addr %s2761, 8
      %s2763 = scalar_lea.vmem %s12, %s2762
      %p2764 = scmp.lt.s32.totalorder %s29, 1
      %s2765 = scalar_select %p2764, %s29, 1
      %p2766 = scmp.lt.s32.totalorder %s30, 1
      %s2767 = scalar_select %p2766, %s30, 1
      %s2768 = smul.addr %s2765, 2
      %s2769 = sadd.s32 %s2767, %s2768
      %s2770 = smul.addr %s2769, 8
      %s2771 = scalar_lea.vmem %s13, %s2770
      // Predicated region
      $region69: #{unet_up_forward.2} parent=67 // pred_check
        %p2772 = pneg %p379
      $region70: #{unet_up_forward.2} parent=67 // pred_check_branch
        %2774 = sbr.rel (%p2772) target = $region72
      $region71: #{unet_up_forward.2} parent=67 // pred_region
        %s2775 = smul.u32 4, %s30
      $region72: #{unet_up_forward.2} parent=67 // pred_fallthru
        _
      // Predicated region
      $region73: #{unet_up_forward.2} parent=67 // pred_check
        %p2776 = pneg %p407
      $region74: #{unet_up_forward.2} parent=67 // pred_check_branch
        %2778 = sbr.rel (%p2776) target = $region76
      $region75: #{unet_up_forward.2} parent=67 // pred_region
        _
      $region76: #{unet_up_forward.2} parent=67 // pred_fallthru
        _
    $region68: #{unet_up_forward.2} parent=5 // pred_fallthru
      _
    %p2779 = scmp.le.s32.totalorder 2, %s20
    // Predicated region
    $region77: #{unet_up_forward.2} parent=5 // pred_check
      %p2780 = pneg %p2779
    $region78: #{unet_up_forward.2} parent=5 // pred_check_branch
      %2782 = sbr.rel (%p2780) target = $region80
    $region79: #{unet_up_forward.2} parent=5 // pred_region
      %s2783 = ssub.s32 %s20, 2
      // Predicated region
      $region81: #{unet_up_forward.2} parent=79 // pred_check
        %p2784 = pneg %p385
      $region82: #{unet_up_forward.2} parent=79 // pred_check_branch
        %2786 = sbr.rel (%p2784) target = $region84
      $region83: #{unet_up_forward.2} parent=79 // pred_region
        %s2787 = smul.u32 4, %s32
        %p2788 = scmp.lt.s32.totalorder %s31, 1
        %s2789 = scalar_select %p2788, %s31, 1
        %p2790 = scmp.lt.s32.totalorder %s2787, 7
        %s2791 = scalar_select %p2790, %s2787, 7
        %s2792 = smul.addr %s2789, 8
        %s2793 = sadd.s32 %s2791, %s2792
        %s2794 = smul.addr %s2793, 8
        %s2795 = scalar_lea.vmem %s12, %s2794
      $region84: #{unet_up_forward.2} parent=79 // pred_fallthru
        _
      // Predicated region
      $region85: #{unet_up_forward.2} parent=79 // pred_check
        %p2796 = pneg %p413
      $region86: #{unet_up_forward.2} parent=79 // pred_check_branch
        %2798 = sbr.rel (%p2796) target = $region88
      $region87: #{unet_up_forward.2} parent=79 // pred_region
        %p2799 = scmp.lt.s32.totalorder %s31, 1
        %s2800 = scalar_select %p2799, %s31, 1
        %p2801 = scmp.lt.s32.totalorder %s32, 1
        %s2802 = scalar_select %p2801, %s32, 1
        %s2803 = smul.addr %s2800, 2
        %s2804 = sadd.s32 %s2802, %s2803
        %s2805 = smul.addr %s2804, 8
        %s2806 = scalar_lea.vmem %s13, %s2805
      $region88: #{unet_up_forward.2} parent=79 // pred_fallthru
        _
    $region80: #{unet_up_forward.2} parent=5 // pred_fallthru
      _
  $region6: #{unet_up_forward.2} parent=0 // loop_footer
    %s24 = sadd.s32 1, %s20
  $region7: #{unet_up_forward.2} parent=0 // loop_footer_branch
    %19 = sbr.rel target = $region3
  $region8: #{unet_up_forward.2} parent=0 // loop_exit
    _

</llo_original>
